<compile_context>
chip_gen: v7x
topology: tpu7x:2x2x1
jax: 0.10.0
libtpu: 0.0.40
codegen_flags: <defaults>
</compile_context>

<pallas_src>
import math

import jax
import jax.numpy as jnp
from jax.experimental import pallas as pl
from jax.experimental.pallas import tpu as pltpu

IMG_SHAPE = (1, 28, 28)
LATENT_DIM = 100
OUT_DIM = int(math.prod(IMG_SHAPE))                   # 784
LAYER_DIMS = [LATENT_DIM, 128, 256, 512, 1024, OUT_DIM]
PADDED_DIMS = [128, 128, 256, 512, 1024, 896]         # lane-aligned (multiples of 128)
BN_EPS = 1e-5
LRELU_SLOPE = 0.2

# Packed layout of the coalesced small-weight buffer (bf16, one DMA):
#   w3 (256,512) -> rows [0:256),   cols [0:512)
#   w1 (128,128) -> rows [256:384), cols [0:128)
#   w2 (128,256) -> rows [256:384), cols [128:384)
W123_SHAPE = (384, 512)

# Row layout of the packed per-feature table `vec` (f32, (16, 1024), one auto-DMA):
#   0: gamma1[:128]   1: beta1[:128]
#   2: gamma2[:256]   3: beta2[:256]
#   4: gamma3[:512]   5: beta3[:512]
#   6: gamma4[:1024]  7: beta4[:1024]
#   8: s4[:1024]   (per-output-column int8 dequant scale of w4)
#   9: b5[:896]   10: s5[:896] (per-output-column int8 dequant scale of w5)
VEC_ROWS = 16


def generator_kernel(z_ref, w123_hbm, w4_hbm, w5_hbm, vec_ref, out_ref,
                     w123_buf, w4_buf, w5_buf, sem):
    # Issue all three weight DMAs up-front; each layer group waits only on its own
    # buffer, so layers 1-3 compute overlaps the (larger) w4/w5 transfers.
    cp123 = pltpu.make_async_copy(w123_hbm, w123_buf, sem.at[0])
    cp4 = pltpu.make_async_copy(w4_hbm, w4_buf, sem.at[1])
    cp5 = pltpu.make_async_copy(w5_hbm, w5_buf, sem.at[2])
    cp123.start()
    cp4.start()
    cp5.start()

    def bn_lrelu(yq, gamma, beta, col_scale=None):
        # Training-mode BatchNorm1d (batch mean, biased variance) folded into one
        # per-feature scale/shift.  Linear biases b1..b4 cancel exactly under the
        # mean subtraction and are never added.  For int8-quantized weights the
        # per-column dequant scale s folds into the BN scale:
        #   BN(yq*s) = (yq - mean_q) * [gamma*s*rsqrt(var_q*s^2 + eps)] + beta
        mean = jnp.mean(yq, axis=0, keepdims=True)
        centered = yq - mean
        var = jnp.mean(centered * centered, axis=0, keepdims=True)
        if col_scale is None:
            scale = gamma * jax.lax.rsqrt(var + BN_EPS)
        else:
            scale = gamma * col_scale * jax.lax.rsqrt(
                var * (col_scale * col_scale) + BN_EPS)
        y = centered * scale + beta
        # LeakyReLU(0.2) as mul + max (VPU-friendly).
        return jnp.maximum(y, LRELU_SLOPE * y)

    h = z_ref[...].astype(jnp.bfloat16)

    # ---- Layers 1-3: one coalesced bf16 weight DMA ---------------------------
    cp123.wait()
    w1 = w123_buf[256:384, 0:128]
    w2 = w123_buf[256:384, 128:384]
    w3 = w123_buf[0:256, 0:512]
    h = bn_lrelu(jnp.dot(h, w1, preferred_element_type=jnp.float32),
                 vec_ref[0:1, 0:128], vec_ref[1:2, 0:128])
    h = bn_lrelu(jnp.dot(h.astype(jnp.bfloat16), w2,
                         preferred_element_type=jnp.float32),
                 vec_ref[2:3, 0:256], vec_ref[3:4, 0:256])
    h = bn_lrelu(jnp.dot(h.astype(jnp.bfloat16), w3,
                         preferred_element_type=jnp.float32),
                 vec_ref[4:5, 0:512], vec_ref[5:6, 0:512])

    # ---- Layer 4: int8 weight, exact int8->bf16 cast, scale folded into BN ---
    cp4.wait()
    yq4 = jnp.dot(h.astype(jnp.bfloat16), w4_buf[...].astype(jnp.bfloat16),
                  preferred_element_type=jnp.float32)
    h = bn_lrelu(yq4, vec_ref[6:7, :], vec_ref[7:8, :],
                 col_scale=vec_ref[8:9, :])

    # ---- Output head: int8 Linear(1024 -> 784, padded 896) + bias + Tanh -----
    cp5.wait()
    yq5 = jnp.dot(h.astype(jnp.bfloat16), w5_buf[...].astype(jnp.bfloat16),
                  preferred_element_type=jnp.float32)
    out_ref[...] = jnp.tanh(yq5 * vec_ref[10:11, 0:896] + vec_ref[9:10, 0:896])


def _quantize_int8_cols(w):
    """Symmetric per-output-column int8 quantization: w ~= q * s (s is (1, out))."""
    absmax = jnp.max(jnp.abs(w), axis=0, keepdims=True)
    s = jnp.where(absmax > 0, absmax / 127.0, 1.0)
    q = jnp.clip(jnp.round(w / s), -127, 127).astype(jnp.int8)
    return q, s


def init_params(key):
    """Deterministic params matching the PyTorch shapes / default nn.Linear init.

    Returns the packed operand set consumed by the kernel:
      w123 : (384, 512) bf16  -- w1, w2, w3 packed for one coalesced DMA
      w4q  : (512, 1024) int8 -- weight-only quantized (per-column scale in vec[8])
      w5q  : (1024, 896) int8 -- weight-only quantized (per-column scale in vec[10])
      vec  : (16, 1024) f32   -- gamma/beta (4 BN layers), s4, b5, s5
    b1..b4 are never materialized: they cancel exactly under training-mode BN.
    """
    keys = jax.random.split(key, 15)
    ws, gammas, betas = [], [], []
    b5 = None
    ki = 0
    for li in range(5):
        fan_in, fan_out = LAYER_DIMS[li], LAYER_DIMS[li + 1]
        pin, pout = PADDED_DIMS[li], PADDED_DIMS[li + 1]
        bound = 1.0 / math.sqrt(fan_in)
        w = jax.random.uniform(keys[ki], (fan_in, fan_out), jnp.float32,
                               minval=-bound, maxval=bound)
        ws.append(jnp.pad(w, ((0, pin - fan_in), (0, pout - fan_out))))
        if li == 4:
            b = jax.random.uniform(keys[ki + 1], (1, fan_out), jnp.float32,
                                   minval=-bound, maxval=bound)
            b5 = jnp.pad(b, ((0, 0), (0, pout - fan_out)))
        else:
            # BN gamma=1, beta=0 by default; perturb deterministically so the
            # affine transform is exercised.
            gb = 0.1 * jax.random.normal(keys[ki + 2], (2, fan_out), jnp.float32)
            gammas.append(1.0 + gb[0])
            betas.append(gb[1])
        ki += 3

    # Coalesced small-weight buffer (w1 | w2 | w3), bf16.
    w123 = jnp.zeros(W123_SHAPE, jnp.float32)
    w123 = w123.at[0:256, 0:512].set(ws[2])
    w123 = w123.at[256:384, 0:128].set(ws[0])
    w123 = w123.at[256:384, 128:384].set(ws[1])
    w123 = w123.astype(jnp.bfloat16)

    # Weight-only int8 quantization of the two large layers.
    w4q, s4 = _quantize_int8_cols(ws[3])
    w5q, s5 = _quantize_int8_cols(ws[4])

    # Packed per-feature vector table.
    vec = jnp.zeros((VEC_ROWS, 1024), jnp.float32)
    bn_dims = [128, 256, 512, 1024]
    for i in range(4):
        vec = vec.at[2 * i, :bn_dims[i]].set(gammas[i])
        vec = vec.at[2 * i + 1, :bn_dims[i]].set(betas[i])
    vec = vec.at[8, :].set(s4[0])
    vec = vec.at[9, :896].set(b5[0])
    vec = vec.at[10, :896].set(s5[0])

    return w123, w4q, w5q, vec


@jax.jit
def generator_forward(z, w123, w4q, w5q, vec):
    B = z.shape[0]
    # Training-mode BatchNorm needs batch statistics; B=1 gives var=0.
    assert B >= 2, "training-mode BatchNorm1d requires batch size >= 2"

    # Latent pad 100 -> 128 with zero columns (matches zero-padded K rows of w1);
    # fuses with the launch under jit.
    z_pad = jnp.pad(z.astype(jnp.float32),
                    ((0, 0), (0, PADDED_DIMS[0] - LATENT_DIM)))

    vmem = pl.BlockSpec(memory_space=pltpu.MemorySpace.VMEM)
    hbm = pl.BlockSpec(memory_space=pl.ANY)

    out_flat = pl.pallas_call(
        generator_kernel,
        out_shape=jax.ShapeDtypeStruct((B, PADDED_DIMS[-1]), jnp.float32),
        in_specs=[vmem, hbm, hbm, hbm, vmem],
        out_specs=vmem,
        scratch_shapes=[
            pltpu.VMEM(W123_SHAPE, jnp.bfloat16),
            pltpu.VMEM((PADDED_DIMS[3], PADDED_DIMS[4]), jnp.int8),
            pltpu.VMEM((PADDED_DIMS[4], PADDED_DIMS[5]), jnp.int8),
            pltpu.SemaphoreType.DMA((3,)),
        ],
        compiler_params=pltpu.CompilerParams(vmem_limit_bytes=16 << 20),
    )(z_pad, w123, w4q, w5q, vec)

    # Drop zero-padded output columns, then img.view(B, *img_shape) -> NCHW.
    return out_flat[:, :OUT_DIM].reshape(B, *IMG_SHAPE)


if __name__ == "__main__":
    key = jax.random.PRNGKey(0)
    k_params, k_z = jax.random.split(key)

    params = init_params(k_params)

    # B=64: small, but large enough that (a) BN batch statistics are well defined
    # and (b) the per-call weight DMA (~1.8 MiB) is amortized over many MXU rows.
    B = 64
    z = jax.random.normal(k_z, (B, LATENT_DIM), jnp.float32)

    img = jax.block_until_ready(generator_forward(z, *params))

    assert img.shape == (B, *IMG_SHAPE), img.shape
    assert img.dtype == jnp.float32
    assert bool(jnp.all(jnp.isfinite(img)))
    assert bool(jnp.all(jnp.abs(img) <= 1.0))  # tanh output range

    print("KERNEL_OK")
</pallas_src>

<mosaic_0001>
module attributes {stable_mosaic.version = 11 : i64} {
  func.func @generator_kernel(%arg0: memref<64x128xf32, #tpu.memory_space<vmem>>, %arg1: memref<384x512xbf16, #tpu.memory_space<any>>, %arg2: memref<512x1024xi8, #tpu.memory_space<any>>, %arg3: memref<1024x896xi8, #tpu.memory_space<any>>, %arg4: memref<16x1024xf32, #tpu.memory_space<vmem>>, %arg5: memref<64x896xf32, #tpu.memory_space<vmem>>, %arg6: memref<384x512xbf16, #tpu.memory_space<vmem>>, %arg7: memref<512x1024xi8, #tpu.memory_space<vmem>>, %arg8: memref<1024x896xi8, #tpu.memory_space<vmem>>, %arg9: memref<3x!tpu.dma_semaphore, #tpu.memory_space<semaphore_mem>>) attributes {dimension_semantics = [], scalar_prefetch = 0 : i64, scratch_operands = 4 : i64, tpu.core_type = #tpu.core_type<tc>} {
    %c0_i32 = arith.constant 0 : i32
    %0 = tpu.memref_slice %arg9[%c0_i32] : memref<3x!tpu.dma_semaphore, #tpu.memory_space<semaphore_mem>> -> memref<1x!tpu.dma_semaphore, #tpu.memory_space<semaphore_mem>>
    %1 = tpu.memref_squeeze %0 : memref<1x!tpu.dma_semaphore, #tpu.memory_space<semaphore_mem>> -> memref<!tpu.dma_semaphore, #tpu.memory_space<semaphore_mem>>
    tpu.enqueue_dma source(%arg1 : memref<384x512xbf16, #tpu.memory_space<any>>) target(%arg6 : memref<384x512xbf16, #tpu.memory_space<vmem>>) target_semaphore(%1 : memref<!tpu.dma_semaphore, #tpu.memory_space<semaphore_mem>>)
    %c1_i32 = arith.constant 1 : i32
    %2 = tpu.memref_slice %arg9[%c1_i32] : memref<3x!tpu.dma_semaphore, #tpu.memory_space<semaphore_mem>> -> memref<1x!tpu.dma_semaphore, #tpu.memory_space<semaphore_mem>>
    %3 = tpu.memref_squeeze %2 : memref<1x!tpu.dma_semaphore, #tpu.memory_space<semaphore_mem>> -> memref<!tpu.dma_semaphore, #tpu.memory_space<semaphore_mem>>
    tpu.enqueue_dma source(%arg2 : memref<512x1024xi8, #tpu.memory_space<any>>) target(%arg7 : memref<512x1024xi8, #tpu.memory_space<vmem>>) target_semaphore(%3 : memref<!tpu.dma_semaphore, #tpu.memory_space<semaphore_mem>>)
    %c2_i32 = arith.constant 2 : i32
    %4 = tpu.memref_slice %arg9[%c2_i32] : memref<3x!tpu.dma_semaphore, #tpu.memory_space<semaphore_mem>> -> memref<1x!tpu.dma_semaphore, #tpu.memory_space<semaphore_mem>>
    %5 = tpu.memref_squeeze %4 : memref<1x!tpu.dma_semaphore, #tpu.memory_space<semaphore_mem>> -> memref<!tpu.dma_semaphore, #tpu.memory_space<semaphore_mem>>
    tpu.enqueue_dma source(%arg3 : memref<1024x896xi8, #tpu.memory_space<any>>) target(%arg8 : memref<1024x896xi8, #tpu.memory_space<vmem>>) target_semaphore(%5 : memref<!tpu.dma_semaphore, #tpu.memory_space<semaphore_mem>>)
    %c0 = arith.constant 0 : index
    %c0_0 = arith.constant 0 : index
    %6 = vector.load %arg0[%c0, %c0_0] : memref<64x128xf32, #tpu.memory_space<vmem>>, vector<64x128xf32>
    %7 = arith.truncf %6 : vector<64x128xf32> to vector<64x128xbf16>
    %c0_i32_1 = arith.constant 0 : i32
    %8 = tpu.memref_slice %arg9[%c0_i32_1] : memref<3x!tpu.dma_semaphore, #tpu.memory_space<semaphore_mem>> -> memref<1x!tpu.dma_semaphore, #tpu.memory_space<semaphore_mem>>
    %9 = tpu.memref_squeeze %8 : memref<1x!tpu.dma_semaphore, #tpu.memory_space<semaphore_mem>> -> memref<!tpu.dma_semaphore, #tpu.memory_space<semaphore_mem>>
    tpu.wait_dma2 semaphore(%9 : memref<!tpu.dma_semaphore, #tpu.memory_space<semaphore_mem>>) src(%arg1 : memref<384x512xbf16, #tpu.memory_space<any>>) dst(%arg6 : memref<384x512xbf16, #tpu.memory_space<vmem>>)
    %c256 = arith.constant 256 : index
    %c0_2 = arith.constant 0 : index
    %10 = vector.load %arg6[%c256, %c0_2] : memref<384x512xbf16, #tpu.memory_space<vmem>>, vector<128x128xbf16>
    %c256_3 = arith.constant 256 : index
    %c128 = arith.constant 128 : index
    %11 = vector.load %arg6[%c256_3, %c128] : memref<384x512xbf16, #tpu.memory_space<vmem>>, vector<128x256xbf16>
    %c0_4 = arith.constant 0 : index
    %c0_5 = arith.constant 0 : index
    %12 = vector.load %arg6[%c0_4, %c0_5] : memref<384x512xbf16, #tpu.memory_space<vmem>>, vector<256x512xbf16>
    %cst = arith.constant dense<0.000000e+00> : vector<64x128xf32>
    %13 = tpu.matmul %7, %10, %cst {dimension_numbers = #tpu.dot_dimension_numbers<[1], [0], [0], [1], [0, 0, 1, 1], [], []>} : vector<64x128xbf16>, vector<128x128xbf16>, vector<64x128xf32> -> vector<64x128xf32>
    %c0_6 = arith.constant 0 : index
    %c0_7 = arith.constant 0 : index
    %14 = vector.load %arg4[%c0_6, %c0_7] : memref<16x1024xf32, #tpu.memory_space<vmem>>, vector<1x128xf32>
    %c1 = arith.constant 1 : index
    %c0_8 = arith.constant 0 : index
    %15 = vector.load %arg4[%c1, %c0_8] : memref<16x1024xf32, #tpu.memory_space<vmem>>, vector<1x128xf32>
    %cst_9 = arith.constant dense<0.000000e+00> : vector<128xf32>
    %16 = vector.multi_reduction <add>, %13, %cst_9 [0] : vector<64x128xf32> to vector<128xf32>
    %17 = vector.shape_cast %16 : vector<128xf32> to vector<1x128xf32>
    %cst_10 = arith.constant 6.400000e+01 : f32
    %18 = vector.broadcast %cst_10 : f32 to vector<1x128xf32>
    %19 = arith.divf %17, %18 : vector<1x128xf32>
    %20 = vector.broadcast %19 : vector<1x128xf32> to vector<64x128xf32>
    %21 = arith.subf %13, %20 : vector<64x128xf32>
    %22 = arith.mulf %21, %21 : vector<64x128xf32>
    %cst_11 = arith.constant dense<0.000000e+00> : vector<128xf32>
    %23 = vector.multi_reduction <add>, %22, %cst_11 [0] : vector<64x128xf32> to vector<128xf32>
    %24 = vector.shape_cast %23 : vector<128xf32> to vector<1x128xf32>
    %cst_12 = arith.constant 6.400000e+01 : f32
    %25 = vector.broadcast %cst_12 : f32 to vector<1x128xf32>
    %26 = arith.divf %24, %25 : vector<1x128xf32>
    %cst_13 = arith.constant 9.99999974E-6 : f32
    %27 = vector.broadcast %cst_13 : f32 to vector<1x128xf32>
    %28 = arith.addf %26, %27 : vector<1x128xf32>
    %29 = math.rsqrt %28 : vector<1x128xf32>
    %30 = arith.mulf %14, %29 : vector<1x128xf32>
    %31 = vector.broadcast %30 : vector<1x128xf32> to vector<64x128xf32>
    %32 = arith.mulf %21, %31 : vector<64x128xf32>
    %33 = vector.broadcast %15 : vector<1x128xf32> to vector<64x128xf32>
    %34 = arith.addf %32, %33 : vector<64x128xf32>
    %cst_14 = arith.constant 2.000000e-01 : f32
    %35 = vector.broadcast %cst_14 : f32 to vector<64x128xf32>
    %36 = arith.mulf %35, %34 : vector<64x128xf32>
    %37 = arith.maximumf %34, %36 : vector<64x128xf32>
    %38 = arith.truncf %37 : vector<64x128xf32> to vector<64x128xbf16>
    %cst_15 = arith.constant dense<0.000000e+00> : vector<64x256xf32>
    %39 = tpu.matmul %38, %11, %cst_15 {dimension_numbers = #tpu.dot_dimension_numbers<[1], [0], [0], [1], [0, 0, 1, 1], [], []>} : vector<64x128xbf16>, vector<128x256xbf16>, vector<64x256xf32> -> vector<64x256xf32>
    %c2 = arith.constant 2 : index
    %c0_16 = arith.constant 0 : index
    %40 = vector.load %arg4[%c2, %c0_16] : memref<16x1024xf32, #tpu.memory_space<vmem>>, vector<1x256xf32>
    %c3 = arith.constant 3 : index
    %c0_17 = arith.constant 0 : index
    %41 = vector.load %arg4[%c3, %c0_17] : memref<16x1024xf32, #tpu.memory_space<vmem>>, vector<1x256xf32>
    %cst_18 = arith.constant dense<0.000000e+00> : vector<256xf32>
    %42 = vector.multi_reduction <add>, %39, %cst_18 [0] : vector<64x256xf32> to vector<256xf32>
    %43 = vector.shape_cast %42 : vector<256xf32> to vector<1x256xf32>
    %cst_19 = arith.constant 6.400000e+01 : f32
    %44 = vector.broadcast %cst_19 : f32 to vector<1x256xf32>
    %45 = arith.divf %43, %44 : vector<1x256xf32>
    %46 = vector.broadcast %45 : vector<1x256xf32> to vector<64x256xf32>
    %47 = arith.subf %39, %46 : vector<64x256xf32>
    %48 = arith.mulf %47, %47 : vector<64x256xf32>
    %cst_20 = arith.constant dense<0.000000e+00> : vector<256xf32>
    %49 = vector.multi_reduction <add>, %48, %cst_20 [0] : vector<64x256xf32> to vector<256xf32>
    %50 = vector.shape_cast %49 : vector<256xf32> to vector<1x256xf32>
    %cst_21 = arith.constant 6.400000e+01 : f32
    %51 = vector.broadcast %cst_21 : f32 to vector<1x256xf32>
    %52 = arith.divf %50, %51 : vector<1x256xf32>
    %cst_22 = arith.constant 9.99999974E-6 : f32
    %53 = vector.broadcast %cst_22 : f32 to vector<1x256xf32>
    %54 = arith.addf %52, %53 : vector<1x256xf32>
    %55 = math.rsqrt %54 : vector<1x256xf32>
    %56 = arith.mulf %40, %55 : vector<1x256xf32>
    %57 = vector.broadcast %56 : vector<1x256xf32> to vector<64x256xf32>
    %58 = arith.mulf %47, %57 : vector<64x256xf32>
    %59 = vector.broadcast %41 : vector<1x256xf32> to vector<64x256xf32>
    %60 = arith.addf %58, %59 : vector<64x256xf32>
    %cst_23 = arith.constant 2.000000e-01 : f32
    %61 = vector.broadcast %cst_23 : f32 to vector<64x256xf32>
    %62 = arith.mulf %61, %60 : vector<64x256xf32>
    %63 = arith.maximumf %60, %62 : vector<64x256xf32>
    %64 = arith.truncf %63 : vector<64x256xf32> to vector<64x256xbf16>
    %cst_24 = arith.constant dense<0.000000e+00> : vector<64x512xf32>
    %65 = tpu.matmul %64, %12, %cst_24 {dimension_numbers = #tpu.dot_dimension_numbers<[1], [0], [0], [1], [0, 0, 1, 1], [], []>} : vector<64x256xbf16>, vector<256x512xbf16>, vector<64x512xf32> -> vector<64x512xf32>
    %c4 = arith.constant 4 : index
    %c0_25 = arith.constant 0 : index
    %66 = vector.load %arg4[%c4, %c0_25] : memref<16x1024xf32, #tpu.memory_space<vmem>>, vector<1x512xf32>
    %c5 = arith.constant 5 : index
    %c0_26 = arith.constant 0 : index
    %67 = vector.load %arg4[%c5, %c0_26] : memref<16x1024xf32, #tpu.memory_space<vmem>>, vector<1x512xf32>
    %cst_27 = arith.constant dense<0.000000e+00> : vector<512xf32>
    %68 = vector.multi_reduction <add>, %65, %cst_27 [0] : vector<64x512xf32> to vector<512xf32>
    %69 = vector.shape_cast %68 : vector<512xf32> to vector<1x512xf32>
    %cst_28 = arith.constant 6.400000e+01 : f32
    %70 = vector.broadcast %cst_28 : f32 to vector<1x512xf32>
    %71 = arith.divf %69, %70 : vector<1x512xf32>
    %72 = vector.broadcast %71 : vector<1x512xf32> to vector<64x512xf32>
    %73 = arith.subf %65, %72 : vector<64x512xf32>
    %74 = arith.mulf %73, %73 : vector<64x512xf32>
    %cst_29 = arith.constant dense<0.000000e+00> : vector<512xf32>
    %75 = vector.multi_reduction <add>, %74, %cst_29 [0] : vector<64x512xf32> to vector<512xf32>
    %76 = vector.shape_cast %75 : vector<512xf32> to vector<1x512xf32>
    %cst_30 = arith.constant 6.400000e+01 : f32
    %77 = vector.broadcast %cst_30 : f32 to vector<1x512xf32>
    %78 = arith.divf %76, %77 : vector<1x512xf32>
    %cst_31 = arith.constant 9.99999974E-6 : f32
    %79 = vector.broadcast %cst_31 : f32 to vector<1x512xf32>
    %80 = arith.addf %78, %79 : vector<1x512xf32>
    %81 = math.rsqrt %80 : vector<1x512xf32>
    %82 = arith.mulf %66, %81 : vector<1x512xf32>
    %83 = vector.broadcast %82 : vector<1x512xf32> to vector<64x512xf32>
    %84 = arith.mulf %73, %83 : vector<64x512xf32>
    %85 = vector.broadcast %67 : vector<1x512xf32> to vector<64x512xf32>
    %86 = arith.addf %84, %85 : vector<64x512xf32>
    %cst_32 = arith.constant 2.000000e-01 : f32
    %87 = vector.broadcast %cst_32 : f32 to vector<64x512xf32>
    %88 = arith.mulf %87, %86 : vector<64x512xf32>
    %89 = arith.maximumf %86, %88 : vector<64x512xf32>
    %c1_i32_33 = arith.constant 1 : i32
    %90 = tpu.memref_slice %arg9[%c1_i32_33] : memref<3x!tpu.dma_semaphore, #tpu.memory_space<semaphore_mem>> -> memref<1x!tpu.dma_semaphore, #tpu.memory_space<semaphore_mem>>
    %91 = tpu.memref_squeeze %90 : memref<1x!tpu.dma_semaphore, #tpu.memory_space<semaphore_mem>> -> memref<!tpu.dma_semaphore, #tpu.memory_space<semaphore_mem>>
    tpu.wait_dma2 semaphore(%91 : memref<!tpu.dma_semaphore, #tpu.memory_space<semaphore_mem>>) src(%arg2 : memref<512x1024xi8, #tpu.memory_space<any>>) dst(%arg7 : memref<512x1024xi8, #tpu.memory_space<vmem>>)
    %92 = arith.truncf %89 : vector<64x512xf32> to vector<64x512xbf16>
    %c0_34 = arith.constant 0 : index
    %c0_35 = arith.constant 0 : index
    %93 = vector.load %arg7[%c0_34, %c0_35] : memref<512x1024xi8, #tpu.memory_space<vmem>>, vector<512x1024xi8>
    %94 = arith.sitofp %93 : vector<512x1024xi8> to vector<512x1024xbf16>
    %cst_36 = arith.constant dense<0.000000e+00> : vector<64x1024xf32>
    %95 = tpu.matmul %92, %94, %cst_36 {dimension_numbers = #tpu.dot_dimension_numbers<[1], [0], [0], [1], [0, 0, 1, 1], [], []>} : vector<64x512xbf16>, vector<512x1024xbf16>, vector<64x1024xf32> -> vector<64x1024xf32>
    %c6 = arith.constant 6 : index
    %c0_37 = arith.constant 0 : index
    %96 = vector.load %arg4[%c6, %c0_37] : memref<16x1024xf32, #tpu.memory_space<vmem>>, vector<1x1024xf32>
    %c7 = arith.constant 7 : index
    %c0_38 = arith.constant 0 : index
    %97 = vector.load %arg4[%c7, %c0_38] : memref<16x1024xf32, #tpu.memory_space<vmem>>, vector<1x1024xf32>
    %c8 = arith.constant 8 : index
    %c0_39 = arith.constant 0 : index
    %98 = vector.load %arg4[%c8, %c0_39] : memref<16x1024xf32, #tpu.memory_space<vmem>>, vector<1x1024xf32>
    %cst_40 = arith.constant dense<0.000000e+00> : vector<1024xf32>
    %99 = vector.multi_reduction <add>, %95, %cst_40 [0] : vector<64x1024xf32> to vector<1024xf32>
    %100 = vector.shape_cast %99 : vector<1024xf32> to vector<1x1024xf32>
    %cst_41 = arith.constant 6.400000e+01 : f32
    %101 = vector.broadcast %cst_41 : f32 to vector<1x1024xf32>
    %102 = arith.divf %100, %101 : vector<1x1024xf32>
    %103 = vector.broadcast %102 : vector<1x1024xf32> to vector<64x1024xf32>
    %104 = arith.subf %95, %103 : vector<64x1024xf32>
    %105 = arith.mulf %104, %104 : vector<64x1024xf32>
    %cst_42 = arith.constant dense<0.000000e+00> : vector<1024xf32>
    %106 = vector.multi_reduction <add>, %105, %cst_42 [0] : vector<64x1024xf32> to vector<1024xf32>
    %107 = vector.shape_cast %106 : vector<1024xf32> to vector<1x1024xf32>
    %cst_43 = arith.constant 6.400000e+01 : f32
    %108 = vector.broadcast %cst_43 : f32 to vector<1x1024xf32>
    %109 = arith.divf %107, %108 : vector<1x1024xf32>
    %110 = arith.mulf %96, %98 : vector<1x1024xf32>
    %111 = arith.mulf %98, %98 : vector<1x1024xf32>
    %112 = arith.mulf %109, %111 : vector<1x1024xf32>
    %cst_44 = arith.constant 9.99999974E-6 : f32
    %113 = vector.broadcast %cst_44 : f32 to vector<1x1024xf32>
    %114 = arith.addf %112, %113 : vector<1x1024xf32>
    %115 = math.rsqrt %114 : vector<1x1024xf32>
    %116 = arith.mulf %110, %115 : vector<1x1024xf32>
    %117 = vector.broadcast %116 : vector<1x1024xf32> to vector<64x1024xf32>
    %118 = arith.mulf %104, %117 : vector<64x1024xf32>
    %119 = vector.broadcast %97 : vector<1x1024xf32> to vector<64x1024xf32>
    %120 = arith.addf %118, %119 : vector<64x1024xf32>
    %cst_45 = arith.constant 2.000000e-01 : f32
    %121 = vector.broadcast %cst_45 : f32 to vector<64x1024xf32>
    %122 = arith.mulf %121, %120 : vector<64x1024xf32>
    %123 = arith.maximumf %120, %122 : vector<64x1024xf32>
    %c2_i32_46 = arith.constant 2 : i32
    %124 = tpu.memref_slice %arg9[%c2_i32_46] : memref<3x!tpu.dma_semaphore, #tpu.memory_space<semaphore_mem>> -> memref<1x!tpu.dma_semaphore, #tpu.memory_space<semaphore_mem>>
    %125 = tpu.memref_squeeze %124 : memref<1x!tpu.dma_semaphore, #tpu.memory_space<semaphore_mem>> -> memref<!tpu.dma_semaphore, #tpu.memory_space<semaphore_mem>>
    tpu.wait_dma2 semaphore(%125 : memref<!tpu.dma_semaphore, #tpu.memory_space<semaphore_mem>>) src(%arg3 : memref<1024x896xi8, #tpu.memory_space<any>>) dst(%arg8 : memref<1024x896xi8, #tpu.memory_space<vmem>>)
    %126 = arith.truncf %123 : vector<64x1024xf32> to vector<64x1024xbf16>
    %c0_47 = arith.constant 0 : index
    %c0_48 = arith.constant 0 : index
    %127 = vector.load %arg8[%c0_47, %c0_48] : memref<1024x896xi8, #tpu.memory_space<vmem>>, vector<1024x896xi8>
    %128 = arith.sitofp %127 : vector<1024x896xi8> to vector<1024x896xbf16>
    %cst_49 = arith.constant dense<0.000000e+00> : vector<64x896xf32>
    %129 = tpu.matmul %126, %128, %cst_49 {dimension_numbers = #tpu.dot_dimension_numbers<[1], [0], [0], [1], [0, 0, 1, 1], [], []>} : vector<64x1024xbf16>, vector<1024x896xbf16>, vector<64x896xf32> -> vector<64x896xf32>
    %c10 = arith.constant 10 : index
    %c0_50 = arith.constant 0 : index
    %130 = vector.load %arg4[%c10, %c0_50] : memref<16x1024xf32, #tpu.memory_space<vmem>>, vector<1x896xf32>
    %131 = vector.broadcast %130 : vector<1x896xf32> to vector<64x896xf32>
    %132 = arith.mulf %129, %131 : vector<64x896xf32>
    %c9 = arith.constant 9 : index
    %c0_51 = arith.constant 0 : index
    %133 = vector.load %arg4[%c9, %c0_51] : memref<16x1024xf32, #tpu.memory_space<vmem>>, vector<1x896xf32>
    %134 = vector.broadcast %133 : vector<1x896xf32> to vector<64x896xf32>
    %135 = arith.addf %132, %134 : vector<64x896xf32>
    %136 = math.tanh %135 : vector<64x896xf32>
    %c0_52 = arith.constant 0 : index
    %c0_53 = arith.constant 0 : index
    %137 = vector.load %arg5[%c0_52, %c0_53] : memref<64x896xf32, #tpu.memory_space<vmem>>, vector<64x896xf32>
    tpu.vector_store %arg5[%c0_52, %c0_53], %136 {strides = array<i32>} : memref<64x896xf32, #tpu.memory_space<vmem>>, vector<64x896xf32>,
    return
  }
}

</mosaic_0001>

<llo_original>
// kernel: generator_forward.1
$region0: #{generator_forward.1}
  #allocation0 [shape = 'u32[]', space=smem, size = 0x4, offset = 0x4, fixed_abs, tag = 'smem constant byte address 0x4 - core index']
  #allocation1 [shape = 'u32[144,128]{1,0:T(1,128)}', space=vmem, size = 0x12000, scoped, tag = 'internal scratch']
  #allocation2 [shape = 'bf16[384,512]{1,0:T(16,128)(2,1)}', space=vmem, size = 0x60000, scoped, tag = 'scratch operand']
  #allocation3 [shape = 's8[512,1024]{1,0:T(32,128)(4,1)}', space=vmem, size = 0x80000, scoped, tag = 'scratch operand']
  #allocation4 [shape = 's8[1024,896]{1,0:T(32,128)(4,1)}', space=vmem, size = 0xe0000, scoped, tag = 'scratch operand']
  #allocation5 [shape = 's32[3]{0}', space=sflag, size = 0xc, scoped, tag = 'scratch operand']
  #allocation6 [shape = 's32[]', space=sflag, size = 0x4, offset = 0, fixed_abs, tag = 'sflag constant byte address 0x0 - dummy sync flag']
  #allocation8 [shape = 's32[]', space=sflag, size = 0x4, offset = 0, fixed_abs, tag = 'sflag constant byte address 0x0 - dummy sync flag']
  #allocation9 [shape = 's32[]', space=sflag, size = 0x4, offset = 0, fixed_abs, tag = 'sflag constant byte address 0x0 - dummy sync flag']
  #allocation10 [shape = 'u32[]', space=smem, size = 0x4, offset = 0x44, fixed_abs, tag = 'smem constant byte address 0x44 - assertion arg 0']
  #allocation11 [shape = 'u32[]', space=smem, size = 0x4, offset = 0x48, fixed_abs, tag = 'smem constant byte address 0x48 - assertion arg 1']
  #allocation12 [shape = 's32[]', space=sflag, size = 0x4, offset = 0, fixed_abs, tag = 'sflag constant byte address 0x0 - dummy sync flag']
  #allocation13 [shape = 's32[]', space=sflag, size = 0x4, offset = 0, fixed_abs, tag = 'sflag constant byte address 0x0 - dummy sync flag']
  %s0 = inlined_call_operand.vmem [shape: f32[64,128], index: 0, kind: input, shape index: {}]
  %s1 = inlined_call_operand.hbm [shape: bf16[384,512], index: 1, kind: input, shape index: {}]
  %s2 = inlined_call_operand.hbm [shape: s8[512,1024], index: 2, kind: input, shape index: {}]
  %s3 = inlined_call_operand.hbm [shape: s8[1024,896], index: 3, kind: input, shape index: {}]
  %s4 = inlined_call_operand.vmem [shape: f32[16,1024], index: 4, kind: input, shape index: {}]
  %s5 = inlined_call_operand.vmem [shape: f32[64,896], index: 5, kind: output, shape index: {}]
  %s6 = sld [smem:[#allocation0]]
  $region26: #{generator_forward.1} parent=0
    _
  %s8 = ssub.s32 1, %s6
  %s9 = scalar_select 0, %s8, %s6
  $region1: #{generator_forward.1} parent=0
    #allocation7 [shape = 'u32[9]{0}', space=smem, size = 0x24, scoped, tag = 'DMA stride descriptor']
    // Predicated region
    $region2: #{generator_forward.1} parent=1 // pred_check
      _
    $region3: #{generator_forward.1} parent=1 // pred_check_branch
      %11 = sbr.rel (0) target = $region5
    $region4: #{generator_forward.1} parent=1 // pred_region
      _
    $region5: #{generator_forward.1} parent=1 // pred_fallthru
      _
    // Predicated region
    $region6: #{generator_forward.1} parent=1 // pred_check
      _
    $region7: #{generator_forward.1} parent=1 // pred_check_branch
      %13 = sbr.rel (0) target = $region9
    $region8: #{generator_forward.1} parent=1 // pred_region
      _
    $region9: #{generator_forward.1} parent=1 // pred_fallthru
      _
    %s16 = sshll.u32 1, 14
    %s17 = sxor.u32 4294967295, %s16
    %s19 = sld [smem:[#allocation0]]
    %s20 = sadd.s32 2, %s19
    %s22 = sshll.u32 7, 26
    %s23 = sxor.u32 4294967295, %s22
    %s24 = sand.u32 0, %s23
    %s25 = sshll.u32 %s20, 26
    %s26 = sor.u32 %s24, %s25
    %s27 = sshll.u32 [#allocation2], 4
    %s28 = int_to_ptr.vmem [resolvable:$true] %s27
    %31 = sst [smem:[#allocation7]] 512
    %s32 = scalar_lea.smem [#allocation7], 1
    %33 = sst [smem:[%s32]] 512
    %s34 = scalar_lea.smem [#allocation7], 2
    %35 = sst [smem:[%s34]] 4
    %s36 = scalar_lea.smem [#allocation7], 3
    %37 = sst [smem:[%s36]] 64
    %s38 = scalar_lea.smem [#allocation7], 4
    %39 = sst [smem:[%s38]] 128
    %s40 = scalar_lea.smem [#allocation7], 5
    %41 = sst [smem:[%s40]] 2
    %s42 = scalar_lea.smem [#allocation7], 6
    %43 = sst [smem:[%s42]] 256
    %s44 = scalar_lea.smem [#allocation7], 7
    %45 = sst [smem:[%s44]] 64
    %s46 = scalar_lea.smem [#allocation7], 8
    %47 = sst [smem:[%s46]] 4
    %49 = dma.general %s1, 12288, %s28, [#allocation5], [#allocation6], [#allocation7], %s26, 0
    %s50 = scalar_lea.sflag [#allocation5], 1
    // Predicated region
    $region10: #{generator_forward.1} parent=1 // pred_check
      _
    $region11: #{generator_forward.1} parent=1 // pred_check_branch
      %52 = sbr.rel target = $region13
    $region12: #{generator_forward.1} parent=1 // pred_region
      %53 = sst [smem:[#allocation10]] [#allocation9]
      %54 = sst [smem:[#allocation11]] [#allocation8]
    $region13: #{generator_forward.1} parent=1 // pred_fallthru
      _
    %56 = shalt.err (0)
    %s58 = sshll.u32 [#allocation3], 4
    %s59 = int_to_ptr.vmem [resolvable:$true] %s58
    %61 = dma.hbm_to_vmem [thread:$0]  %s2, 16384, %s59, %s50
    %s62 = scalar_lea.sflag [#allocation5], 2
    // Predicated region
    $region14: #{generator_forward.1} parent=1 // pred_check
      _
    $region15: #{generator_forward.1} parent=1 // pred_check_branch
      %64 = sbr.rel target = $region17
    $region16: #{generator_forward.1} parent=1 // pred_region
      %65 = sst [smem:[#allocation10]] [#allocation13]
      %66 = sst [smem:[#allocation11]] [#allocation12]
    $region17: #{generator_forward.1} parent=1 // pred_fallthru
      _
    %68 = shalt.err (0)
    %s70 = sshll.u32 [#allocation4], 4
    %s71 = int_to_ptr.vmem [resolvable:$true] %s70
    %73 = dma.hbm_to_vmem [thread:$0]  %s3, 28672, %s71, %s62
    %v74 = vld [vmem:[%s0] sm:$0xff]
    %v75 = vld [vmem:[%s0 + $0x8] sm:$0xff]
    %v76 = vld [vmem:[%s0 + $0x10] sm:$0xff]
    %v77 = vld [vmem:[%s0 + $0x18] sm:$0xff]
    %v78 = vld [vmem:[%s0 + $0x20] sm:$0xff]
    %v79 = vld [vmem:[%s0 + $0x28] sm:$0xff]
    %v80 = vld [vmem:[%s0 + $0x30] sm:$0xff]
    %v81 = vld [vmem:[%s0 + $0x38] sm:$0xff]
    %v82 = vpack.c.bf16 %v75, %v74
    %v83 = vpack.c.bf16 %v77, %v76
    %v84 = vpack.c.bf16 %v79, %v78
    %v85 = vpack.c.bf16 %v81, %v80
    %s86 = smul.u32 4, 48
    %s87 = smul.u32 %s86, 4
    %s88 = sshll.u32 %s87, 4
    %89 = dma.done [#allocation5], %s88
    %v90 = vld [vmem:[#allocation2 + $0x200] sm:$0xff]
    %v91 = vld [vmem:[#allocation2 + $0x220] sm:$0xff]
    %v92 = vld [vmem:[#allocation2 + $0x240] sm:$0xff]
    %v93 = vld [vmem:[#allocation2 + $0x260] sm:$0xff]
    %v94 = vld [vmem:[#allocation2 + $0x280] sm:$0xff]
    %v95 = vld [vmem:[#allocation2 + $0x2a0] sm:$0xff]
    %v96 = vld [vmem:[#allocation2 + $0x2c0] sm:$0xff]
    %v97 = vld [vmem:[#allocation2 + $0x2e0] sm:$0xff]
    %v98 = vld [vmem:[#allocation2 + $0x208] sm:$0xff]
    %v99 = vld [vmem:[#allocation2 + $0x210] sm:$0xff]
    %v100 = vld [vmem:[#allocation2 + $0x228] sm:$0xff]
    %v101 = vld [vmem:[#allocation2 + $0x230] sm:$0xff]
    %v102 = vld [vmem:[#allocation2 + $0x248] sm:$0xff]
    %v103 = vld [vmem:[#allocation2 + $0x250] sm:$0xff]
    %v104 = vld [vmem:[#allocation2 + $0x268] sm:$0xff]
    %v105 = vld [vmem:[#allocation2 + $0x270] sm:$0xff]
    %v106 = vld [vmem:[#allocation2 + $0x288] sm:$0xff]
    %v107 = vld [vmem:[#allocation2 + $0x290] sm:$0xff]
    %v108 = vld [vmem:[#allocation2 + $0x2a8] sm:$0xff]
    %v109 = vld [vmem:[#allocation2 + $0x2b0] sm:$0xff]
    %v110 = vld [vmem:[#allocation2 + $0x2c8] sm:$0xff]
    %v111 = vld [vmem:[#allocation2 + $0x2d0] sm:$0xff]
    %v112 = vld [vmem:[#allocation2 + $0x2e8] sm:$0xff]
    %v113 = vld [vmem:[#allocation2 + $0x2f0] sm:$0xff]
    %v114 = vld [vmem:[#allocation2] sm:$0xff]
    %v115 = vld [vmem:[#allocation2 + $0x8] sm:$0xff]
    %v116 = vld [vmem:[#allocation2 + $0x10] sm:$0xff]
    %v117 = vld [vmem:[#allocation2 + $0x18] sm:$0xff]
    %v118 = vld [vmem:[#allocation2 + $0x20] sm:$0xff]
    %v119 = vld [vmem:[#allocation2 + $0x28] sm:$0xff]
    %v120 = vld [vmem:[#allocation2 + $0x30] sm:$0xff]
    %v121 = vld [vmem:[#allocation2 + $0x38] sm:$0xff]
    %v122 = vld [vmem:[#allocation2 + $0x40] sm:$0xff]
    %v123 = vld [vmem:[#allocation2 + $0x48] sm:$0xff]
    %v124 = vld [vmem:[#allocation2 + $0x50] sm:$0xff]
    %v125 = vld [vmem:[#allocation2 + $0x58] sm:$0xff]
    %v126 = vld [vmem:[#allocation2 + $0x60] sm:$0xff]
    %v127 = vld [vmem:[#allocation2 + $0x68] sm:$0xff]
    %v128 = vld [vmem:[#allocation2 + $0x70] sm:$0xff]
    %v129 = vld [vmem:[#allocation2 + $0x78] sm:$0xff]
    %v130 = vld [vmem:[#allocation2 + $0x80] sm:$0xff]
    %v131 = vld [vmem:[#allocation2 + $0x88] sm:$0xff]
    %v132 = vld [vmem:[#allocation2 + $0x90] sm:$0xff]
    %v133 = vld [vmem:[#allocation2 + $0x98] sm:$0xff]
    %v134 = vld [vmem:[#allocation2 + $0xa0] sm:$0xff]
    %v135 = vld [vmem:[#allocation2 + $0xa8] sm:$0xff]
    %v136 = vld [vmem:[#allocation2 + $0xb0] sm:$0xff]
    %v137 = vld [vmem:[#allocation2 + $0xb8] sm:$0xff]
    %v138 = vld [vmem:[#allocation2 + $0xc0] sm:$0xff]
    %v139 = vld [vmem:[#allocation2 + $0xc8] sm:$0xff]
    %v140 = vld [vmem:[#allocation2 + $0xd0] sm:$0xff]
    %v141 = vld [vmem:[#allocation2 + $0xd8] sm:$0xff]
    %v142 = vld [vmem:[#allocation2 + $0xe0] sm:$0xff]
    %v143 = vld [vmem:[#allocation2 + $0xe8] sm:$0xff]
    %v144 = vld [vmem:[#allocation2 + $0xf0] sm:$0xff]
    %v145 = vld [vmem:[#allocation2 + $0xf8] sm:$0xff]
    %v146 = vld [vmem:[#allocation2 + $0x100] sm:$0xff]
    %v147 = vld [vmem:[#allocation2 + $0x108] sm:$0xff]
    %v148 = vld [vmem:[#allocation2 + $0x110] sm:$0xff]
    %v149 = vld [vmem:[#allocation2 + $0x118] sm:$0xff]
    %v150 = vld [vmem:[#allocation2 + $0x120] sm:$0xff]
    %v151 = vld [vmem:[#allocation2 + $0x128] sm:$0xff]
    %v152 = vld [vmem:[#allocation2 + $0x130] sm:$0xff]
    %v153 = vld [vmem:[#allocation2 + $0x138] sm:$0xff]
    %v154 = vld [vmem:[#allocation2 + $0x140] sm:$0xff]
    %v155 = vld [vmem:[#allocation2 + $0x148] sm:$0xff]
    %v156 = vld [vmem:[#allocation2 + $0x150] sm:$0xff]
    %v157 = vld [vmem:[#allocation2 + $0x158] sm:$0xff]
    %v158 = vld [vmem:[#allocation2 + $0x160] sm:$0xff]
    %v159 = vld [vmem:[#allocation2 + $0x168] sm:$0xff]
    %v160 = vld [vmem:[#allocation2 + $0x170] sm:$0xff]
    %v161 = vld [vmem:[#allocation2 + $0x178] sm:$0xff]
    %v162 = vld [vmem:[#allocation2 + $0x180] sm:$0xff]
    %v163 = vld [vmem:[#allocation2 + $0x188] sm:$0xff]
    %v164 = vld [vmem:[#allocation2 + $0x190] sm:$0xff]
    %v165 = vld [vmem:[#allocation2 + $0x198] sm:$0xff]
    %v166 = vld [vmem:[#allocation2 + $0x1a0] sm:$0xff]
    %v167 = vld [vmem:[#allocation2 + $0x1a8] sm:$0xff]
    %v168 = vld [vmem:[#allocation2 + $0x1b0] sm:$0xff]
    %v169 = vld [vmem:[#allocation2 + $0x1b8] sm:$0xff]
    %v170 = vld [vmem:[#allocation2 + $0x1c0] sm:$0xff]
    %v171 = vld [vmem:[#allocation2 + $0x1c8] sm:$0xff]
    %v172 = vld [vmem:[#allocation2 + $0x1d0] sm:$0xff]
    %v173 = vld [vmem:[#allocation2 + $0x1d8] sm:$0xff]
    %v174 = vld [vmem:[#allocation2 + $0x1e0] sm:$0xff]
    %v175 = vld [vmem:[#allocation2 + $0x1e8] sm:$0xff]
    %v176 = vld [vmem:[#allocation2 + $0x1f0] sm:$0xff]
    %v177 = vld [vmem:[#allocation2 + $0x1f8] sm:$0xff]
    %178 = vmatprep.subr.bf16.mxu0 0
    %179 = vmatpush1.bf16.msra.mxu0 %v90
    %180 = vmatprep.subr.bf16.mxu0 0
    %181 = vmatpush1.bf16.msra.mxu0 %v91
    %182 = vmatprep.subr.bf16.mxu0 0
    %183 = vmatpush1.bf16.msra.mxu0 %v92
    %184 = vmatprep.subr.bf16.mxu0 0
    %185 = vmatpush1.bf16.msra.mxu0 %v93
    %186 = vmatprep.subr.bf16.mxu0 0
    %187 = vmatpush1.bf16.msra.mxu0 %v94
    %188 = vmatprep.subr.bf16.mxu0 0
    %189 = vmatpush1.bf16.msra.mxu0 %v95
    %190 = vmatprep.subr.bf16.mxu0 0
    %191 = vmatpush1.bf16.msra.mxu0 %v96
    %192 = vmatprep.subr.bf16.mxu0 0
    %193 = vmatpush1.bf16.msra.mxu0 %v97
    %194 = vmatprep.subr.bf16.mxu0 0
    %195 = vmatpush1.bf16.msra.mxu0 0
    %196 = vmatprep.subr.bf16.mxu0 0
    %197 = vmatpush1.bf16.msra.mxu0 0
    %198 = vmatprep.subr.bf16.mxu0 0
    %199 = vmatpush1.bf16.msra.mxu0 0
    %200 = vmatprep.subr.bf16.mxu0 0
    %201 = vmatpush1.bf16.msra.mxu0 0
    %202 = vmatprep.subr.bf16.mxu0 0
    %203 = vmatpush1.bf16.msra.mxu0 0
    %204 = vmatprep.subr.bf16.mxu0 0
    %205 = vmatpush1.bf16.msra.mxu0 0
    %206 = vmatprep.subr.bf16.mxu0 0
    %207 = vmatpush1.bf16.msra.mxu0 0
    %208 = vmatprep.subr.bf16.mxu0 0
    %209 = vmatpush1.bf16.msra.mxu0 0
    %210 = vmatprep.mubr.bf16.mxu0 0
    %211 = vmatmul.mubr.bf16.gmra.mrb[0].mxu0 %v82
    %v212 = vpop.f32.mrb[0].mxu0
    %v213 = vadd.f32 0.0, %v212
    %v214 = vpop.f32.mrb[0].mxu0
    %v215 = vpop.f32.mrb[0].mxu0
    %v216 = vadd.f32 0.0, %v215
    %v217 = vpop.f32.mrb[0].mxu0
    %218 = vmatprep.mubr.bf16.mxu0 0
    %219 = vmatmul.mubr.bf16.gmra.mrb[0].mxu0 %v83
    %v220 = vpop.f32.mrb[0].mxu0
    %v221 = vadd.f32 0.0, %v220
    %v222 = vpop.f32.mrb[0].mxu0
    %v223 = vpop.f32.mrb[0].mxu0
    %v224 = vadd.f32 0.0, %v223
    %v225 = vpop.f32.mrb[0].mxu0
    %226 = vmatprep.mubr.bf16.mxu0 0
    %227 = vmatmul.mubr.bf16.gmra.mrb[0].mxu0 %v84
    %v228 = vpop.f32.mrb[0].mxu0
    %v229 = vadd.f32 0.0, %v228
    %v230 = vpop.f32.mrb[0].mxu0
    %v231 = vpop.f32.mrb[0].mxu0
    %v232 = vadd.f32 0.0, %v231
    %v233 = vpop.f32.mrb[0].mxu0
    %234 = vmatprep.mubr.bf16.mxu0 0
    %235 = vmatmul.mubr.bf16.gmra.mrb[0].mxu0 %v85
    %v236 = vpop.f32.mrb[0].mxu0
    %v237 = vadd.f32 0.0, %v236
    %v238 = vpop.f32.mrb[0].mxu0
    %v239 = vpop.f32.mrb[0].mxu0
    %v240 = vadd.f32 0.0, %v239
    %v241 = vpop.f32.mrb[0].mxu0
    %242 = vdwg.mxu0
    %v243 = vld [vmem:[%s4] ss:$0 sm:$0xff]
    %v244 = vld [vmem:[%s4 + $0x1] ss:$0 sm:$0xff]
    %v245 = vadd.f32 %v213, %v216
    %v246 = vadd.f32 %v245, %v221
    %v247 = vadd.f32 %v246, %v224
    %v248 = vadd.f32 %v247, %v229
    %v249 = vadd.f32 %v248, %v232
    %v250 = vadd.f32 %v249, %v237
    %v251 = vadd.f32 %v250, %v240
    %v252 = vrot.slane %v251, 4
    %v253 = vadd.f32 %v251, %v252
    %v254 = vrot.slane %v253, 2
    %v255 = vadd.f32 %v253, %v254
    %v256 = vrot.slane %v255, 1
    %v257 = vadd.f32 %v255, %v256
    %v258 = vrcp.pop 64.0
    %v259 = vmul.f32 %v257, %v258
    %v260 = vsub.f32 %v213, %v259
    %v261 = vsub.f32 %v216, %v259
    %v262 = vsub.f32 %v221, %v259
    %v263 = vsub.f32 %v224, %v259
    %v264 = vsub.f32 %v229, %v259
    %v265 = vsub.f32 %v232, %v259
    %v266 = vsub.f32 %v237, %v259
    %v267 = vsub.f32 %v240, %v259
    %v268 = vmul.f32 %v260, %v260
    %v269 = vmul.f32 %v261, %v261
    %v270 = vmul.f32 %v262, %v262
    %v271 = vmul.f32 %v263, %v263
    %v272 = vmul.f32 %v264, %v264
    %v273 = vmul.f32 %v265, %v265
    %v274 = vmul.f32 %v266, %v266
    %v275 = vmul.f32 %v267, %v267
    %v276 = vadd.f32 %v268, %v269
    %v277 = vadd.f32 %v276, %v270
    %v278 = vadd.f32 %v277, %v271
    %v279 = vadd.f32 %v278, %v272
    %v280 = vadd.f32 %v279, %v273
    %v281 = vadd.f32 %v280, %v274
    %v282 = vadd.f32 %v281, %v275
    %v283 = vrot.slane %v282, 4
    %v284 = vadd.f32 %v282, %v283
    %v285 = vrot.slane %v284, 2
    %v286 = vadd.f32 %v284, %v285
    %v287 = vrot.slane %v286, 1
    %v288 = vadd.f32 %v286, %v287
    %v289 = vmul.f32 %v288, %v258
    %v290 = vadd.f32 %v289, 1e-05
    %v291 = vrsqrt.pop %v290
    %v292 = vmul.f32 %v243, %v291
    %v293 = vmul.f32 %v260, %v292
    %v294 = vmul.f32 %v261, %v292
    %v295 = vmul.f32 %v262, %v292
    %v296 = vmul.f32 %v263, %v292
    %v297 = vmul.f32 %v264, %v292
    %v298 = vmul.f32 %v265, %v292
    %v299 = vmul.f32 %v266, %v292
    %v300 = vmul.f32 %v267, %v292
    %v301 = vadd.f32 %v293, %v244
    %v302 = vadd.f32 %v294, %v244
    %v303 = vadd.f32 %v295, %v244
    %v304 = vadd.f32 %v296, %v244
    %v305 = vadd.f32 %v297, %v244
    %v306 = vadd.f32 %v298, %v244
    %v307 = vadd.f32 %v299, %v244
    %v308 = vadd.f32 %v300, %v244
    %v309 = vmul.f32 %v301, 0.2
    %v310 = vmul.f32 %v302, 0.2
    %v311 = vmul.f32 %v303, 0.2
    %v312 = vmul.f32 %v304, 0.2
    %v313 = vmul.f32 %v305, 0.2
    %v314 = vmul.f32 %v306, 0.2
    %v315 = vmul.f32 %v307, 0.2
    %v316 = vmul.f32 %v308, 0.2
    %v317 = vmax.f32 %v301, %v309
    %v318 = vmax.f32 %v302, %v310
    %v319 = vmax.f32 %v303, %v311
    %v320 = vmax.f32 %v304, %v312
    %v321 = vmax.f32 %v305, %v313
    %v322 = vmax.f32 %v306, %v314
    %v323 = vmax.f32 %v307, %v315
    %v324 = vmax.f32 %v308, %v316
    %v325 = vpack.c.bf16 %v318, %v317
    %v326 = vpack.c.bf16 %v320, %v319
    %v327 = vpack.c.bf16 %v322, %v321
    %v328 = vpack.c.bf16 %v324, %v323
    %329 = vmatprep.subr.bf16.mxu0 %v99
    %330 = vmatpush1.bf16.msra.mxu0 %v98
    %331 = vmatprep.subr.bf16.mxu0 %v101
    %332 = vmatpush1.bf16.msra.mxu0 %v100
    %333 = vmatprep.subr.bf16.mxu0 %v103
    %334 = vmatpush1.bf16.msra.mxu0 %v102
    %335 = vmatprep.subr.bf16.mxu0 %v105
    %336 = vmatpush1.bf16.msra.mxu0 %v104
    %337 = vmatprep.subr.bf16.mxu0 %v107
    %338 = vmatpush1.bf16.msra.mxu0 %v106
    %339 = vmatprep.subr.bf16.mxu0 %v109
    %340 = vmatpush1.bf16.msra.mxu0 %v108
    %341 = vmatprep.subr.bf16.mxu0 %v111
    %342 = vmatpush1.bf16.msra.mxu0 %v110
    %343 = vmatprep.subr.bf16.mxu0 %v113
    %344 = vmatpush1.bf16.msra.mxu0 %v112
    %345 = vmatprep.subr.bf16.mxu0 0
    %346 = vmatpush1.bf16.msra.mxu0 0
    %347 = vmatprep.subr.bf16.mxu0 0
    %348 = vmatpush1.bf16.msra.mxu0 0
    %349 = vmatprep.subr.bf16.mxu0 0
    %350 = vmatpush1.bf16.msra.mxu0 0
    %351 = vmatprep.subr.bf16.mxu0 0
    %352 = vmatpush1.bf16.msra.mxu0 0
    %353 = vmatprep.subr.bf16.mxu0 0
    %354 = vmatpush1.bf16.msra.mxu0 0
    %355 = vmatprep.subr.bf16.mxu0 0
    %356 = vmatpush1.bf16.msra.mxu0 0
    %357 = vmatprep.subr.bf16.mxu0 0
    %358 = vmatpush1.bf16.msra.mxu0 0
    %359 = vmatprep.subr.bf16.mxu0 0
    %360 = vmatpush1.bf16.msra.mxu0 0
    %361 = vmatprep.mubr.bf16.mxu0 0
    %362 = vmatmul.mubr.bf16.gmra.mrb[0].mxu0 %v325
    %v363 = vpop.f32.mrb[0].mxu0
    %v364 = vadd.f32 0.0, %v363
    %v365 = vpop.f32.mrb[0].mxu0
    %v366 = vadd.f32 0.0, %v365
    %v367 = vpop.f32.mrb[0].mxu0
    %v368 = vadd.f32 0.0, %v367
    %v369 = vpop.f32.mrb[0].mxu0
    %v370 = vadd.f32 0.0, %v369
    %371 = vmatprep.mubr.bf16.mxu0 0
    %372 = vmatmul.mubr.bf16.gmra.mrb[0].mxu0 %v326
    %v373 = vpop.f32.mrb[0].mxu0
    %v374 = vadd.f32 0.0, %v373
    %v375 = vpop.f32.mrb[0].mxu0
    %v376 = vadd.f32 0.0, %v375
    %v377 = vpop.f32.mrb[0].mxu0
    %v378 = vadd.f32 0.0, %v377
    %v379 = vpop.f32.mrb[0].mxu0
    %v380 = vadd.f32 0.0, %v379
    %381 = vmatprep.mubr.bf16.mxu0 0
    %382 = vmatmul.mubr.bf16.gmra.mrb[0].mxu0 %v327
    %v383 = vpop.f32.mrb[0].mxu0
    %v384 = vadd.f32 0.0, %v383
    %v385 = vpop.f32.mrb[0].mxu0
    %v386 = vadd.f32 0.0, %v385
    %v387 = vpop.f32.mrb[0].mxu0
    %v388 = vadd.f32 0.0, %v387
    %v389 = vpop.f32.mrb[0].mxu0
    %v390 = vadd.f32 0.0, %v389
    %391 = vmatprep.mubr.bf16.mxu0 0
    %392 = vmatmul.mubr.bf16.gmra.mrb[0].mxu0 %v328
    %v393 = vpop.f32.mrb[0].mxu0
    %v394 = vadd.f32 0.0, %v393
    %v395 = vpop.f32.mrb[0].mxu0
    %v396 = vadd.f32 0.0, %v395
    %v397 = vpop.f32.mrb[0].mxu0
    %v398 = vadd.f32 0.0, %v397
    %v399 = vpop.f32.mrb[0].mxu0
    %v400 = vadd.f32 0.0, %v399
    %401 = vdwg.mxu0
    %s402 = scalar_lea.vmem %s4, 2
    %v403 = vld [vmem:[%s402] ss:$8 sm:$0x3]
    %s404 = scalar_lea.vmem %s4, 3
    %v405 = vld [vmem:[%s404] ss:$8 sm:$0x3]
    %v406 = vadd.f32 %v364, %v368
    %v407 = vadd.f32 %v406, %v374
    %v408 = vadd.f32 %v407, %v378
    %v409 = vadd.f32 %v408, %v384
    %v410 = vadd.f32 %v409, %v388
    %v411 = vadd.f32 %v410, %v394
    %v412 = vadd.f32 %v411, %v398
    %v413 = vrot.slane %v412, 4
    %v414 = vadd.f32 %v412, %v413
    %v415 = vrot.slane %v414, 2
    %v416 = vadd.f32 %v414, %v415
    %v417 = vrot.slane %v416, 1
    %v418 = vadd.f32 %v416, %v417
    %v419 = vadd.f32 %v366, %v370
    %v420 = vadd.f32 %v419, %v376
    %v421 = vadd.f32 %v420, %v380
    %v422 = vadd.f32 %v421, %v386
    %v423 = vadd.f32 %v422, %v390
    %v424 = vadd.f32 %v423, %v396
    %v425 = vadd.f32 %v424, %v400
    %v426 = vrot.slane %v425, 4
    %v427 = vadd.f32 %v425, %v426
    %v428 = vrot.slane %v427, 2
    %v429 = vadd.f32 %v427, %v428
    %v430 = vrot.slane %v429, 1
    %v431 = vadd.f32 %v429, %v430
    %v432 = vmul.f32 %v418, %v258
    %v433 = vmul.f32 %v431, %v258
    %v434 = vsub.f32 %v364, %v432
    %v435 = vsub.f32 %v366, %v433
    %v436 = vsub.f32 %v368, %v432
    %v437 = vsub.f32 %v370, %v433
    %v438 = vsub.f32 %v374, %v432
    %v439 = vsub.f32 %v376, %v433
    %v440 = vsub.f32 %v378, %v432
    %v441 = vsub.f32 %v380, %v433
    %v442 = vsub.f32 %v384, %v432
    %v443 = vsub.f32 %v386, %v433
    %v444 = vsub.f32 %v388, %v432
    %v445 = vsub.f32 %v390, %v433
    %v446 = vsub.f32 %v394, %v432
    %v447 = vsub.f32 %v396, %v433
    %v448 = vsub.f32 %v398, %v432
    %v449 = vsub.f32 %v400, %v433
    %v450 = vmul.f32 %v434, %v434
    %v451 = vmul.f32 %v435, %v435
    %v452 = vmul.f32 %v436, %v436
    %v453 = vmul.f32 %v437, %v437
    %v454 = vmul.f32 %v438, %v438
    %v455 = vmul.f32 %v439, %v439
    %v456 = vmul.f32 %v440, %v440
    %v457 = vmul.f32 %v441, %v441
    %v458 = vmul.f32 %v442, %v442
    %v459 = vmul.f32 %v443, %v443
    %v460 = vmul.f32 %v444, %v444
    %v461 = vmul.f32 %v445, %v445
    %v462 = vmul.f32 %v446, %v446
    %v463 = vmul.f32 %v447, %v447
    %v464 = vmul.f32 %v448, %v448
    %v465 = vmul.f32 %v449, %v449
    %v466 = vadd.f32 %v450, %v452
    %v467 = vadd.f32 %v466, %v454
    %v468 = vadd.f32 %v467, %v456
    %v469 = vadd.f32 %v468, %v458
    %v470 = vadd.f32 %v469, %v460
    %v471 = vadd.f32 %v470, %v462
    %v472 = vadd.f32 %v471, %v464
    %v473 = vrot.slane %v472, 4
    %v474 = vadd.f32 %v472, %v473
    %v475 = vrot.slane %v474, 2
    %v476 = vadd.f32 %v474, %v475
    %v477 = vrot.slane %v476, 1
    %v478 = vadd.f32 %v476, %v477
    %v479 = vadd.f32 %v451, %v453
    %v480 = vadd.f32 %v479, %v455
    %v481 = vadd.f32 %v480, %v457
    %v482 = vadd.f32 %v481, %v459
    %v483 = vadd.f32 %v482, %v461
    %v484 = vadd.f32 %v483, %v463
    %v485 = vadd.f32 %v484, %v465
    %v486 = vrot.slane %v485, 4
    %v487 = vadd.f32 %v485, %v486
    %v488 = vrot.slane %v487, 2
    %v489 = vadd.f32 %v487, %v488
    %v490 = vrot.slane %v489, 1
    %v491 = vadd.f32 %v489, %v490
    %v492 = vmul.f32 %v478, %v258
    %v493 = vmul.f32 %v491, %v258
    %v494 = vadd.f32 %v492, 1e-05
    %v495 = vadd.f32 %v493, 1e-05
    %v496 = vrsqrt.pop %v494
    %v497 = vrsqrt.pop %v495
    %v500 = vcombine.low %v496, %v497
    %v502 = vunpack.c.l.s4 1966171168
    %v503 = vunpack.c.0.s8 %v502
    %v504 = vlaneseq
    %v505 = vshrl.u32 %v504, 7
    %v506 = vsub.s32 %v503, %v505
    %v507 = vrot.slane %v500, %v506
    %v509 = vunpack.c.l.s4 1966171168
    %v510 = vunpack.c.0.s8 %v509
    %v511 = vlaneseq
    %v512 = vshrl.u32 %v511, 7
    %v513 = vsub.s32 %v510, %v512
    %v514 = vrot.slane %v507, %v513
    %v516 = vmul.f32 %v403, %v514
    %v518 = vlaneseq
    %v519 = vshrl.u32 %v518, 7
    %v520 = vsub.s32 0, %v519
    %v521 = vrot.slane %v516, %v520
    %v522 = vlaneseq
    %v523 = vshrl.u32 %v522, 7
    %v524 = vsub.s32 1, %v523
    %v525 = vrot.slane %v516, %v524
    %v528 = vmul.f32 %v434, %v521
    %v529 = vmul.f32 %v435, %v525
    %v530 = vmul.f32 %v436, %v521
    %v531 = vmul.f32 %v437, %v525
    %v532 = vmul.f32 %v438, %v521
    %v533 = vmul.f32 %v439, %v525
    %v534 = vmul.f32 %v440, %v521
    %v535 = vmul.f32 %v441, %v525
    %v536 = vmul.f32 %v442, %v521
    %v537 = vmul.f32 %v443, %v525
    %v538 = vmul.f32 %v444, %v521
    %v539 = vmul.f32 %v445, %v525
    %v540 = vmul.f32 %v446, %v521
    %v541 = vmul.f32 %v447, %v525
    %v542 = vmul.f32 %v448, %v521
    %v543 = vmul.f32 %v449, %v525
    %v545 = vlaneseq
    %v546 = vshrl.u32 %v545, 7
    %v547 = vsub.s32 0, %v546
    %v548 = vrot.slane %v405, %v547
    %v549 = vlaneseq
    %v550 = vshrl.u32 %v549, 7
    %v551 = vsub.s32 1, %v550
    %v552 = vrot.slane %v405, %v551
    %v555 = vadd.f32 %v528, %v548
    %v556 = vadd.f32 %v529, %v552
    %v557 = vadd.f32 %v530, %v548
    %v558 = vadd.f32 %v531, %v552
    %v559 = vadd.f32 %v532, %v548
    %v560 = vadd.f32 %v533, %v552
    %v561 = vadd.f32 %v534, %v548
    %v562 = vadd.f32 %v535, %v552
    %v563 = vadd.f32 %v536, %v548
    %v564 = vadd.f32 %v537, %v552
    %v565 = vadd.f32 %v538, %v548
    %v566 = vadd.f32 %v539, %v552
    %v567 = vadd.f32 %v540, %v548
    %v568 = vadd.f32 %v541, %v552
    %v569 = vadd.f32 %v542, %v548
    %v570 = vadd.f32 %v543, %v552
    %v571 = vmul.f32 %v555, 0.2
    %v572 = vmul.f32 %v556, 0.2
    %v573 = vmul.f32 %v557, 0.2
    %v574 = vmul.f32 %v558, 0.2
    %v575 = vmul.f32 %v559, 0.2
    %v576 = vmul.f32 %v560, 0.2
    %v577 = vmul.f32 %v561, 0.2
    %v578 = vmul.f32 %v562, 0.2
    %v579 = vmul.f32 %v563, 0.2
    %v580 = vmul.f32 %v564, 0.2
    %v581 = vmul.f32 %v565, 0.2
    %v582 = vmul.f32 %v566, 0.2
    %v583 = vmul.f32 %v567, 0.2
    %v584 = vmul.f32 %v568, 0.2
    %v585 = vmul.f32 %v569, 0.2
    %v586 = vmul.f32 %v570, 0.2
    %v587 = vmax.f32 %v555, %v571
    %v588 = vmax.f32 %v556, %v572
    %v589 = vmax.f32 %v557, %v573
    %v590 = vmax.f32 %v558, %v574
    %v591 = vmax.f32 %v559, %v575
    %v592 = vmax.f32 %v560, %v576
    %v593 = vmax.f32 %v561, %v577
    %v594 = vmax.f32 %v562, %v578
    %v595 = vmax.f32 %v563, %v579
    %v596 = vmax.f32 %v564, %v580
    %v597 = vmax.f32 %v565, %v581
    %v598 = vmax.f32 %v566, %v582
    %v599 = vmax.f32 %v567, %v583
    %v600 = vmax.f32 %v568, %v584
    %v601 = vmax.f32 %v569, %v585
    %v602 = vmax.f32 %v570, %v586
    %v603 = vpack.c.bf16 %v589, %v587
    %v604 = vpack.c.bf16 %v590, %v588
    %v605 = vpack.c.bf16 %v593, %v591
    %v606 = vpack.c.bf16 %v594, %v592
    %v607 = vpack.c.bf16 %v597, %v595
    %v608 = vpack.c.bf16 %v598, %v596
    %v609 = vpack.c.bf16 %v601, %v599
    %v610 = vpack.c.bf16 %v602, %v600
    %611 = vmatprep.subr.bf16.mxu0 %v115
    %612 = vmatpush1.bf16.msra.mxu0 %v114
    %613 = vmatprep.subr.bf16.mxu0 %v119
    %614 = vmatpush1.bf16.msra.mxu0 %v118
    %615 = vmatprep.subr.bf16.mxu0 %v123
    %616 = vmatpush1.bf16.msra.mxu0 %v122
    %617 = vmatprep.subr.bf16.mxu0 %v127
    %618 = vmatpush1.bf16.msra.mxu0 %v126
    %619 = vmatprep.subr.bf16.mxu0 %v131
    %620 = vmatpush1.bf16.msra.mxu0 %v130
    %621 = vmatprep.subr.bf16.mxu0 %v135
    %622 = vmatpush1.bf16.msra.mxu0 %v134
    %623 = vmatprep.subr.bf16.mxu0 %v139
    %624 = vmatpush1.bf16.msra.mxu0 %v138
    %625 = vmatprep.subr.bf16.mxu0 %v143
    %626 = vmatpush1.bf16.msra.mxu0 %v142
    %627 = vmatprep.subr.bf16.mxu0 %v147
    %628 = vmatpush1.bf16.msra.mxu0 %v146
    %629 = vmatprep.subr.bf16.mxu0 %v151
    %630 = vmatpush1.bf16.msra.mxu0 %v150
    %631 = vmatprep.subr.bf16.mxu0 %v155
    %632 = vmatpush1.bf16.msra.mxu0 %v154
    %633 = vmatprep.subr.bf16.mxu0 %v159
    %634 = vmatpush1.bf16.msra.mxu0 %v158
    %635 = vmatprep.subr.bf16.mxu0 %v163
    %636 = vmatpush1.bf16.msra.mxu0 %v162
    %637 = vmatprep.subr.bf16.mxu0 %v167
    %638 = vmatpush1.bf16.msra.mxu0 %v166
    %639 = vmatprep.subr.bf16.mxu0 %v171
    %640 = vmatpush1.bf16.msra.mxu0 %v170
    %641 = vmatprep.subr.bf16.mxu0 %v175
    %642 = vmatpush1.bf16.msra.mxu0 %v174
    %643 = vmatprep.mubr.bf16.mxu0 %v604
    %644 = vmatmul.mubr.bf16.gmra.mrb[0].mxu0 %v603
    %v645 = vpop.f32.mrb[0].mxu0
    %v646 = vadd.f32 0.0, %v645
    %v647 = vpop.f32.mrb[0].mxu0
    %v648 = vadd.f32 0.0, %v647
    %v649 = vpop.f32.mrb[0].mxu0
    %v650 = vadd.f32 0.0, %v649
    %v651 = vpop.f32.mrb[0].mxu0
    %v652 = vadd.f32 0.0, %v651
    %653 = vmatprep.mubr.bf16.mxu0 %v606
    %654 = vmatmul.mubr.bf16.gmra.mrb[0].mxu0 %v605
    %v655 = vpop.f32.mrb[0].mxu0
    %v656 = vadd.f32 0.0, %v655
    %v657 = vpop.f32.mrb[0].mxu0
    %v658 = vadd.f32 0.0, %v657
    %v659 = vpop.f32.mrb[0].mxu0
    %v660 = vadd.f32 0.0, %v659
    %v661 = vpop.f32.mrb[0].mxu0
    %v662 = vadd.f32 0.0, %v661
    %663 = vmatprep.mubr.bf16.mxu0 %v608
    %664 = vmatmul.mubr.bf16.gmra.mrb[0].mxu0 %v607
    %v665 = vpop.f32.mrb[0].mxu0
    %v666 = vadd.f32 0.0, %v665
    %v667 = vpop.f32.mrb[0].mxu0
    %v668 = vadd.f32 0.0, %v667
    %v669 = vpop.f32.mrb[0].mxu0
    %v670 = vadd.f32 0.0, %v669
    %v671 = vpop.f32.mrb[0].mxu0
    %v672 = vadd.f32 0.0, %v671
    %673 = vmatprep.mubr.bf16.mxu0 %v610
    %674 = vmatmul.mubr.bf16.gmra.mrb[0].mxu0 %v609
    %v675 = vpop.f32.mrb[0].mxu0
    %v676 = vadd.f32 0.0, %v675
    %v677 = vpop.f32.mrb[0].mxu0
    %v678 = vadd.f32 0.0, %v677
    %v679 = vpop.f32.mrb[0].mxu0
    %v680 = vadd.f32 0.0, %v679
    %v681 = vpop.f32.mrb[0].mxu0
    %v682 = vadd.f32 0.0, %v681
    %683 = vdwg.mxu0
    %684 = vmatprep.subr.bf16.mxu0 %v117
    %685 = vmatpush1.bf16.msra.mxu0 %v116
    %686 = vmatprep.subr.bf16.mxu0 %v121
    %687 = vmatpush1.bf16.msra.mxu0 %v120
    %688 = vmatprep.subr.bf16.mxu0 %v125
    %689 = vmatpush1.bf16.msra.mxu0 %v124
    %690 = vmatprep.subr.bf16.mxu0 %v129
    %691 = vmatpush1.bf16.msra.mxu0 %v128
    %692 = vmatprep.subr.bf16.mxu0 %v133
    %693 = vmatpush1.bf16.msra.mxu0 %v132
    %694 = vmatprep.subr.bf16.mxu0 %v137
    %695 = vmatpush1.bf16.msra.mxu0 %v136
    %696 = vmatprep.subr.bf16.mxu0 %v141
    %697 = vmatpush1.bf16.msra.mxu0 %v140
    %698 = vmatprep.subr.bf16.mxu0 %v145
    %699 = vmatpush1.bf16.msra.mxu0 %v144
    %700 = vmatprep.subr.bf16.mxu0 %v149
    %701 = vmatpush1.bf16.msra.mxu0 %v148
    %702 = vmatprep.subr.bf16.mxu0 %v153
    %703 = vmatpush1.bf16.msra.mxu0 %v152
    %704 = vmatprep.subr.bf16.mxu0 %v157
    %705 = vmatpush1.bf16.msra.mxu0 %v156
    %706 = vmatprep.subr.bf16.mxu0 %v161
    %707 = vmatpush1.bf16.msra.mxu0 %v160
    %708 = vmatprep.subr.bf16.mxu0 %v165
    %709 = vmatpush1.bf16.msra.mxu0 %v164
    %710 = vmatprep.subr.bf16.mxu0 %v169
    %711 = vmatpush1.bf16.msra.mxu0 %v168
    %712 = vmatprep.subr.bf16.mxu0 %v173
    %713 = vmatpush1.bf16.msra.mxu0 %v172
    %714 = vmatprep.subr.bf16.mxu0 %v177
    %715 = vmatpush1.bf16.msra.mxu0 %v176
    %716 = vmatprep.mubr.bf16.mxu0 %v604
    %717 = vmatmul.mubr.bf16.gmra.mrb[0].mxu0 %v603
    %v718 = vpop.f32.mrb[0].mxu0
    %v719 = vadd.f32 0.0, %v718
    %v720 = vpop.f32.mrb[0].mxu0
    %v721 = vadd.f32 0.0, %v720
    %v722 = vpop.f32.mrb[0].mxu0
    %v723 = vadd.f32 0.0, %v722
    %v724 = vpop.f32.mrb[0].mxu0
    %v725 = vadd.f32 0.0, %v724
    %726 = vmatprep.mubr.bf16.mxu0 %v606
    %727 = vmatmul.mubr.bf16.gmra.mrb[0].mxu0 %v605
    %v728 = vpop.f32.mrb[0].mxu0
    %v729 = vadd.f32 0.0, %v728
    %v730 = vpop.f32.mrb[0].mxu0
    %v731 = vadd.f32 0.0, %v730
    %v732 = vpop.f32.mrb[0].mxu0
    %v733 = vadd.f32 0.0, %v732
    %v734 = vpop.f32.mrb[0].mxu0
    %v735 = vadd.f32 0.0, %v734
    %736 = vmatprep.mubr.bf16.mxu0 %v608
    %737 = vmatmul.mubr.bf16.gmra.mrb[0].mxu0 %v607
    %v738 = vpop.f32.mrb[0].mxu0
    %v739 = vadd.f32 0.0, %v738
    %v740 = vpop.f32.mrb[0].mxu0
    %v741 = vadd.f32 0.0, %v740
    %v742 = vpop.f32.mrb[0].mxu0
    %v743 = vadd.f32 0.0, %v742
    %v744 = vpop.f32.mrb[0].mxu0
    %v745 = vadd.f32 0.0, %v744
    %746 = vmatprep.mubr.bf16.mxu0 %v610
    %747 = vmatmul.mubr.bf16.gmra.mrb[0].mxu0 %v609
    %v748 = vpop.f32.mrb[0].mxu0
    %v749 = vadd.f32 0.0, %v748
    %v750 = vpop.f32.mrb[0].mxu0
    %v751 = vadd.f32 0.0, %v750
    %v752 = vpop.f32.mrb[0].mxu0
    %v753 = vadd.f32 0.0, %v752
    %v754 = vpop.f32.mrb[0].mxu0
    %v755 = vadd.f32 0.0, %v754
    %756 = vdwg.mxu0
    %s757 = scalar_lea.vmem %s4, 4
    %v758 = vld [vmem:[%s757] ss:$8 sm:$0xf]
    %s759 = scalar_lea.vmem %s4, 5
    %v760 = vld [vmem:[%s759] ss:$8 sm:$0xf]
    %v761 = vadd.f32 %v646, %v650
    %v762 = vadd.f32 %v761, %v656
    %v763 = vadd.f32 %v762, %v660
    %v764 = vadd.f32 %v763, %v666
    %v765 = vadd.f32 %v764, %v670
    %v766 = vadd.f32 %v765, %v676
    %v767 = vadd.f32 %v766, %v680
    %v768 = vrot.slane %v767, 4
    %v769 = vadd.f32 %v767, %v768
    %v770 = vrot.slane %v769, 2
    %v771 = vadd.f32 %v769, %v770
    %v772 = vrot.slane %v771, 1
    %v773 = vadd.f32 %v771, %v772
    %v774 = vadd.f32 %v648, %v652
    %v775 = vadd.f32 %v774, %v658
    %v776 = vadd.f32 %v775, %v662
    %v777 = vadd.f32 %v776, %v668
    %v778 = vadd.f32 %v777, %v672
    %v779 = vadd.f32 %v778, %v678
    %v780 = vadd.f32 %v779, %v682
    %v781 = vrot.slane %v780, 4
    %v782 = vadd.f32 %v780, %v781
    %v783 = vrot.slane %v782, 2
    %v784 = vadd.f32 %v782, %v783
    %v785 = vrot.slane %v784, 1
    %v786 = vadd.f32 %v784, %v785
    %v787 = vadd.f32 %v719, %v723
    %v788 = vadd.f32 %v787, %v729
    %v789 = vadd.f32 %v788, %v733
    %v790 = vadd.f32 %v789, %v739
    %v791 = vadd.f32 %v790, %v743
    %v792 = vadd.f32 %v791, %v749
    %v793 = vadd.f32 %v792, %v753
    %v794 = vrot.slane %v793, 4
    %v795 = vadd.f32 %v793, %v794
    %v796 = vrot.slane %v795, 2
    %v797 = vadd.f32 %v795, %v796
    %v798 = vrot.slane %v797, 1
    %v799 = vadd.f32 %v797, %v798
    %v800 = vadd.f32 %v721, %v725
    %v801 = vadd.f32 %v800, %v731
    %v802 = vadd.f32 %v801, %v735
    %v803 = vadd.f32 %v802, %v741
    %v804 = vadd.f32 %v803, %v745
    %v805 = vadd.f32 %v804, %v751
    %v806 = vadd.f32 %v805, %v755
    %v807 = vrot.slane %v806, 4
    %v808 = vadd.f32 %v806, %v807
    %v809 = vrot.slane %v808, 2
    %v810 = vadd.f32 %v808, %v809
    %v811 = vrot.slane %v810, 1
    %v812 = vadd.f32 %v810, %v811
    %v813 = vmul.f32 %v773, %v258
    %v814 = vmul.f32 %v786, %v258
    %v815 = vmul.f32 %v799, %v258
    %v816 = vmul.f32 %v812, %v258
    %v817 = vsub.f32 %v646, %v813
    %v818 = vsub.f32 %v648, %v814
    %v819 = vsub.f32 %v719, %v815
    %v820 = vsub.f32 %v721, %v816
    %v821 = vsub.f32 %v650, %v813
    %v822 = vsub.f32 %v652, %v814
    %v823 = vsub.f32 %v723, %v815
    %v824 = vsub.f32 %v725, %v816
    %v825 = vsub.f32 %v656, %v813
    %v826 = vsub.f32 %v658, %v814
    %v827 = vsub.f32 %v729, %v815
    %v828 = vsub.f32 %v731, %v816
    %v829 = vsub.f32 %v660, %v813
    %v830 = vsub.f32 %v662, %v814
    %v831 = vsub.f32 %v733, %v815
    %v832 = vsub.f32 %v735, %v816
    %v833 = vsub.f32 %v666, %v813
    %v834 = vsub.f32 %v668, %v814
    %v835 = vsub.f32 %v739, %v815
    %v836 = vsub.f32 %v741, %v816
    %v837 = vsub.f32 %v670, %v813
    %v838 = vsub.f32 %v672, %v814
    %v839 = vsub.f32 %v743, %v815
    %v840 = vsub.f32 %v745, %v816
    %v841 = vsub.f32 %v676, %v813
    %v842 = vsub.f32 %v678, %v814
    %v843 = vsub.f32 %v749, %v815
    %v844 = vsub.f32 %v751, %v816
    %v845 = vsub.f32 %v680, %v813
    %v846 = vsub.f32 %v682, %v814
    %v847 = vsub.f32 %v753, %v815
    %v848 = vsub.f32 %v755, %v816
    %v849 = vmul.f32 %v817, %v817
    %v850 = vmul.f32 %v818, %v818
    %v851 = vmul.f32 %v819, %v819
    %v852 = vmul.f32 %v820, %v820
    %v853 = vmul.f32 %v821, %v821
    %v854 = vmul.f32 %v822, %v822
    %v855 = vmul.f32 %v823, %v823
    %v856 = vmul.f32 %v824, %v824
    %v857 = vmul.f32 %v825, %v825
    %v858 = vmul.f32 %v826, %v826
    %v859 = vmul.f32 %v827, %v827
    %v860 = vmul.f32 %v828, %v828
    %v861 = vmul.f32 %v829, %v829
    %v862 = vmul.f32 %v830, %v830
    %v863 = vmul.f32 %v831, %v831
    %v864 = vmul.f32 %v832, %v832
    %v865 = vmul.f32 %v833, %v833
    %v866 = vmul.f32 %v834, %v834
    %v867 = vmul.f32 %v835, %v835
    %v868 = vmul.f32 %v836, %v836
    %v869 = vmul.f32 %v837, %v837
    %v870 = vmul.f32 %v838, %v838
    %v871 = vmul.f32 %v839, %v839
    %v872 = vmul.f32 %v840, %v840
    %v873 = vmul.f32 %v841, %v841
    %v874 = vmul.f32 %v842, %v842
    %v875 = vmul.f32 %v843, %v843
    %v876 = vmul.f32 %v844, %v844
    %v877 = vmul.f32 %v845, %v845
    %v878 = vmul.f32 %v846, %v846
    %v879 = vmul.f32 %v847, %v847
    %v880 = vmul.f32 %v848, %v848
    %v881 = vadd.f32 %v849, %v853
    %v882 = vadd.f32 %v881, %v857
    %v883 = vadd.f32 %v882, %v861
    %v884 = vadd.f32 %v883, %v865
    %v885 = vadd.f32 %v884, %v869
    %v886 = vadd.f32 %v885, %v873
    %v887 = vadd.f32 %v886, %v877
    %v888 = vrot.slane %v887, 4
    %v889 = vadd.f32 %v887, %v888
    %v890 = vrot.slane %v889, 2
    %v891 = vadd.f32 %v889, %v890
    %v892 = vrot.slane %v891, 1
    %v893 = vadd.f32 %v891, %v892
    %v894 = vadd.f32 %v850, %v854
    %v895 = vadd.f32 %v894, %v858
    %v896 = vadd.f32 %v895, %v862
    %v897 = vadd.f32 %v896, %v866
    %v898 = vadd.f32 %v897, %v870
    %v899 = vadd.f32 %v898, %v874
    %v900 = vadd.f32 %v899, %v878
    %v901 = vrot.slane %v900, 4
    %v902 = vadd.f32 %v900, %v901
    %v903 = vrot.slane %v902, 2
    %v904 = vadd.f32 %v902, %v903
    %v905 = vrot.slane %v904, 1
    %v906 = vadd.f32 %v904, %v905
    %v907 = vadd.f32 %v851, %v855
    %v908 = vadd.f32 %v907, %v859
    %v909 = vadd.f32 %v908, %v863
    %v910 = vadd.f32 %v909, %v867
    %v911 = vadd.f32 %v910, %v871
    %v912 = vadd.f32 %v911, %v875
    %v913 = vadd.f32 %v912, %v879
    %v914 = vrot.slane %v913, 4
    %v915 = vadd.f32 %v913, %v914
    %v916 = vrot.slane %v915, 2
    %v917 = vadd.f32 %v915, %v916
    %v918 = vrot.slane %v917, 1
    %v919 = vadd.f32 %v917, %v918
    %v920 = vadd.f32 %v852, %v856
    %v921 = vadd.f32 %v920, %v860
    %v922 = vadd.f32 %v921, %v864
    %v923 = vadd.f32 %v922, %v868
    %v924 = vadd.f32 %v923, %v872
    %v925 = vadd.f32 %v924, %v876
    %v926 = vadd.f32 %v925, %v880
    %v927 = vrot.slane %v926, 4
    %v928 = vadd.f32 %v926, %v927
    %v929 = vrot.slane %v928, 2
    %v930 = vadd.f32 %v928, %v929
    %v931 = vrot.slane %v930, 1
    %v932 = vadd.f32 %v930, %v931
    %v933 = vmul.f32 %v893, %v258
    %v934 = vmul.f32 %v906, %v258
    %v935 = vmul.f32 %v919, %v258
    %v936 = vmul.f32 %v932, %v258
    %v937 = vadd.f32 %v933, 1e-05
    %v938 = vadd.f32 %v934, 1e-05
    %v939 = vadd.f32 %v935, 1e-05
    %v940 = vadd.f32 %v936, 1e-05
    %v941 = vrsqrt.pop %v937
    %v942 = vrsqrt.pop %v938
    %v943 = vrsqrt.pop %v939
    %v944 = vrsqrt.pop %v940
    %v949 = vcombine.low %v941, %v942
    %v950 = vcombine.low %v943, %v944
    %v952 = vunpack.c.l.s4 1966171168
    %v953 = vunpack.c.0.s8 %v952
    %v954 = vlaneseq
    %v955 = vshrl.u32 %v954, 7
    %v956 = vsub.s32 %v953, %v955
    %v957 = vrot.slane %v949, %v956
    %v959 = vunpack.c.l.s4 1966171168
    %v960 = vunpack.c.0.s8 %v959
    %v961 = vlaneseq
    %v962 = vshrl.u32 %v961, 7
    %v963 = vsub.s32 %v960, %v962
    %v964 = vrot.slane %v950, %v963
    %v965 = vcombine.low %v957, %v964
    %v967 = vunpack.c.l.s4 1966171168
    %v968 = vunpack.c.0.s8 %v967
    %v969 = vlaneseq
    %v970 = vshrl.u32 %v969, 7
    %v971 = vsub.s32 %v968, %v970
    %v972 = vrot.slane %v965, %v971
    %v974 = vmul.f32 %v758, %v972
    %v976 = vlaneseq
    %v977 = vshrl.u32 %v976, 7
    %v978 = vsub.s32 0, %v977
    %v979 = vrot.slane %v974, %v978
    %v980 = vlaneseq
    %v981 = vshrl.u32 %v980, 7
    %v982 = vsub.s32 1, %v981
    %v983 = vrot.slane %v974, %v982
    %v984 = vlaneseq
    %v985 = vshrl.u32 %v984, 7
    %v986 = vsub.s32 2, %v985
    %v987 = vrot.slane %v974, %v986
    %v988 = vlaneseq
    %v989 = vshrl.u32 %v988, 7
    %v990 = vsub.s32 3, %v989
    %v991 = vrot.slane %v974, %v990
    %v996 = vmul.f32 %v817, %v979
    %v997 = vmul.f32 %v818, %v983
    %v998 = vmul.f32 %v819, %v987
    %v999 = vmul.f32 %v820, %v991
    %v1000 = vmul.f32 %v821, %v979
    %v1001 = vmul.f32 %v822, %v983
    %v1002 = vmul.f32 %v823, %v987
    %v1003 = vmul.f32 %v824, %v991
    %v1004 = vmul.f32 %v825, %v979
    %v1005 = vmul.f32 %v826, %v983
    %v1006 = vmul.f32 %v827, %v987
    %v1007 = vmul.f32 %v828, %v991
    %v1008 = vmul.f32 %v829, %v979
    %v1009 = vmul.f32 %v830, %v983
    %v1010 = vmul.f32 %v831, %v987
    %v1011 = vmul.f32 %v832, %v991
    %v1012 = vmul.f32 %v833, %v979
    %v1013 = vmul.f32 %v834, %v983
    %v1014 = vmul.f32 %v835, %v987
    %v1015 = vmul.f32 %v836, %v991
    %v1016 = vmul.f32 %v837, %v979
    %v1017 = vmul.f32 %v838, %v983
    %v1018 = vmul.f32 %v839, %v987
    %v1019 = vmul.f32 %v840, %v991
    %v1020 = vmul.f32 %v841, %v979
    %v1021 = vmul.f32 %v842, %v983
    %v1022 = vmul.f32 %v843, %v987
    %v1023 = vmul.f32 %v844, %v991
    %v1024 = vmul.f32 %v845, %v979
    %v1025 = vmul.f32 %v846, %v983
    %v1026 = vmul.f32 %v847, %v987
    %v1027 = vmul.f32 %v848, %v991
    %v1029 = vlaneseq
    %v1030 = vshrl.u32 %v1029, 7
    %v1031 = vsub.s32 0, %v1030
    %v1032 = vrot.slane %v760, %v1031
    %v1033 = vlaneseq
    %v1034 = vshrl.u32 %v1033, 7
    %v1035 = vsub.s32 1, %v1034
    %v1036 = vrot.slane %v760, %v1035
    %v1037 = vlaneseq
    %v1038 = vshrl.u32 %v1037, 7
    %v1039 = vsub.s32 2, %v1038
    %v1040 = vrot.slane %v760, %v1039
    %v1041 = vlaneseq
    %v1042 = vshrl.u32 %v1041, 7
    %v1043 = vsub.s32 3, %v1042
    %v1044 = vrot.slane %v760, %v1043
    %v1049 = vadd.f32 %v996, %v1032
    %v1050 = vadd.f32 %v997, %v1036
    %v1051 = vadd.f32 %v998, %v1040
    %v1052 = vadd.f32 %v999, %v1044
    %v1053 = vadd.f32 %v1000, %v1032
    %v1054 = vadd.f32 %v1001, %v1036
    %v1055 = vadd.f32 %v1002, %v1040
    %v1056 = vadd.f32 %v1003, %v1044
    %v1057 = vadd.f32 %v1004, %v1032
    %v1058 = vadd.f32 %v1005, %v1036
    %v1059 = vadd.f32 %v1006, %v1040
    %v1060 = vadd.f32 %v1007, %v1044
    %v1061 = vadd.f32 %v1008, %v1032
    %v1062 = vadd.f32 %v1009, %v1036
    %v1063 = vadd.f32 %v1010, %v1040
    %v1064 = vadd.f32 %v1011, %v1044
    %v1065 = vadd.f32 %v1012, %v1032
    %v1066 = vadd.f32 %v1013, %v1036
    %v1067 = vadd.f32 %v1014, %v1040
    %v1068 = vadd.f32 %v1015, %v1044
    %v1069 = vadd.f32 %v1016, %v1032
    %v1070 = vadd.f32 %v1017, %v1036
    %v1071 = vadd.f32 %v1018, %v1040
    %v1072 = vadd.f32 %v1019, %v1044
    %v1073 = vadd.f32 %v1020, %v1032
    %v1074 = vadd.f32 %v1021, %v1036
    %v1075 = vadd.f32 %v1022, %v1040
    %v1076 = vadd.f32 %v1023, %v1044
    %v1077 = vadd.f32 %v1024, %v1032
    %v1078 = vadd.f32 %v1025, %v1036
    %v1079 = vadd.f32 %v1026, %v1040
    %v1080 = vadd.f32 %v1027, %v1044
    %v1081 = vmul.f32 %v1049, 0.2
    %v1082 = vmul.f32 %v1050, 0.2
    %v1083 = vmul.f32 %v1051, 0.2
    %v1084 = vmul.f32 %v1052, 0.2
    %v1085 = vmul.f32 %v1053, 0.2
    %v1086 = vmul.f32 %v1054, 0.2
    %v1087 = vmul.f32 %v1055, 0.2
    %v1088 = vmul.f32 %v1056, 0.2
    %v1089 = vmul.f32 %v1057, 0.2
    %v1090 = vmul.f32 %v1058, 0.2
    %v1091 = vmul.f32 %v1059, 0.2
    %v1092 = vmul.f32 %v1060, 0.2
    %v1093 = vmul.f32 %v1061, 0.2
    %v1094 = vmul.f32 %v1062, 0.2
    %v1095 = vmul.f32 %v1063, 0.2
    %v1096 = vmul.f32 %v1064, 0.2
    %v1097 = vmul.f32 %v1065, 0.2
    %v1098 = vmul.f32 %v1066, 0.2
    %v1099 = vmul.f32 %v1067, 0.2
    %v1100 = vmul.f32 %v1068, 0.2
    %v1101 = vmul.f32 %v1069, 0.2
    %v1102 = vmul.f32 %v1070, 0.2
    %v1103 = vmul.f32 %v1071, 0.2
    %v1104 = vmul.f32 %v1072, 0.2
    %v1105 = vmul.f32 %v1073, 0.2
    %v1106 = vmul.f32 %v1074, 0.2
    %v1107 = vmul.f32 %v1075, 0.2
    %v1108 = vmul.f32 %v1076, 0.2
    %v1109 = vmul.f32 %v1077, 0.2
    %v1110 = vmul.f32 %v1078, 0.2
    %v1111 = vmul.f32 %v1079, 0.2
    %v1112 = vmul.f32 %v1080, 0.2
    %v1113 = vmax.f32 %v1049, %v1081
    %v1114 = vmax.f32 %v1050, %v1082
    %v1115 = vmax.f32 %v1051, %v1083
    %v1116 = vmax.f32 %v1052, %v1084
    %v1117 = vmax.f32 %v1053, %v1085
    %v1118 = vmax.f32 %v1054, %v1086
    %v1119 = vmax.f32 %v1055, %v1087
    %v1120 = vmax.f32 %v1056, %v1088
    %v1121 = vmax.f32 %v1057, %v1089
    %v1122 = vmax.f32 %v1058, %v1090
    %v1123 = vmax.f32 %v1059, %v1091
    %v1124 = vmax.f32 %v1060, %v1092
    %v1125 = vmax.f32 %v1061, %v1093
    %v1126 = vmax.f32 %v1062, %v1094
    %v1127 = vmax.f32 %v1063, %v1095
    %v1128 = vmax.f32 %v1064, %v1096
    %v1129 = vmax.f32 %v1065, %v1097
    %v1130 = vmax.f32 %v1066, %v1098
    %v1131 = vmax.f32 %v1067, %v1099
    %v1132 = vmax.f32 %v1068, %v1100
    %v1133 = vmax.f32 %v1069, %v1101
    %v1134 = vmax.f32 %v1070, %v1102
    %v1135 = vmax.f32 %v1071, %v1103
    %v1136 = vmax.f32 %v1072, %v1104
    %v1137 = vmax.f32 %v1073, %v1105
    %v1138 = vmax.f32 %v1074, %v1106
    %v1139 = vmax.f32 %v1075, %v1107
    %v1140 = vmax.f32 %v1076, %v1108
    %v1141 = vmax.f32 %v1077, %v1109
    %v1142 = vmax.f32 %v1078, %v1110
    %v1143 = vmax.f32 %v1079, %v1111
    %v1144 = vmax.f32 %v1080, %v1112
    %s1145 = smul.u32 2, 64
    %s1146 = smul.u32 %s1145, 8
    %s1147 = sshll.u32 %s1146, 4
    %1148 = dma.done %s50, %s1147
    %v1149 = vpack.c.bf16 %v1117, %v1113
    %v1150 = vpack.c.bf16 %v1118, %v1114
    %v1151 = vpack.c.bf16 %v1119, %v1115
    %v1152 = vpack.c.bf16 %v1120, %v1116
    %v1153 = vpack.c.bf16 %v1125, %v1121
    %v1154 = vpack.c.bf16 %v1126, %v1122
    %v1155 = vpack.c.bf16 %v1127, %v1123
    %v1156 = vpack.c.bf16 %v1128, %v1124
    %v1157 = vpack.c.bf16 %v1133, %v1129
    %v1158 = vpack.c.bf16 %v1134, %v1130
    %v1159 = vpack.c.bf16 %v1135, %v1131
    %v1160 = vpack.c.bf16 %v1136, %v1132
    %v1161 = vpack.c.bf16 %v1141, %v1137
    %v1162 = vpack.c.bf16 %v1142, %v1138
    %v1163 = vpack.c.bf16 %v1143, %v1139
    %v1164 = vpack.c.bf16 %v1144, %v1140
    %v1165 = vld [vmem:[#allocation3] sm:$0xff]
    %v1166 = vld [vmem:[#allocation3 + $0x8] sm:$0xff]
    %v1167 = vld [vmem:[#allocation3 + $0x10] sm:$0xff]
    %v1168 = vld [vmem:[#allocation3 + $0x18] sm:$0xff]
    %v1169 = vld [vmem:[#allocation3 + $0x20] sm:$0xff]
    %v1170 = vld [vmem:[#allocation3 + $0x28] sm:$0xff]
    %v1171 = vld [vmem:[#allocation3 + $0x30] sm:$0xff]
    %v1172 = vld [vmem:[#allocation3 + $0x38] sm:$0xff]
    %v1173 = vld [vmem:[#allocation3 + $0x40] sm:$0xff]
    %v1174 = vld [vmem:[#allocation3 + $0x48] sm:$0xff]
    %v1175 = vld [vmem:[#allocation3 + $0x50] sm:$0xff]
    %v1176 = vld [vmem:[#allocation3 + $0x58] sm:$0xff]
    %v1177 = vld [vmem:[#allocation3 + $0x60] sm:$0xff]
    %v1178 = vld [vmem:[#allocation3 + $0x68] sm:$0xff]
    %v1179 = vld [vmem:[#allocation3 + $0x70] sm:$0xff]
    %v1180 = vld [vmem:[#allocation3 + $0x78] sm:$0xff]
    %v1181 = vld [vmem:[#allocation3 + $0x80] sm:$0xff]
    %v1182 = vld [vmem:[#allocation3 + $0x88] sm:$0xff]
    %v1183 = vld [vmem:[#allocation3 + $0x90] sm:$0xff]
    %v1184 = vld [vmem:[#allocation3 + $0x98] sm:$0xff]
    %v1185 = vld [vmem:[#allocation3 + $0xa0] sm:$0xff]
    %v1186 = vld [vmem:[#allocation3 + $0xa8] sm:$0xff]
    %v1187 = vld [vmem:[#allocation3 + $0xb0] sm:$0xff]
    %v1188 = vld [vmem:[#allocation3 + $0xb8] sm:$0xff]
    %v1189 = vld [vmem:[#allocation3 + $0xc0] sm:$0xff]
    %v1190 = vld [vmem:[#allocation3 + $0xc8] sm:$0xff]
    %v1191 = vld [vmem:[#allocation3 + $0xd0] sm:$0xff]
    %v1192 = vld [vmem:[#allocation3 + $0xd8] sm:$0xff]
    %v1193 = vld [vmem:[#allocation3 + $0xe0] sm:$0xff]
    %v1194 = vld [vmem:[#allocation3 + $0xe8] sm:$0xff]
    %v1195 = vld [vmem:[#allocation3 + $0xf0] sm:$0xff]
    %v1196 = vld [vmem:[#allocation3 + $0xf8] sm:$0xff]
    %v1197 = vld [vmem:[#allocation3 + $0x100] sm:$0xff]
    %v1198 = vld [vmem:[#allocation3 + $0x108] sm:$0xff]
    %v1199 = vld [vmem:[#allocation3 + $0x110] sm:$0xff]
    %v1200 = vld [vmem:[#allocation3 + $0x118] sm:$0xff]
    %v1201 = vld [vmem:[#allocation3 + $0x120] sm:$0xff]
    %v1202 = vld [vmem:[#allocation3 + $0x128] sm:$0xff]
    %v1203 = vld [vmem:[#allocation3 + $0x130] sm:$0xff]
    %v1204 = vld [vmem:[#allocation3 + $0x138] sm:$0xff]
    %v1205 = vld [vmem:[#allocation3 + $0x140] sm:$0xff]
    %v1206 = vld [vmem:[#allocation3 + $0x148] sm:$0xff]
    %v1207 = vld [vmem:[#allocation3 + $0x150] sm:$0xff]
    %v1208 = vld [vmem:[#allocation3 + $0x158] sm:$0xff]
    %v1209 = vld [vmem:[#allocation3 + $0x160] sm:$0xff]
    %v1210 = vld [vmem:[#allocation3 + $0x168] sm:$0xff]
    %v1211 = vld [vmem:[#allocation3 + $0x170] sm:$0xff]
    %v1212 = vld [vmem:[#allocation3 + $0x178] sm:$0xff]
    %v1213 = vld [vmem:[#allocation3 + $0x180] sm:$0xff]
    %v1214 = vld [vmem:[#allocation3 + $0x188] sm:$0xff]
    %v1215 = vld [vmem:[#allocation3 + $0x190] sm:$0xff]
    %v1216 = vld [vmem:[#allocation3 + $0x198] sm:$0xff]
    %v1217 = vld [vmem:[#allocation3 + $0x1a0] sm:$0xff]
    %v1218 = vld [vmem:[#allocation3 + $0x1a8] sm:$0xff]
    %v1219 = vld [vmem:[#allocation3 + $0x1b0] sm:$0xff]
    %v1220 = vld [vmem:[#allocation3 + $0x1b8] sm:$0xff]
    %v1221 = vld [vmem:[#allocation3 + $0x1c0] sm:$0xff]
    %v1222 = vld [vmem:[#allocation3 + $0x1c8] sm:$0xff]
    %v1223 = vld [vmem:[#allocation3 + $0x1d0] sm:$0xff]
    %v1224 = vld [vmem:[#allocation3 + $0x1d8] sm:$0xff]
    %v1225 = vld [vmem:[#allocation3 + $0x1e0] sm:$0xff]
    %v1226 = vld [vmem:[#allocation3 + $0x1e8] sm:$0xff]
    %v1227 = vld [vmem:[#allocation3 + $0x1f0] sm:$0xff]
    %v1228 = vld [vmem:[#allocation3 + $0x1f8] sm:$0xff]
    %v1229 = vld [vmem:[#allocation3 + $0x200] sm:$0xff]
    %v1230 = vld [vmem:[#allocation3 + $0x208] sm:$0xff]
    %v1231 = vld [vmem:[#allocation3 + $0x210] sm:$0xff]
    %v1232 = vld [vmem:[#allocation3 + $0x218] sm:$0xff]
    %v1233 = vld [vmem:[#allocation3 + $0x220] sm:$0xff]
    %v1234 = vld [vmem:[#allocation3 + $0x228] sm:$0xff]
    %v1235 = vld [vmem:[#allocation3 + $0x230] sm:$0xff]
    %v1236 = vld [vmem:[#allocation3 + $0x238] sm:$0xff]
    %v1237 = vld [vmem:[#allocation3 + $0x240] sm:$0xff]
    %v1238 = vld [vmem:[#allocation3 + $0x248] sm:$0xff]
    %v1239 = vld [vmem:[#allocation3 + $0x250] sm:$0xff]
    %v1240 = vld [vmem:[#allocation3 + $0x258] sm:$0xff]
    %v1241 = vld [vmem:[#allocation3 + $0x260] sm:$0xff]
    %v1242 = vld [vmem:[#allocation3 + $0x268] sm:$0xff]
    %v1243 = vld [vmem:[#allocation3 + $0x270] sm:$0xff]
    %v1244 = vld [vmem:[#allocation3 + $0x278] sm:$0xff]
    %v1245 = vld [vmem:[#allocation3 + $0x280] sm:$0xff]
    %v1246 = vld [vmem:[#allocation3 + $0x288] sm:$0xff]
    %v1247 = vld [vmem:[#allocation3 + $0x290] sm:$0xff]
    %v1248 = vld [vmem:[#allocation3 + $0x298] sm:$0xff]
    %v1249 = vld [vmem:[#allocation3 + $0x2a0] sm:$0xff]
    %v1250 = vld [vmem:[#allocation3 + $0x2a8] sm:$0xff]
    %v1251 = vld [vmem:[#allocation3 + $0x2b0] sm:$0xff]
    %v1252 = vld [vmem:[#allocation3 + $0x2b8] sm:$0xff]
    %v1253 = vld [vmem:[#allocation3 + $0x2c0] sm:$0xff]
    %v1254 = vld [vmem:[#allocation3 + $0x2c8] sm:$0xff]
    %v1255 = vld [vmem:[#allocation3 + $0x2d0] sm:$0xff]
    %v1256 = vld [vmem:[#allocation3 + $0x2d8] sm:$0xff]
    %v1257 = vld [vmem:[#allocation3 + $0x2e0] sm:$0xff]
    %v1258 = vld [vmem:[#allocation3 + $0x2e8] sm:$0xff]
    %v1259 = vld [vmem:[#allocation3 + $0x2f0] sm:$0xff]
    %v1260 = vld [vmem:[#allocation3 + $0x2f8] sm:$0xff]
    %v1261 = vld [vmem:[#allocation3 + $0x300] sm:$0xff]
    %v1262 = vld [vmem:[#allocation3 + $0x308] sm:$0xff]
    %v1263 = vld [vmem:[#allocation3 + $0x310] sm:$0xff]
    %v1264 = vld [vmem:[#allocation3 + $0x318] sm:$0xff]
    %v1265 = vld [vmem:[#allocation3 + $0x320] sm:$0xff]
    %v1266 = vld [vmem:[#allocation3 + $0x328] sm:$0xff]
    %v1267 = vld [vmem:[#allocation3 + $0x330] sm:$0xff]
    %v1268 = vld [vmem:[#allocation3 + $0x338] sm:$0xff]
    %v1269 = vld [vmem:[#allocation3 + $0x340] sm:$0xff]
    %v1270 = vld [vmem:[#allocation3 + $0x348] sm:$0xff]
    %v1271 = vld [vmem:[#allocation3 + $0x350] sm:$0xff]
    %v1272 = vld [vmem:[#allocation3 + $0x358] sm:$0xff]
    %v1273 = vld [vmem:[#allocation3 + $0x360] sm:$0xff]
    %v1274 = vld [vmem:[#allocation3 + $0x368] sm:$0xff]
    %v1275 = vld [vmem:[#allocation3 + $0x370] sm:$0xff]
    %v1276 = vld [vmem:[#allocation3 + $0x378] sm:$0xff]
    %v1277 = vld [vmem:[#allocation3 + $0x380] sm:$0xff]
    %v1278 = vld [vmem:[#allocation3 + $0x388] sm:$0xff]
    %v1279 = vld [vmem:[#allocation3 + $0x390] sm:$0xff]
    %v1280 = vld [vmem:[#allocation3 + $0x398] sm:$0xff]
    %v1281 = vld [vmem:[#allocation3 + $0x3a0] sm:$0xff]
    %v1282 = vld [vmem:[#allocation3 + $0x3a8] sm:$0xff]
    %v1283 = vld [vmem:[#allocation3 + $0x3b0] sm:$0xff]
    %v1284 = vld [vmem:[#allocation3 + $0x3b8] sm:$0xff]
    %v1285 = vld [vmem:[#allocation3 + $0x3c0] sm:$0xff]
    %v1286 = vld [vmem:[#allocation3 + $0x3c8] sm:$0xff]
    %v1287 = vld [vmem:[#allocation3 + $0x3d0] sm:$0xff]
    %v1288 = vld [vmem:[#allocation3 + $0x3d8] sm:$0xff]
    %v1289 = vld [vmem:[#allocation3 + $0x3e0] sm:$0xff]
    %v1290 = vld [vmem:[#allocation3 + $0x3e8] sm:$0xff]
    %v1291 = vld [vmem:[#allocation3 + $0x3f0] sm:$0xff]
    %v1292 = vld [vmem:[#allocation3 + $0x3f8] sm:$0xff]
    %v1293 = vunpack.c.l.s8.bf16 %v1165
    %v1294 = vunpack.c.l.s8.bf16 %v1166
    %v1295 = vunpack.c.l.s8.bf16 %v1167
    %v1296 = vunpack.c.l.s8.bf16 %v1168
    %v1297 = vunpack.c.l.s8.bf16 %v1169
    %v1298 = vunpack.c.l.s8.bf16 %v1170
    %v1299 = vunpack.c.l.s8.bf16 %v1171
    %v1300 = vunpack.c.l.s8.bf16 %v1172
    %v1301 = vunpack.c.h.s8.bf16 %v1165
    %v1302 = vunpack.c.h.s8.bf16 %v1166
    %v1303 = vunpack.c.h.s8.bf16 %v1167
    %v1304 = vunpack.c.h.s8.bf16 %v1168
    %v1305 = vunpack.c.h.s8.bf16 %v1169
    %v1306 = vunpack.c.h.s8.bf16 %v1170
    %v1307 = vunpack.c.h.s8.bf16 %v1171
    %v1308 = vunpack.c.h.s8.bf16 %v1172
    %v1309 = vunpack.c.l.s8.bf16 %v1173
    %v1310 = vunpack.c.l.s8.bf16 %v1174
    %v1311 = vunpack.c.l.s8.bf16 %v1175
    %v1312 = vunpack.c.l.s8.bf16 %v1176
    %v1313 = vunpack.c.l.s8.bf16 %v1177
    %v1314 = vunpack.c.l.s8.bf16 %v1178
    %v1315 = vunpack.c.l.s8.bf16 %v1179
    %v1316 = vunpack.c.l.s8.bf16 %v1180
    %v1317 = vunpack.c.h.s8.bf16 %v1173
    %v1318 = vunpack.c.h.s8.bf16 %v1174
    %v1319 = vunpack.c.h.s8.bf16 %v1175
    %v1320 = vunpack.c.h.s8.bf16 %v1176
    %v1321 = vunpack.c.h.s8.bf16 %v1177
    %v1322 = vunpack.c.h.s8.bf16 %v1178
    %v1323 = vunpack.c.h.s8.bf16 %v1179
    %v1324 = vunpack.c.h.s8.bf16 %v1180
    %v1325 = vunpack.c.l.s8.bf16 %v1181
    %v1326 = vunpack.c.l.s8.bf16 %v1182
    %v1327 = vunpack.c.l.s8.bf16 %v1183
    %v1328 = vunpack.c.l.s8.bf16 %v1184
    %v1329 = vunpack.c.l.s8.bf16 %v1185
    %v1330 = vunpack.c.l.s8.bf16 %v1186
    %v1331 = vunpack.c.l.s8.bf16 %v1187
    %v1332 = vunpack.c.l.s8.bf16 %v1188
    %v1333 = vunpack.c.h.s8.bf16 %v1181
    %v1334 = vunpack.c.h.s8.bf16 %v1182
    %v1335 = vunpack.c.h.s8.bf16 %v1183
    %v1336 = vunpack.c.h.s8.bf16 %v1184
    %v1337 = vunpack.c.h.s8.bf16 %v1185
    %v1338 = vunpack.c.h.s8.bf16 %v1186
    %v1339 = vunpack.c.h.s8.bf16 %v1187
    %v1340 = vunpack.c.h.s8.bf16 %v1188
    %v1341 = vunpack.c.l.s8.bf16 %v1189
    %v1342 = vunpack.c.l.s8.bf16 %v1190
    %v1343 = vunpack.c.l.s8.bf16 %v1191
    %v1344 = vunpack.c.l.s8.bf16 %v1192
    %v1345 = vunpack.c.l.s8.bf16 %v1193
    %v1346 = vunpack.c.l.s8.bf16 %v1194
    %v1347 = vunpack.c.l.s8.bf16 %v1195
    %v1348 = vunpack.c.l.s8.bf16 %v1196
    %v1349 = vunpack.c.h.s8.bf16 %v1189
    %v1350 = vunpack.c.h.s8.bf16 %v1190
    %v1351 = vunpack.c.h.s8.bf16 %v1191
    %v1352 = vunpack.c.h.s8.bf16 %v1192
    %v1353 = vunpack.c.h.s8.bf16 %v1193
    %v1354 = vunpack.c.h.s8.bf16 %v1194
    %v1355 = vunpack.c.h.s8.bf16 %v1195
    %v1356 = vunpack.c.h.s8.bf16 %v1196
    %v1357 = vunpack.c.l.s8.bf16 %v1197
    %v1358 = vunpack.c.l.s8.bf16 %v1198
    %v1359 = vunpack.c.l.s8.bf16 %v1199
    %v1360 = vunpack.c.l.s8.bf16 %v1200
    %v1361 = vunpack.c.l.s8.bf16 %v1201
    %v1362 = vunpack.c.l.s8.bf16 %v1202
    %v1363 = vunpack.c.l.s8.bf16 %v1203
    %v1364 = vunpack.c.l.s8.bf16 %v1204
    %v1365 = vunpack.c.h.s8.bf16 %v1197
    %v1366 = vunpack.c.h.s8.bf16 %v1198
    %v1367 = vunpack.c.h.s8.bf16 %v1199
    %v1368 = vunpack.c.h.s8.bf16 %v1200
    %v1369 = vunpack.c.h.s8.bf16 %v1201
    %v1370 = vunpack.c.h.s8.bf16 %v1202
    %v1371 = vunpack.c.h.s8.bf16 %v1203
    %v1372 = vunpack.c.h.s8.bf16 %v1204
    %v1373 = vunpack.c.l.s8.bf16 %v1205
    %v1374 = vunpack.c.l.s8.bf16 %v1206
    %v1375 = vunpack.c.l.s8.bf16 %v1207
    %v1376 = vunpack.c.l.s8.bf16 %v1208
    %v1377 = vunpack.c.l.s8.bf16 %v1209
    %v1378 = vunpack.c.l.s8.bf16 %v1210
    %v1379 = vunpack.c.l.s8.bf16 %v1211
    %v1380 = vunpack.c.l.s8.bf16 %v1212
    %v1381 = vunpack.c.h.s8.bf16 %v1205
    %v1382 = vunpack.c.h.s8.bf16 %v1206
    %v1383 = vunpack.c.h.s8.bf16 %v1207
    %v1384 = vunpack.c.h.s8.bf16 %v1208
    %v1385 = vunpack.c.h.s8.bf16 %v1209
    %v1386 = vunpack.c.h.s8.bf16 %v1210
    %v1387 = vunpack.c.h.s8.bf16 %v1211
    %v1388 = vunpack.c.h.s8.bf16 %v1212
    %v1389 = vunpack.c.l.s8.bf16 %v1213
    %v1390 = vunpack.c.l.s8.bf16 %v1214
    %v1391 = vunpack.c.l.s8.bf16 %v1215
    %v1392 = vunpack.c.l.s8.bf16 %v1216
    %v1393 = vunpack.c.l.s8.bf16 %v1217
    %v1394 = vunpack.c.l.s8.bf16 %v1218
    %v1395 = vunpack.c.l.s8.bf16 %v1219
    %v1396 = vunpack.c.l.s8.bf16 %v1220
    %v1397 = vunpack.c.h.s8.bf16 %v1213
    %v1398 = vunpack.c.h.s8.bf16 %v1214
    %v1399 = vunpack.c.h.s8.bf16 %v1215
    %v1400 = vunpack.c.h.s8.bf16 %v1216
    %v1401 = vunpack.c.h.s8.bf16 %v1217
    %v1402 = vunpack.c.h.s8.bf16 %v1218
    %v1403 = vunpack.c.h.s8.bf16 %v1219
    %v1404 = vunpack.c.h.s8.bf16 %v1220
    %v1405 = vunpack.c.l.s8.bf16 %v1221
    %v1406 = vunpack.c.l.s8.bf16 %v1222
    %v1407 = vunpack.c.l.s8.bf16 %v1223
    %v1408 = vunpack.c.l.s8.bf16 %v1224
    %v1409 = vunpack.c.l.s8.bf16 %v1225
    %v1410 = vunpack.c.l.s8.bf16 %v1226
    %v1411 = vunpack.c.l.s8.bf16 %v1227
    %v1412 = vunpack.c.l.s8.bf16 %v1228
    %v1413 = vunpack.c.h.s8.bf16 %v1221
    %v1414 = vunpack.c.h.s8.bf16 %v1222
    %v1415 = vunpack.c.h.s8.bf16 %v1223
    %v1416 = vunpack.c.h.s8.bf16 %v1224
    %v1417 = vunpack.c.h.s8.bf16 %v1225
    %v1418 = vunpack.c.h.s8.bf16 %v1226
    %v1419 = vunpack.c.h.s8.bf16 %v1227
    %v1420 = vunpack.c.h.s8.bf16 %v1228
    %v1421 = vunpack.c.l.s8.bf16 %v1229
    %v1422 = vunpack.c.l.s8.bf16 %v1230
    %v1423 = vunpack.c.l.s8.bf16 %v1231
    %v1424 = vunpack.c.l.s8.bf16 %v1232
    %v1425 = vunpack.c.l.s8.bf16 %v1233
    %v1426 = vunpack.c.l.s8.bf16 %v1234
    %v1427 = vunpack.c.l.s8.bf16 %v1235
    %v1428 = vunpack.c.l.s8.bf16 %v1236
    %v1429 = vunpack.c.h.s8.bf16 %v1229
    %v1430 = vunpack.c.h.s8.bf16 %v1230
    %v1431 = vunpack.c.h.s8.bf16 %v1231
    %v1432 = vunpack.c.h.s8.bf16 %v1232
    %v1433 = vunpack.c.h.s8.bf16 %v1233
    %v1434 = vunpack.c.h.s8.bf16 %v1234
    %v1435 = vunpack.c.h.s8.bf16 %v1235
    %v1436 = vunpack.c.h.s8.bf16 %v1236
    %v1437 = vunpack.c.l.s8.bf16 %v1237
    %v1438 = vunpack.c.l.s8.bf16 %v1238
    %v1439 = vunpack.c.l.s8.bf16 %v1239
    %v1440 = vunpack.c.l.s8.bf16 %v1240
    %v1441 = vunpack.c.l.s8.bf16 %v1241
    %v1442 = vunpack.c.l.s8.bf16 %v1242
    %v1443 = vunpack.c.l.s8.bf16 %v1243
    %v1444 = vunpack.c.l.s8.bf16 %v1244
    %v1445 = vunpack.c.h.s8.bf16 %v1237
    %v1446 = vunpack.c.h.s8.bf16 %v1238
    %v1447 = vunpack.c.h.s8.bf16 %v1239
    %v1448 = vunpack.c.h.s8.bf16 %v1240
    %v1449 = vunpack.c.h.s8.bf16 %v1241
    %v1450 = vunpack.c.h.s8.bf16 %v1242
    %v1451 = vunpack.c.h.s8.bf16 %v1243
    %v1452 = vunpack.c.h.s8.bf16 %v1244
    %v1453 = vunpack.c.l.s8.bf16 %v1245
    %v1454 = vunpack.c.l.s8.bf16 %v1246
    %v1455 = vunpack.c.l.s8.bf16 %v1247
    %v1456 = vunpack.c.l.s8.bf16 %v1248
    %v1457 = vunpack.c.l.s8.bf16 %v1249
    %v1458 = vunpack.c.l.s8.bf16 %v1250
    %v1459 = vunpack.c.l.s8.bf16 %v1251
    %v1460 = vunpack.c.l.s8.bf16 %v1252
    %v1461 = vunpack.c.h.s8.bf16 %v1245
    %v1462 = vunpack.c.h.s8.bf16 %v1246
    %v1463 = vunpack.c.h.s8.bf16 %v1247
    %v1464 = vunpack.c.h.s8.bf16 %v1248
    %v1465 = vunpack.c.h.s8.bf16 %v1249
    %v1466 = vunpack.c.h.s8.bf16 %v1250
    %v1467 = vunpack.c.h.s8.bf16 %v1251
    %v1468 = vunpack.c.h.s8.bf16 %v1252
    %v1469 = vunpack.c.l.s8.bf16 %v1253
    %v1470 = vunpack.c.l.s8.bf16 %v1254
    %v1471 = vunpack.c.l.s8.bf16 %v1255
    %v1472 = vunpack.c.l.s8.bf16 %v1256
    %v1473 = vunpack.c.l.s8.bf16 %v1257
    %v1474 = vunpack.c.l.s8.bf16 %v1258
    %v1475 = vunpack.c.l.s8.bf16 %v1259
    %v1476 = vunpack.c.l.s8.bf16 %v1260
    %v1477 = vunpack.c.h.s8.bf16 %v1253
    %v1478 = vunpack.c.h.s8.bf16 %v1254
    %v1479 = vunpack.c.h.s8.bf16 %v1255
    %v1480 = vunpack.c.h.s8.bf16 %v1256
    %v1481 = vunpack.c.h.s8.bf16 %v1257
    %v1482 = vunpack.c.h.s8.bf16 %v1258
    %v1483 = vunpack.c.h.s8.bf16 %v1259
    %v1484 = vunpack.c.h.s8.bf16 %v1260
    %v1485 = vunpack.c.l.s8.bf16 %v1261
    %v1486 = vunpack.c.l.s8.bf16 %v1262
    %v1487 = vunpack.c.l.s8.bf16 %v1263
    %v1488 = vunpack.c.l.s8.bf16 %v1264
    %v1489 = vunpack.c.l.s8.bf16 %v1265
    %v1490 = vunpack.c.l.s8.bf16 %v1266
    %v1491 = vunpack.c.l.s8.bf16 %v1267
    %v1492 = vunpack.c.l.s8.bf16 %v1268
    %v1493 = vunpack.c.h.s8.bf16 %v1261
    %v1494 = vunpack.c.h.s8.bf16 %v1262
    %v1495 = vunpack.c.h.s8.bf16 %v1263
    %v1496 = vunpack.c.h.s8.bf16 %v1264
    %v1497 = vunpack.c.h.s8.bf16 %v1265
    %v1498 = vunpack.c.h.s8.bf16 %v1266
    %v1499 = vunpack.c.h.s8.bf16 %v1267
    %v1500 = vunpack.c.h.s8.bf16 %v1268
    %v1501 = vunpack.c.l.s8.bf16 %v1269
    %v1502 = vunpack.c.l.s8.bf16 %v1270
    %v1503 = vunpack.c.l.s8.bf16 %v1271
    %v1504 = vunpack.c.l.s8.bf16 %v1272
    %v1505 = vunpack.c.l.s8.bf16 %v1273
    %v1506 = vunpack.c.l.s8.bf16 %v1274
    %v1507 = vunpack.c.l.s8.bf16 %v1275
    %v1508 = vunpack.c.l.s8.bf16 %v1276
    %v1509 = vunpack.c.h.s8.bf16 %v1269
    %v1510 = vunpack.c.h.s8.bf16 %v1270
    %v1511 = vunpack.c.h.s8.bf16 %v1271
    %v1512 = vunpack.c.h.s8.bf16 %v1272
    %v1513 = vunpack.c.h.s8.bf16 %v1273
    %v1514 = vunpack.c.h.s8.bf16 %v1274
    %v1515 = vunpack.c.h.s8.bf16 %v1275
    %v1516 = vunpack.c.h.s8.bf16 %v1276
    %v1517 = vunpack.c.l.s8.bf16 %v1277
    %v1518 = vunpack.c.l.s8.bf16 %v1278
    %v1519 = vunpack.c.l.s8.bf16 %v1279
    %v1520 = vunpack.c.l.s8.bf16 %v1280
    %v1521 = vunpack.c.l.s8.bf16 %v1281
    %v1522 = vunpack.c.l.s8.bf16 %v1282
    %v1523 = vunpack.c.l.s8.bf16 %v1283
    %v1524 = vunpack.c.l.s8.bf16 %v1284
    %v1525 = vunpack.c.h.s8.bf16 %v1277
    %v1526 = vunpack.c.h.s8.bf16 %v1278
    %v1527 = vunpack.c.h.s8.bf16 %v1279
    %v1528 = vunpack.c.h.s8.bf16 %v1280
    %v1529 = vunpack.c.h.s8.bf16 %v1281
    %v1530 = vunpack.c.h.s8.bf16 %v1282
    %v1531 = vunpack.c.h.s8.bf16 %v1283
    %v1532 = vunpack.c.h.s8.bf16 %v1284
    %v1533 = vunpack.c.l.s8.bf16 %v1285
    %v1534 = vunpack.c.l.s8.bf16 %v1286
    %v1535 = vunpack.c.l.s8.bf16 %v1287
    %v1536 = vunpack.c.l.s8.bf16 %v1288
    %v1537 = vunpack.c.l.s8.bf16 %v1289
    %v1538 = vunpack.c.l.s8.bf16 %v1290
    %v1539 = vunpack.c.l.s8.bf16 %v1291
    %v1540 = vunpack.c.l.s8.bf16 %v1292
    %v1541 = vunpack.c.h.s8.bf16 %v1285
    %v1542 = vunpack.c.h.s8.bf16 %v1286
    %v1543 = vunpack.c.h.s8.bf16 %v1287
    %v1544 = vunpack.c.h.s8.bf16 %v1288
    %v1545 = vunpack.c.h.s8.bf16 %v1289
    %v1546 = vunpack.c.h.s8.bf16 %v1290
    %v1547 = vunpack.c.h.s8.bf16 %v1291
    %v1548 = vunpack.c.h.s8.bf16 %v1292
    %1549 = vmatprep.subr.bf16.mxu0 %v1294
    %1550 = vmatpush1.bf16.msra.mxu0 %v1293
    %1551 = vmatprep.subr.bf16.mxu0 %v1302
    %1552 = vmatpush1.bf16.msra.mxu0 %v1301
    %1553 = vmatprep.subr.bf16.mxu0 %v1310
    %1554 = vmatpush1.bf16.msra.mxu0 %v1309
    %1555 = vmatprep.subr.bf16.mxu0 %v1318
    %1556 = vmatpush1.bf16.msra.mxu0 %v1317
    %1557 = vmatprep.subr.bf16.mxu0 %v1326
    %1558 = vmatpush1.bf16.msra.mxu0 %v1325
    %1559 = vmatprep.subr.bf16.mxu0 %v1334
    %1560 = vmatpush1.bf16.msra.mxu0 %v1333
    %1561 = vmatprep.subr.bf16.mxu0 %v1342
    %1562 = vmatpush1.bf16.msra.mxu0 %v1341
    %1563 = vmatprep.subr.bf16.mxu0 %v1350
    %1564 = vmatpush1.bf16.msra.mxu0 %v1349
    %1565 = vmatprep.subr.bf16.mxu0 %v1358
    %1566 = vmatpush1.bf16.msra.mxu0 %v1357
    %1567 = vmatprep.subr.bf16.mxu0 %v1366
    %1568 = vmatpush1.bf16.msra.mxu0 %v1365
    %1569 = vmatprep.subr.bf16.mxu0 %v1374
    %1570 = vmatpush1.bf16.msra.mxu0 %v1373
    %1571 = vmatprep.subr.bf16.mxu0 %v1382
    %1572 = vmatpush1.bf16.msra.mxu0 %v1381
    %1573 = vmatprep.subr.bf16.mxu0 %v1390
    %1574 = vmatpush1.bf16.msra.mxu0 %v1389
    %1575 = vmatprep.subr.bf16.mxu0 %v1398
    %1576 = vmatpush1.bf16.msra.mxu0 %v1397
    %1577 = vmatprep.subr.bf16.mxu0 %v1406
    %1578 = vmatpush1.bf16.msra.mxu0 %v1405
    %1579 = vmatprep.subr.bf16.mxu0 %v1414
    %1580 = vmatpush1.bf16.msra.mxu0 %v1413
    %1581 = vmatprep.mubr.bf16.mxu0 %v1150
    %1582 = vmatmul.mubr.bf16.gmra.mrb[0].mxu0 %v1149
    %v1583 = vpop.f32.mrb[0].mxu0
    %v1584 = vadd.f32 0.0, %v1583
    %v1585 = vpop.f32.mrb[0].mxu0
    %v1586 = vadd.f32 0.0, %v1585
    %v1587 = vpop.f32.mrb[0].mxu0
    %v1588 = vadd.f32 0.0, %v1587
    %v1589 = vpop.f32.mrb[0].mxu0
    %v1590 = vadd.f32 0.0, %v1589
    %1591 = vmatprep.mubr.bf16.mxu0 %v1154
    %1592 = vmatmul.mubr.bf16.gmra.mrb[0].mxu0 %v1153
    %v1593 = vpop.f32.mrb[0].mxu0
    %v1594 = vadd.f32 0.0, %v1593
    %v1595 = vpop.f32.mrb[0].mxu0
    %v1596 = vadd.f32 0.0, %v1595
    %v1597 = vpop.f32.mrb[0].mxu0
    %v1598 = vadd.f32 0.0, %v1597
    %v1599 = vpop.f32.mrb[0].mxu0
    %v1600 = vadd.f32 0.0, %v1599
    %1601 = vmatprep.mubr.bf16.mxu0 %v1158
    %1602 = vmatmul.mubr.bf16.gmra.mrb[0].mxu0 %v1157
    %v1603 = vpop.f32.mrb[0].mxu0
    %v1604 = vadd.f32 0.0, %v1603
    %v1605 = vpop.f32.mrb[0].mxu0
    %v1606 = vadd.f32 0.0, %v1605
    %v1607 = vpop.f32.mrb[0].mxu0
    %v1608 = vadd.f32 0.0, %v1607
    %v1609 = vpop.f32.mrb[0].mxu0
    %v1610 = vadd.f32 0.0, %v1609
    %1611 = vmatprep.mubr.bf16.mxu0 %v1162
    %1612 = vmatmul.mubr.bf16.gmra.mrb[0].mxu0 %v1161
    %v1613 = vpop.f32.mrb[0].mxu0
    %v1614 = vadd.f32 0.0, %v1613
    %v1615 = vpop.f32.mrb[0].mxu0
    %v1616 = vadd.f32 0.0, %v1615
    %v1617 = vpop.f32.mrb[0].mxu0
    %v1618 = vadd.f32 0.0, %v1617
    %v1619 = vpop.f32.mrb[0].mxu0
    %v1620 = vadd.f32 0.0, %v1619
    %1621 = vdwg.mxu0
    %1622 = vmatprep.subr.bf16.mxu0 %v1422
    %1623 = vmatpush1.bf16.msra.mxu0 %v1421
    %1624 = vmatprep.subr.bf16.mxu0 %v1430
    %1625 = vmatpush1.bf16.msra.mxu0 %v1429
    %1626 = vmatprep.subr.bf16.mxu0 %v1438
    %1627 = vmatpush1.bf16.msra.mxu0 %v1437
    %1628 = vmatprep.subr.bf16.mxu0 %v1446
    %1629 = vmatpush1.bf16.msra.mxu0 %v1445
    %1630 = vmatprep.subr.bf16.mxu0 %v1454
    %1631 = vmatpush1.bf16.msra.mxu0 %v1453
    %1632 = vmatprep.subr.bf16.mxu0 %v1462
    %1633 = vmatpush1.bf16.msra.mxu0 %v1461
    %1634 = vmatprep.subr.bf16.mxu0 %v1470
    %1635 = vmatpush1.bf16.msra.mxu0 %v1469
    %1636 = vmatprep.subr.bf16.mxu0 %v1478
    %1637 = vmatpush1.bf16.msra.mxu0 %v1477
    %1638 = vmatprep.subr.bf16.mxu0 %v1486
    %1639 = vmatpush1.bf16.msra.mxu0 %v1485
    %1640 = vmatprep.subr.bf16.mxu0 %v1494
    %1641 = vmatpush1.bf16.msra.mxu0 %v1493
    %1642 = vmatprep.subr.bf16.mxu0 %v1502
    %1643 = vmatpush1.bf16.msra.mxu0 %v1501
    %1644 = vmatprep.subr.bf16.mxu0 %v1510
    %1645 = vmatpush1.bf16.msra.mxu0 %v1509
    %1646 = vmatprep.subr.bf16.mxu0 %v1518
    %1647 = vmatpush1.bf16.msra.mxu0 %v1517
    %1648 = vmatprep.subr.bf16.mxu0 %v1526
    %1649 = vmatpush1.bf16.msra.mxu0 %v1525
    %1650 = vmatprep.subr.bf16.mxu0 %v1534
    %1651 = vmatpush1.bf16.msra.mxu0 %v1533
    %1652 = vmatprep.subr.bf16.mxu0 %v1542
    %1653 = vmatpush1.bf16.msra.mxu0 %v1541
    %1654 = vmatprep.mubr.bf16.mxu0 %v1152
    %1655 = vmatmul.mubr.bf16.gmra.mrb[0].mxu0 %v1151
    %v1656 = vpop.f32.mrb[0].mxu0
    %v1657 = vadd.f32 %v1584, %v1656
    %v1658 = vpop.f32.mrb[0].mxu0
    %v1659 = vadd.f32 %v1586, %v1658
    %v1660 = vpop.f32.mrb[0].mxu0
    %v1661 = vadd.f32 %v1588, %v1660
    %v1662 = vpop.f32.mrb[0].mxu0
    %v1663 = vadd.f32 %v1590, %v1662
    %1664 = vmatprep.mubr.bf16.mxu0 %v1156
    %1665 = vmatmul.mubr.bf16.gmra.mrb[0].mxu0 %v1155
    %v1666 = vpop.f32.mrb[0].mxu0
    %v1667 = vadd.f32 %v1594, %v1666
    %v1668 = vpop.f32.mrb[0].mxu0
    %v1669 = vadd.f32 %v1596, %v1668
    %v1670 = vpop.f32.mrb[0].mxu0
    %v1671 = vadd.f32 %v1598, %v1670
    %v1672 = vpop.f32.mrb[0].mxu0
    %v1673 = vadd.f32 %v1600, %v1672
    %1674 = vmatprep.mubr.bf16.mxu0 %v1160
    %1675 = vmatmul.mubr.bf16.gmra.mrb[0].mxu0 %v1159
    %v1676 = vpop.f32.mrb[0].mxu0
    %v1677 = vadd.f32 %v1604, %v1676
    %v1678 = vpop.f32.mrb[0].mxu0
    %v1679 = vadd.f32 %v1606, %v1678
    %v1680 = vpop.f32.mrb[0].mxu0
    %v1681 = vadd.f32 %v1608, %v1680
    %v1682 = vpop.f32.mrb[0].mxu0
    %v1683 = vadd.f32 %v1610, %v1682
    %1684 = vmatprep.mubr.bf16.mxu0 %v1164
    %1685 = vmatmul.mubr.bf16.gmra.mrb[0].mxu0 %v1163
    %v1686 = vpop.f32.mrb[0].mxu0
    %v1687 = vadd.f32 %v1614, %v1686
    %v1688 = vpop.f32.mrb[0].mxu0
    %v1689 = vadd.f32 %v1616, %v1688
    %v1690 = vpop.f32.mrb[0].mxu0
    %v1691 = vadd.f32 %v1618, %v1690
    %v1692 = vpop.f32.mrb[0].mxu0
    %v1693 = vadd.f32 %v1620, %v1692
    %1694 = vdwg.mxu0
    %1695 = vmatprep.subr.bf16.mxu0 %v1296
    %1696 = vmatpush1.bf16.msra.mxu0 %v1295
    %1697 = vmatprep.subr.bf16.mxu0 %v1304
    %1698 = vmatpush1.bf16.msra.mxu0 %v1303
    %1699 = vmatprep.subr.bf16.mxu0 %v1312
    %1700 = vmatpush1.bf16.msra.mxu0 %v1311
    %1701 = vmatprep.subr.bf16.mxu0 %v1320
    %1702 = vmatpush1.bf16.msra.mxu0 %v1319
    %1703 = vmatprep.subr.bf16.mxu0 %v1328
    %1704 = vmatpush1.bf16.msra.mxu0 %v1327
    %1705 = vmatprep.subr.bf16.mxu0 %v1336
    %1706 = vmatpush1.bf16.msra.mxu0 %v1335
    %1707 = vmatprep.subr.bf16.mxu0 %v1344
    %1708 = vmatpush1.bf16.msra.mxu0 %v1343
    %1709 = vmatprep.subr.bf16.mxu0 %v1352
    %1710 = vmatpush1.bf16.msra.mxu0 %v1351
    %1711 = vmatprep.subr.bf16.mxu0 %v1360
    %1712 = vmatpush1.bf16.msra.mxu0 %v1359
    %1713 = vmatprep.subr.bf16.mxu0 %v1368
    %1714 = vmatpush1.bf16.msra.mxu0 %v1367
    %1715 = vmatprep.subr.bf16.mxu0 %v1376
    %1716 = vmatpush1.bf16.msra.mxu0 %v1375
    %1717 = vmatprep.subr.bf16.mxu0 %v1384
    %1718 = vmatpush1.bf16.msra.mxu0 %v1383
    %1719 = vmatprep.subr.bf16.mxu0 %v1392
    %1720 = vmatpush1.bf16.msra.mxu0 %v1391
    %1721 = vmatprep.subr.bf16.mxu0 %v1400
    %1722 = vmatpush1.bf16.msra.mxu0 %v1399
    %1723 = vmatprep.subr.bf16.mxu0 %v1408
    %1724 = vmatpush1.bf16.msra.mxu0 %v1407
    %1725 = vmatprep.subr.bf16.mxu0 %v1416
    %1726 = vmatpush1.bf16.msra.mxu0 %v1415
    %1727 = vmatprep.mubr.bf16.mxu0 %v1150
    %1728 = vmatmul.mubr.bf16.gmra.mrb[0].mxu0 %v1149
    %v1729 = vpop.f32.mrb[0].mxu0
    %v1730 = vadd.f32 0.0, %v1729
    %v1731 = vpop.f32.mrb[0].mxu0
    %v1732 = vadd.f32 0.0, %v1731
    %v1733 = vpop.f32.mrb[0].mxu0
    %v1734 = vadd.f32 0.0, %v1733
    %v1735 = vpop.f32.mrb[0].mxu0
    %v1736 = vadd.f32 0.0, %v1735
    %1737 = vmatprep.mubr.bf16.mxu0 %v1154
    %1738 = vmatmul.mubr.bf16.gmra.mrb[0].mxu0 %v1153
    %v1739 = vpop.f32.mrb[0].mxu0
    %v1740 = vadd.f32 0.0, %v1739
    %v1741 = vpop.f32.mrb[0].mxu0
    %v1742 = vadd.f32 0.0, %v1741
    %v1743 = vpop.f32.mrb[0].mxu0
    %v1744 = vadd.f32 0.0, %v1743
    %v1745 = vpop.f32.mrb[0].mxu0
    %v1746 = vadd.f32 0.0, %v1745
    %1747 = vmatprep.mubr.bf16.mxu0 %v1158
    %1748 = vmatmul.mubr.bf16.gmra.mrb[0].mxu0 %v1157
    %v1749 = vpop.f32.mrb[0].mxu0
    %v1750 = vadd.f32 0.0, %v1749
    %v1751 = vpop.f32.mrb[0].mxu0
    %v1752 = vadd.f32 0.0, %v1751
    %v1753 = vpop.f32.mrb[0].mxu0
    %v1754 = vadd.f32 0.0, %v1753
    %v1755 = vpop.f32.mrb[0].mxu0
    %v1756 = vadd.f32 0.0, %v1755
    %1757 = vmatprep.mubr.bf16.mxu0 %v1162
    %1758 = vmatmul.mubr.bf16.gmra.mrb[0].mxu0 %v1161
    %v1759 = vpop.f32.mrb[0].mxu0
    %v1760 = vadd.f32 0.0, %v1759
    %v1761 = vpop.f32.mrb[0].mxu0
    %v1762 = vadd.f32 0.0, %v1761
    %v1763 = vpop.f32.mrb[0].mxu0
    %v1764 = vadd.f32 0.0, %v1763
    %v1765 = vpop.f32.mrb[0].mxu0
    %v1766 = vadd.f32 0.0, %v1765
    %1767 = vdwg.mxu0
    %1768 = vmatprep.subr.bf16.mxu0 %v1424
    %1769 = vmatpush1.bf16.msra.mxu0 %v1423
    %1770 = vmatprep.subr.bf16.mxu0 %v1432
    %1771 = vmatpush1.bf16.msra.mxu0 %v1431
    %1772 = vmatprep.subr.bf16.mxu0 %v1440
    %1773 = vmatpush1.bf16.msra.mxu0 %v1439
    %1774 = vmatprep.subr.bf16.mxu0 %v1448
    %1775 = vmatpush1.bf16.msra.mxu0 %v1447
    %1776 = vmatprep.subr.bf16.mxu0 %v1456
    %1777 = vmatpush1.bf16.msra.mxu0 %v1455
    %1778 = vmatprep.subr.bf16.mxu0 %v1464
    %1779 = vmatpush1.bf16.msra.mxu0 %v1463
    %1780 = vmatprep.subr.bf16.mxu0 %v1472
    %1781 = vmatpush1.bf16.msra.mxu0 %v1471
    %1782 = vmatprep.subr.bf16.mxu0 %v1480
    %1783 = vmatpush1.bf16.msra.mxu0 %v1479
    %1784 = vmatprep.subr.bf16.mxu0 %v1488
    %1785 = vmatpush1.bf16.msra.mxu0 %v1487
    %1786 = vmatprep.subr.bf16.mxu0 %v1496
    %1787 = vmatpush1.bf16.msra.mxu0 %v1495
    %1788 = vmatprep.subr.bf16.mxu0 %v1504
    %1789 = vmatpush1.bf16.msra.mxu0 %v1503
    %1790 = vmatprep.subr.bf16.mxu0 %v1512
    %1791 = vmatpush1.bf16.msra.mxu0 %v1511
    %1792 = vmatprep.subr.bf16.mxu0 %v1520
    %1793 = vmatpush1.bf16.msra.mxu0 %v1519
    %1794 = vmatprep.subr.bf16.mxu0 %v1528
    %1795 = vmatpush1.bf16.msra.mxu0 %v1527
    %1796 = vmatprep.subr.bf16.mxu0 %v1536
    %1797 = vmatpush1.bf16.msra.mxu0 %v1535
    %1798 = vmatprep.subr.bf16.mxu0 %v1544
    %1799 = vmatpush1.bf16.msra.mxu0 %v1543
    %1800 = vmatprep.mubr.bf16.mxu0 %v1152
    %1801 = vmatmul.mubr.bf16.gmra.mrb[0].mxu0 %v1151
    %v1802 = vpop.f32.mrb[0].mxu0
    %v1803 = vadd.f32 %v1730, %v1802
    %v1804 = vpop.f32.mrb[0].mxu0
    %v1805 = vadd.f32 %v1732, %v1804
    %v1806 = vpop.f32.mrb[0].mxu0
    %v1807 = vadd.f32 %v1734, %v1806
    %v1808 = vpop.f32.mrb[0].mxu0
    %v1809 = vadd.f32 %v1736, %v1808
    %1810 = vmatprep.mubr.bf16.mxu0 %v1156
    %1811 = vmatmul.mubr.bf16.gmra.mrb[0].mxu0 %v1155
    %v1812 = vpop.f32.mrb[0].mxu0
    %v1813 = vadd.f32 %v1740, %v1812
    %v1814 = vpop.f32.mrb[0].mxu0
    %v1815 = vadd.f32 %v1742, %v1814
    %v1816 = vpop.f32.mrb[0].mxu0
    %v1817 = vadd.f32 %v1744, %v1816
    %v1818 = vpop.f32.mrb[0].mxu0
    %v1819 = vadd.f32 %v1746, %v1818
    %1820 = vmatprep.mubr.bf16.mxu0 %v1160
    %1821 = vmatmul.mubr.bf16.gmra.mrb[0].mxu0 %v1159
    %v1822 = vpop.f32.mrb[0].mxu0
    %v1823 = vadd.f32 %v1750, %v1822
    %v1824 = vpop.f32.mrb[0].mxu0
    %v1825 = vadd.f32 %v1752, %v1824
    %v1826 = vpop.f32.mrb[0].mxu0
    %v1827 = vadd.f32 %v1754, %v1826
    %v1828 = vpop.f32.mrb[0].mxu0
    %v1829 = vadd.f32 %v1756, %v1828
    %1830 = vmatprep.mubr.bf16.mxu0 %v1164
    %1831 = vmatmul.mubr.bf16.gmra.mrb[0].mxu0 %v1163
    %v1832 = vpop.f32.mrb[0].mxu0
    %v1833 = vadd.f32 %v1760, %v1832
    %v1834 = vpop.f32.mrb[0].mxu0
    %v1835 = vadd.f32 %v1762, %v1834
    %v1836 = vpop.f32.mrb[0].mxu0
    %v1837 = vadd.f32 %v1764, %v1836
    %v1838 = vpop.f32.mrb[0].mxu0
    %v1839 = vadd.f32 %v1766, %v1838
    %1840 = vdwg.mxu0
    %1841 = vmatprep.subr.bf16.mxu0 %v1298
    %1842 = vmatpush1.bf16.msra.mxu0 %v1297
    %1843 = vmatprep.subr.bf16.mxu0 %v1306
    %1844 = vmatpush1.bf16.msra.mxu0 %v1305
    %1845 = vmatprep.subr.bf16.mxu0 %v1314
    %1846 = vmatpush1.bf16.msra.mxu0 %v1313
    %1847 = vmatprep.subr.bf16.mxu0 %v1322
    %1848 = vmatpush1.bf16.msra.mxu0 %v1321
    %1849 = vmatprep.subr.bf16.mxu0 %v1330
    %1850 = vmatpush1.bf16.msra.mxu0 %v1329
    %1851 = vmatprep.subr.bf16.mxu0 %v1338
    %1852 = vmatpush1.bf16.msra.mxu0 %v1337
    %1853 = vmatprep.subr.bf16.mxu0 %v1346
    %1854 = vmatpush1.bf16.msra.mxu0 %v1345
    %1855 = vmatprep.subr.bf16.mxu0 %v1354
    %1856 = vmatpush1.bf16.msra.mxu0 %v1353
    %1857 = vmatprep.subr.bf16.mxu0 %v1362
    %1858 = vmatpush1.bf16.msra.mxu0 %v1361
    %1859 = vmatprep.subr.bf16.mxu0 %v1370
    %1860 = vmatpush1.bf16.msra.mxu0 %v1369
    %1861 = vmatprep.subr.bf16.mxu0 %v1378
    %1862 = vmatpush1.bf16.msra.mxu0 %v1377
    %1863 = vmatprep.subr.bf16.mxu0 %v1386
    %1864 = vmatpush1.bf16.msra.mxu0 %v1385
    %1865 = vmatprep.subr.bf16.mxu0 %v1394
    %1866 = vmatpush1.bf16.msra.mxu0 %v1393
    %1867 = vmatprep.subr.bf16.mxu0 %v1402
    %1868 = vmatpush1.bf16.msra.mxu0 %v1401
    %1869 = vmatprep.subr.bf16.mxu0 %v1410
    %1870 = vmatpush1.bf16.msra.mxu0 %v1409
    %1871 = vmatprep.subr.bf16.mxu0 %v1418
    %1872 = vmatpush1.bf16.msra.mxu0 %v1417
    %1873 = vmatprep.mubr.bf16.mxu0 %v1150
    %1874 = vmatmul.mubr.bf16.gmra.mrb[0].mxu0 %v1149
    %v1875 = vpop.f32.mrb[0].mxu0
    %v1876 = vadd.f32 0.0, %v1875
    %v1877 = vpop.f32.mrb[0].mxu0
    %v1878 = vadd.f32 0.0, %v1877
    %v1879 = vpop.f32.mrb[0].mxu0
    %v1880 = vadd.f32 0.0, %v1879
    %v1881 = vpop.f32.mrb[0].mxu0
    %v1882 = vadd.f32 0.0, %v1881
    %1883 = vmatprep.mubr.bf16.mxu0 %v1154
    %1884 = vmatmul.mubr.bf16.gmra.mrb[0].mxu0 %v1153
    %v1885 = vpop.f32.mrb[0].mxu0
    %v1886 = vadd.f32 0.0, %v1885
    %v1887 = vpop.f32.mrb[0].mxu0
    %v1888 = vadd.f32 0.0, %v1887
    %v1889 = vpop.f32.mrb[0].mxu0
    %v1890 = vadd.f32 0.0, %v1889
    %v1891 = vpop.f32.mrb[0].mxu0
    %v1892 = vadd.f32 0.0, %v1891
    %1893 = vmatprep.mubr.bf16.mxu0 %v1158
    %1894 = vmatmul.mubr.bf16.gmra.mrb[0].mxu0 %v1157
    %v1895 = vpop.f32.mrb[0].mxu0
    %v1896 = vadd.f32 0.0, %v1895
    %v1897 = vpop.f32.mrb[0].mxu0
    %v1898 = vadd.f32 0.0, %v1897
    %v1899 = vpop.f32.mrb[0].mxu0
    %v1900 = vadd.f32 0.0, %v1899
    %v1901 = vpop.f32.mrb[0].mxu0
    %v1902 = vadd.f32 0.0, %v1901
    %1903 = vmatprep.mubr.bf16.mxu0 %v1162
    %1904 = vmatmul.mubr.bf16.gmra.mrb[0].mxu0 %v1161
    %v1905 = vpop.f32.mrb[0].mxu0
    %v1906 = vadd.f32 0.0, %v1905
    %v1907 = vpop.f32.mrb[0].mxu0
    %v1908 = vadd.f32 0.0, %v1907
    %v1909 = vpop.f32.mrb[0].mxu0
    %v1910 = vadd.f32 0.0, %v1909
    %v1911 = vpop.f32.mrb[0].mxu0
    %v1912 = vadd.f32 0.0, %v1911
    %1913 = vdwg.mxu0
    %1914 = vmatprep.subr.bf16.mxu0 %v1426
    %1915 = vmatpush1.bf16.msra.mxu0 %v1425
    %1916 = vmatprep.subr.bf16.mxu0 %v1434
    %1917 = vmatpush1.bf16.msra.mxu0 %v1433
    %1918 = vmatprep.subr.bf16.mxu0 %v1442
    %1919 = vmatpush1.bf16.msra.mxu0 %v1441
    %1920 = vmatprep.subr.bf16.mxu0 %v1450
    %1921 = vmatpush1.bf16.msra.mxu0 %v1449
    %1922 = vmatprep.subr.bf16.mxu0 %v1458
    %1923 = vmatpush1.bf16.msra.mxu0 %v1457
    %1924 = vmatprep.subr.bf16.mxu0 %v1466
    %1925 = vmatpush1.bf16.msra.mxu0 %v1465
    %1926 = vmatprep.subr.bf16.mxu0 %v1474
    %1927 = vmatpush1.bf16.msra.mxu0 %v1473
    %1928 = vmatprep.subr.bf16.mxu0 %v1482
    %1929 = vmatpush1.bf16.msra.mxu0 %v1481
    %1930 = vmatprep.subr.bf16.mxu0 %v1490
    %1931 = vmatpush1.bf16.msra.mxu0 %v1489
    %1932 = vmatprep.subr.bf16.mxu0 %v1498
    %1933 = vmatpush1.bf16.msra.mxu0 %v1497
    %1934 = vmatprep.subr.bf16.mxu0 %v1506
    %1935 = vmatpush1.bf16.msra.mxu0 %v1505
    %1936 = vmatprep.subr.bf16.mxu0 %v1514
    %1937 = vmatpush1.bf16.msra.mxu0 %v1513
    %1938 = vmatprep.subr.bf16.mxu0 %v1522
    %1939 = vmatpush1.bf16.msra.mxu0 %v1521
    %1940 = vmatprep.subr.bf16.mxu0 %v1530
    %1941 = vmatpush1.bf16.msra.mxu0 %v1529
    %1942 = vmatprep.subr.bf16.mxu0 %v1538
    %1943 = vmatpush1.bf16.msra.mxu0 %v1537
    %1944 = vmatprep.subr.bf16.mxu0 %v1546
    %1945 = vmatpush1.bf16.msra.mxu0 %v1545
    %1946 = vmatprep.mubr.bf16.mxu0 %v1152
    %1947 = vmatmul.mubr.bf16.gmra.mrb[0].mxu0 %v1151
    %v1948 = vpop.f32.mrb[0].mxu0
    %v1949 = vadd.f32 %v1876, %v1948
    %v1950 = vpop.f32.mrb[0].mxu0
    %v1951 = vadd.f32 %v1878, %v1950
    %v1952 = vpop.f32.mrb[0].mxu0
    %v1953 = vadd.f32 %v1880, %v1952
    %v1954 = vpop.f32.mrb[0].mxu0
    %v1955 = vadd.f32 %v1882, %v1954
    %1956 = vmatprep.mubr.bf16.mxu0 %v1156
    %1957 = vmatmul.mubr.bf16.gmra.mrb[0].mxu0 %v1155
    %v1958 = vpop.f32.mrb[0].mxu0
    %v1959 = vadd.f32 %v1886, %v1958
    %v1960 = vpop.f32.mrb[0].mxu0
    %v1961 = vadd.f32 %v1888, %v1960
    %v1962 = vpop.f32.mrb[0].mxu0
    %v1963 = vadd.f32 %v1890, %v1962
    %v1964 = vpop.f32.mrb[0].mxu0
    %v1965 = vadd.f32 %v1892, %v1964
    %1966 = vmatprep.mubr.bf16.mxu0 %v1160
    %1967 = vmatmul.mubr.bf16.gmra.mrb[0].mxu0 %v1159
    %v1968 = vpop.f32.mrb[0].mxu0
    %v1969 = vadd.f32 %v1896, %v1968
    %v1970 = vpop.f32.mrb[0].mxu0
    %v1971 = vadd.f32 %v1898, %v1970
    %v1972 = vpop.f32.mrb[0].mxu0
    %v1973 = vadd.f32 %v1900, %v1972
    %v1974 = vpop.f32.mrb[0].mxu0
    %v1975 = vadd.f32 %v1902, %v1974
    %1976 = vmatprep.mubr.bf16.mxu0 %v1164
    %1977 = vmatmul.mubr.bf16.gmra.mrb[0].mxu0 %v1163
    %v1978 = vpop.f32.mrb[0].mxu0
    %v1979 = vadd.f32 %v1906, %v1978
    %v1980 = vpop.f32.mrb[0].mxu0
    %v1981 = vadd.f32 %v1908, %v1980
    %v1982 = vpop.f32.mrb[0].mxu0
    %v1983 = vadd.f32 %v1910, %v1982
    %v1984 = vpop.f32.mrb[0].mxu0
    %v1985 = vadd.f32 %v1912, %v1984
    %1986 = vdwg.mxu0
    %1987 = vmatprep.subr.bf16.mxu0 %v1300
    %1988 = vmatpush1.bf16.msra.mxu0 %v1299
    %1989 = vmatprep.subr.bf16.mxu0 %v1308
    %1990 = vmatpush1.bf16.msra.mxu0 %v1307
    %1991 = vmatprep.subr.bf16.mxu0 %v1316
    %1992 = vmatpush1.bf16.msra.mxu0 %v1315
    %1993 = vmatprep.subr.bf16.mxu0 %v1324
    %1994 = vmatpush1.bf16.msra.mxu0 %v1323
    %1995 = vmatprep.subr.bf16.mxu0 %v1332
    %1996 = vmatpush1.bf16.msra.mxu0 %v1331
    %1997 = vmatprep.subr.bf16.mxu0 %v1340
    %1998 = vmatpush1.bf16.msra.mxu0 %v1339
    %1999 = vmatprep.subr.bf16.mxu0 %v1348
    %2000 = vmatpush1.bf16.msra.mxu0 %v1347
    %2001 = vmatprep.subr.bf16.mxu0 %v1356
    %2002 = vmatpush1.bf16.msra.mxu0 %v1355
    %2003 = vmatprep.subr.bf16.mxu0 %v1364
    %2004 = vmatpush1.bf16.msra.mxu0 %v1363
    %2005 = vmatprep.subr.bf16.mxu0 %v1372
    %2006 = vmatpush1.bf16.msra.mxu0 %v1371
    %2007 = vmatprep.subr.bf16.mxu0 %v1380
    %2008 = vmatpush1.bf16.msra.mxu0 %v1379
    %2009 = vmatprep.subr.bf16.mxu0 %v1388
    %2010 = vmatpush1.bf16.msra.mxu0 %v1387
    %2011 = vmatprep.subr.bf16.mxu0 %v1396
    %2012 = vmatpush1.bf16.msra.mxu0 %v1395
    %2013 = vmatprep.subr.bf16.mxu0 %v1404
    %2014 = vmatpush1.bf16.msra.mxu0 %v1403
    %2015 = vmatprep.subr.bf16.mxu0 %v1412
    %2016 = vmatpush1.bf16.msra.mxu0 %v1411
    %2017 = vmatprep.subr.bf16.mxu0 %v1420
    %2018 = vmatpush1.bf16.msra.mxu0 %v1419
    %2019 = vmatprep.mubr.bf16.mxu0 %v1150
    %2020 = vmatmul.mubr.bf16.gmra.mrb[0].mxu0 %v1149
    %v2021 = vpop.f32.mrb[0].mxu0
    %v2022 = vadd.f32 0.0, %v2021
    %v2023 = vpop.f32.mrb[0].mxu0
    %v2024 = vadd.f32 0.0, %v2023
    %v2025 = vpop.f32.mrb[0].mxu0
    %v2026 = vadd.f32 0.0, %v2025
    %v2027 = vpop.f32.mrb[0].mxu0
    %v2028 = vadd.f32 0.0, %v2027
    %2029 = vmatprep.mubr.bf16.mxu0 %v1154
    %2030 = vmatmul.mubr.bf16.gmra.mrb[0].mxu0 %v1153
    %v2031 = vpop.f32.mrb[0].mxu0
    %v2032 = vadd.f32 0.0, %v2031
    %v2033 = vpop.f32.mrb[0].mxu0
    %v2034 = vadd.f32 0.0, %v2033
    %v2035 = vpop.f32.mrb[0].mxu0
    %v2036 = vadd.f32 0.0, %v2035
    %v2037 = vpop.f32.mrb[0].mxu0
    %v2038 = vadd.f32 0.0, %v2037
    %2039 = vmatprep.mubr.bf16.mxu0 %v1158
    %2040 = vmatmul.mubr.bf16.gmra.mrb[0].mxu0 %v1157
    %v2041 = vpop.f32.mrb[0].mxu0
    %v2042 = vadd.f32 0.0, %v2041
    %v2043 = vpop.f32.mrb[0].mxu0
    %v2044 = vadd.f32 0.0, %v2043
    %v2045 = vpop.f32.mrb[0].mxu0
    %v2046 = vadd.f32 0.0, %v2045
    %v2047 = vpop.f32.mrb[0].mxu0
    %v2048 = vadd.f32 0.0, %v2047
    %2049 = vmatprep.mubr.bf16.mxu0 %v1162
    %2050 = vmatmul.mubr.bf16.gmra.mrb[0].mxu0 %v1161
    %v2051 = vpop.f32.mrb[0].mxu0
    %v2052 = vadd.f32 0.0, %v2051
    %v2053 = vpop.f32.mrb[0].mxu0
    %v2054 = vadd.f32 0.0, %v2053
    %v2055 = vpop.f32.mrb[0].mxu0
    %v2056 = vadd.f32 0.0, %v2055
    %v2057 = vpop.f32.mrb[0].mxu0
    %v2058 = vadd.f32 0.0, %v2057
    %2059 = vdwg.mxu0
    %2060 = vmatprep.subr.bf16.mxu0 %v1428
    %2061 = vmatpush1.bf16.msra.mxu0 %v1427
    %2062 = vmatprep.subr.bf16.mxu0 %v1436
    %2063 = vmatpush1.bf16.msra.mxu0 %v1435
    %2064 = vmatprep.subr.bf16.mxu0 %v1444
    %2065 = vmatpush1.bf16.msra.mxu0 %v1443
    %2066 = vmatprep.subr.bf16.mxu0 %v1452
    %2067 = vmatpush1.bf16.msra.mxu0 %v1451
    %2068 = vmatprep.subr.bf16.mxu0 %v1460
    %2069 = vmatpush1.bf16.msra.mxu0 %v1459
    %2070 = vmatprep.subr.bf16.mxu0 %v1468
    %2071 = vmatpush1.bf16.msra.mxu0 %v1467
    %2072 = vmatprep.subr.bf16.mxu0 %v1476
    %2073 = vmatpush1.bf16.msra.mxu0 %v1475
    %2074 = vmatprep.subr.bf16.mxu0 %v1484
    %2075 = vmatpush1.bf16.msra.mxu0 %v1483
    %2076 = vmatprep.subr.bf16.mxu0 %v1492
    %2077 = vmatpush1.bf16.msra.mxu0 %v1491
    %2078 = vmatprep.subr.bf16.mxu0 %v1500
    %2079 = vmatpush1.bf16.msra.mxu0 %v1499
    %2080 = vmatprep.subr.bf16.mxu0 %v1508
    %2081 = vmatpush1.bf16.msra.mxu0 %v1507
    %2082 = vmatprep.subr.bf16.mxu0 %v1516
    %2083 = vmatpush1.bf16.msra.mxu0 %v1515
    %2084 = vmatprep.subr.bf16.mxu0 %v1524
    %2085 = vmatpush1.bf16.msra.mxu0 %v1523
    %2086 = vmatprep.subr.bf16.mxu0 %v1532
    %2087 = vmatpush1.bf16.msra.mxu0 %v1531
    %2088 = vmatprep.subr.bf16.mxu0 %v1540
    %2089 = vmatpush1.bf16.msra.mxu0 %v1539
    %2090 = vmatprep.subr.bf16.mxu0 %v1548
    %2091 = vmatpush1.bf16.msra.mxu0 %v1547
    %2092 = vmatprep.mubr.bf16.mxu0 %v1152
    %2093 = vmatmul.mubr.bf16.gmra.mrb[0].mxu0 %v1151
    %v2094 = vpop.f32.mrb[0].mxu0
    %v2095 = vadd.f32 %v2022, %v2094
    %v2096 = vpop.f32.mrb[0].mxu0
    %v2097 = vadd.f32 %v2024, %v2096
    %v2098 = vpop.f32.mrb[0].mxu0
    %v2099 = vadd.f32 %v2026, %v2098
    %v2100 = vpop.f32.mrb[0].mxu0
    %v2101 = vadd.f32 %v2028, %v2100
    %2102 = vmatprep.mubr.bf16.mxu0 %v1156
    %2103 = vmatmul.mubr.bf16.gmra.mrb[0].mxu0 %v1155
    %v2104 = vpop.f32.mrb[0].mxu0
    %v2105 = vadd.f32 %v2032, %v2104
    %v2106 = vpop.f32.mrb[0].mxu0
    %v2107 = vadd.f32 %v2034, %v2106
    %v2108 = vpop.f32.mrb[0].mxu0
    %v2109 = vadd.f32 %v2036, %v2108
    %v2110 = vpop.f32.mrb[0].mxu0
    %v2111 = vadd.f32 %v2038, %v2110
    %2112 = vmatprep.mubr.bf16.mxu0 %v1160
    %2113 = vmatmul.mubr.bf16.gmra.mrb[0].mxu0 %v1159
    %v2114 = vpop.f32.mrb[0].mxu0
    %v2115 = vadd.f32 %v2042, %v2114
    %v2116 = vpop.f32.mrb[0].mxu0
    %v2117 = vadd.f32 %v2044, %v2116
    %v2118 = vpop.f32.mrb[0].mxu0
    %v2119 = vadd.f32 %v2046, %v2118
    %v2120 = vpop.f32.mrb[0].mxu0
    %v2121 = vadd.f32 %v2048, %v2120
    %2122 = vmatprep.mubr.bf16.mxu0 %v1164
    %2123 = vmatmul.mubr.bf16.gmra.mrb[0].mxu0 %v1163
    %v2124 = vpop.f32.mrb[0].mxu0
    %v2125 = vadd.f32 %v2052, %v2124
    %v2126 = vpop.f32.mrb[0].mxu0
    %v2127 = vadd.f32 %v2054, %v2126
    %v2128 = vpop.f32.mrb[0].mxu0
    %v2129 = vadd.f32 %v2056, %v2128
    %v2130 = vpop.f32.mrb[0].mxu0
    %v2131 = vadd.f32 %v2058, %v2130
    %2132 = vdwg.mxu0
    %s2133 = scalar_lea.vmem %s4, 6
    %v2134 = vld [vmem:[%s2133] ss:$8 sm:$0xf]
    %v2135 = vld [vmem:[%s2133] ss:$8 sm:$0xf0]
    %v2136 = vor.u32 %v2134, %v2135
    %s2137 = scalar_lea.vmem %s4, 7
    %v2138 = vld [vmem:[%s2137] ss:$8 sm:$0xf]
    %v2139 = vld [vmem:[%s2137] ss:$8 sm:$0xf0]
    %v2140 = vor.u32 %v2138, %v2139
    %s2141 = scalar_lea.vmem %s4, 64
    %v2142 = vld [vmem:[%s2141] ss:$8 sm:$0xf]
    %v2143 = vld [vmem:[%s2141] ss:$8 sm:$0xf0]
    %v2144 = vor.u32 %v2142, %v2143
    %v2145 = vadd.f32 %v1657, %v1661
    %v2146 = vadd.f32 %v2145, %v1667
    %v2147 = vadd.f32 %v2146, %v1671
    %v2148 = vadd.f32 %v2147, %v1677
    %v2149 = vadd.f32 %v2148, %v1681
    %v2150 = vadd.f32 %v2149, %v1687
    %v2151 = vadd.f32 %v2150, %v1691
    %v2152 = vrot.slane %v2151, 4
    %v2153 = vadd.f32 %v2151, %v2152
    %v2154 = vrot.slane %v2153, 2
    %v2155 = vadd.f32 %v2153, %v2154
    %v2156 = vrot.slane %v2155, 1
    %v2157 = vadd.f32 %v2155, %v2156
    %v2158 = vadd.f32 %v1659, %v1663
    %v2159 = vadd.f32 %v2158, %v1669
    %v2160 = vadd.f32 %v2159, %v1673
    %v2161 = vadd.f32 %v2160, %v1679
    %v2162 = vadd.f32 %v2161, %v1683
    %v2163 = vadd.f32 %v2162, %v1689
    %v2164 = vadd.f32 %v2163, %v1693
    %v2165 = vrot.slane %v2164, 4
    %v2166 = vadd.f32 %v2164, %v2165
    %v2167 = vrot.slane %v2166, 2
    %v2168 = vadd.f32 %v2166, %v2167
    %v2169 = vrot.slane %v2168, 1
    %v2170 = vadd.f32 %v2168, %v2169
    %v2171 = vadd.f32 %v1803, %v1807
    %v2172 = vadd.f32 %v2171, %v1813
    %v2173 = vadd.f32 %v2172, %v1817
    %v2174 = vadd.f32 %v2173, %v1823
    %v2175 = vadd.f32 %v2174, %v1827
    %v2176 = vadd.f32 %v2175, %v1833
    %v2177 = vadd.f32 %v2176, %v1837
    %v2178 = vrot.slane %v2177, 4
    %v2179 = vadd.f32 %v2177, %v2178
    %v2180 = vrot.slane %v2179, 2
    %v2181 = vadd.f32 %v2179, %v2180
    %v2182 = vrot.slane %v2181, 1
    %v2183 = vadd.f32 %v2181, %v2182
    %v2184 = vadd.f32 %v1805, %v1809
    %v2185 = vadd.f32 %v2184, %v1815
    %v2186 = vadd.f32 %v2185, %v1819
    %v2187 = vadd.f32 %v2186, %v1825
    %v2188 = vadd.f32 %v2187, %v1829
    %v2189 = vadd.f32 %v2188, %v1835
    %v2190 = vadd.f32 %v2189, %v1839
    %v2191 = vrot.slane %v2190, 4
    %v2192 = vadd.f32 %v2190, %v2191
    %v2193 = vrot.slane %v2192, 2
    %v2194 = vadd.f32 %v2192, %v2193
    %v2195 = vrot.slane %v2194, 1
    %v2196 = vadd.f32 %v2194, %v2195
    %v2197 = vadd.f32 %v1949, %v1953
    %v2198 = vadd.f32 %v2197, %v1959
    %v2199 = vadd.f32 %v2198, %v1963
    %v2200 = vadd.f32 %v2199, %v1969
    %v2201 = vadd.f32 %v2200, %v1973
    %v2202 = vadd.f32 %v2201, %v1979
    %v2203 = vadd.f32 %v2202, %v1983
    %v2204 = vrot.slane %v2203, 4
    %v2205 = vadd.f32 %v2203, %v2204
    %v2206 = vrot.slane %v2205, 2
    %v2207 = vadd.f32 %v2205, %v2206
    %v2208 = vrot.slane %v2207, 1
    %v2209 = vadd.f32 %v2207, %v2208
    %v2210 = vadd.f32 %v1951, %v1955
    %v2211 = vadd.f32 %v2210, %v1961
    %v2212 = vadd.f32 %v2211, %v1965
    %v2213 = vadd.f32 %v2212, %v1971
    %v2214 = vadd.f32 %v2213, %v1975
    %v2215 = vadd.f32 %v2214, %v1981
    %v2216 = vadd.f32 %v2215, %v1985
    %v2217 = vrot.slane %v2216, 4
    %v2218 = vadd.f32 %v2216, %v2217
    %v2219 = vrot.slane %v2218, 2
    %v2220 = vadd.f32 %v2218, %v2219
    %v2221 = vrot.slane %v2220, 1
    %v2222 = vadd.f32 %v2220, %v2221
    %v2223 = vadd.f32 %v2095, %v2099
    %v2224 = vadd.f32 %v2223, %v2105
    %v2225 = vadd.f32 %v2224, %v2109
    %v2226 = vadd.f32 %v2225, %v2115
    %v2227 = vadd.f32 %v2226, %v2119
    %v2228 = vadd.f32 %v2227, %v2125
    %v2229 = vadd.f32 %v2228, %v2129
    %v2230 = vrot.slane %v2229, 4
    %v2231 = vadd.f32 %v2229, %v2230
    %v2232 = vrot.slane %v2231, 2
    %v2233 = vadd.f32 %v2231, %v2232
    %v2234 = vrot.slane %v2233, 1
    %v2235 = vadd.f32 %v2233, %v2234
    %v2236 = vadd.f32 %v2097, %v2101
    %v2237 = vadd.f32 %v2236, %v2107
    %v2238 = vadd.f32 %v2237, %v2111
    %v2239 = vadd.f32 %v2238, %v2117
    %v2240 = vadd.f32 %v2239, %v2121
    %v2241 = vadd.f32 %v2240, %v2127
    %v2242 = vadd.f32 %v2241, %v2131
    %v2243 = vrot.slane %v2242, 4
    %v2244 = vadd.f32 %v2242, %v2243
    %v2245 = vrot.slane %v2244, 2
    %v2246 = vadd.f32 %v2244, %v2245
    %v2247 = vrot.slane %v2246, 1
    %v2248 = vadd.f32 %v2246, %v2247
    %v2249 = vmul.f32 %v2157, %v258
    %v2250 = vmul.f32 %v2170, %v258
    %v2251 = vmul.f32 %v2183, %v258
    %v2252 = vmul.f32 %v2196, %v258
    %v2253 = vmul.f32 %v2209, %v258
    %v2254 = vmul.f32 %v2222, %v258
    %v2255 = vmul.f32 %v2235, %v258
    %v2256 = vmul.f32 %v2248, %v258
    %v2257 = vsub.f32 %v1657, %v2249
    %v2258 = vsub.f32 %v1659, %v2250
    %v2259 = vsub.f32 %v1803, %v2251
    %v2260 = vsub.f32 %v1805, %v2252
    %v2261 = vsub.f32 %v1949, %v2253
    %v2262 = vsub.f32 %v1951, %v2254
    %v2263 = vsub.f32 %v2095, %v2255
    %v2264 = vsub.f32 %v2097, %v2256
    %v2265 = vsub.f32 %v1661, %v2249
    %v2266 = vsub.f32 %v1663, %v2250
    %v2267 = vsub.f32 %v1807, %v2251
    %v2268 = vsub.f32 %v1809, %v2252
    %v2269 = vsub.f32 %v1953, %v2253
    %v2270 = vsub.f32 %v1955, %v2254
    %v2271 = vsub.f32 %v2099, %v2255
    %v2272 = vsub.f32 %v2101, %v2256
    %v2273 = vsub.f32 %v1667, %v2249
    %v2274 = vsub.f32 %v1669, %v2250
    %v2275 = vsub.f32 %v1813, %v2251
    %v2276 = vsub.f32 %v1815, %v2252
    %v2277 = vsub.f32 %v1959, %v2253
    %v2278 = vsub.f32 %v1961, %v2254
    %v2279 = vsub.f32 %v2105, %v2255
    %v2280 = vsub.f32 %v2107, %v2256
    %v2281 = vsub.f32 %v1671, %v2249
    %v2282 = vsub.f32 %v1673, %v2250
    %v2283 = vsub.f32 %v1817, %v2251
    %v2284 = vsub.f32 %v1819, %v2252
    %v2285 = vsub.f32 %v1963, %v2253
    %v2286 = vsub.f32 %v1965, %v2254
    %v2287 = vsub.f32 %v2109, %v2255
    %v2288 = vsub.f32 %v2111, %v2256
    %v2289 = vsub.f32 %v1677, %v2249
    %v2290 = vsub.f32 %v1679, %v2250
    %v2291 = vsub.f32 %v1823, %v2251
    %v2292 = vsub.f32 %v1825, %v2252
    %v2293 = vsub.f32 %v1969, %v2253
    %v2294 = vsub.f32 %v1971, %v2254
    %v2295 = vsub.f32 %v2115, %v2255
    %v2296 = vsub.f32 %v2117, %v2256
    %v2297 = vsub.f32 %v1681, %v2249
    %v2298 = vsub.f32 %v1683, %v2250
    %v2299 = vsub.f32 %v1827, %v2251
    %v2300 = vsub.f32 %v1829, %v2252
    %v2301 = vsub.f32 %v1973, %v2253
    %v2302 = vsub.f32 %v1975, %v2254
    %v2303 = vsub.f32 %v2119, %v2255
    %v2304 = vsub.f32 %v2121, %v2256
    %v2305 = vsub.f32 %v1687, %v2249
    %v2306 = vsub.f32 %v1689, %v2250
    %v2307 = vsub.f32 %v1833, %v2251
    %v2308 = vsub.f32 %v1835, %v2252
    %v2309 = vsub.f32 %v1979, %v2253
    %v2310 = vsub.f32 %v1981, %v2254
    %v2311 = vsub.f32 %v2125, %v2255
    %v2312 = vsub.f32 %v2127, %v2256
    %v2313 = vsub.f32 %v1691, %v2249
    %v2314 = vsub.f32 %v1693, %v2250
    %v2315 = vsub.f32 %v1837, %v2251
    %v2316 = vsub.f32 %v1839, %v2252
    %v2317 = vsub.f32 %v1983, %v2253
    %v2318 = vsub.f32 %v1985, %v2254
    %v2319 = vsub.f32 %v2129, %v2255
    %v2320 = vsub.f32 %v2131, %v2256
    %v2321 = vmul.f32 %v2257, %v2257
    %v2322 = vmul.f32 %v2258, %v2258
    %v2323 = vmul.f32 %v2259, %v2259
    %v2324 = vmul.f32 %v2260, %v2260
    %v2325 = vmul.f32 %v2261, %v2261
    %v2326 = vmul.f32 %v2262, %v2262
    %v2327 = vmul.f32 %v2263, %v2263
    %v2328 = vmul.f32 %v2264, %v2264
    %v2329 = vmul.f32 %v2265, %v2265
    %v2330 = vmul.f32 %v2266, %v2266
    %v2331 = vmul.f32 %v2267, %v2267
    %v2332 = vmul.f32 %v2268, %v2268
    %v2333 = vmul.f32 %v2269, %v2269
    %v2334 = vmul.f32 %v2270, %v2270
    %v2335 = vmul.f32 %v2271, %v2271
    %v2336 = vmul.f32 %v2272, %v2272
    %v2337 = vmul.f32 %v2273, %v2273
    %v2338 = vmul.f32 %v2274, %v2274
    %v2339 = vmul.f32 %v2275, %v2275
    %v2340 = vmul.f32 %v2276, %v2276
    %v2341 = vmul.f32 %v2277, %v2277
    %v2342 = vmul.f32 %v2278, %v2278
    %v2343 = vmul.f32 %v2279, %v2279
    %v2344 = vmul.f32 %v2280, %v2280
    %v2345 = vmul.f32 %v2281, %v2281
    %v2346 = vmul.f32 %v2282, %v2282
    %v2347 = vmul.f32 %v2283, %v2283
    %v2348 = vmul.f32 %v2284, %v2284
    %v2349 = vmul.f32 %v2285, %v2285
    %v2350 = vmul.f32 %v2286, %v2286
    %v2351 = vmul.f32 %v2287, %v2287
    %v2352 = vmul.f32 %v2288, %v2288
    %v2353 = vmul.f32 %v2289, %v2289
    %v2354 = vmul.f32 %v2290, %v2290
    %v2355 = vmul.f32 %v2291, %v2291
    %v2356 = vmul.f32 %v2292, %v2292
    %v2357 = vmul.f32 %v2293, %v2293
    %v2358 = vmul.f32 %v2294, %v2294
    %v2359 = vmul.f32 %v2295, %v2295
    %v2360 = vmul.f32 %v2296, %v2296
    %v2361 = vmul.f32 %v2297, %v2297
    %v2362 = vmul.f32 %v2298, %v2298
    %v2363 = vmul.f32 %v2299, %v2299
    %v2364 = vmul.f32 %v2300, %v2300
    %v2365 = vmul.f32 %v2301, %v2301
    %v2366 = vmul.f32 %v2302, %v2302
    %v2367 = vmul.f32 %v2303, %v2303
    %v2368 = vmul.f32 %v2304, %v2304
    %v2369 = vmul.f32 %v2305, %v2305
    %v2370 = vmul.f32 %v2306, %v2306
    %v2371 = vmul.f32 %v2307, %v2307
    %v2372 = vmul.f32 %v2308, %v2308
    %v2373 = vmul.f32 %v2309, %v2309
    %v2374 = vmul.f32 %v2310, %v2310
    %v2375 = vmul.f32 %v2311, %v2311
    %v2376 = vmul.f32 %v2312, %v2312
    %v2377 = vmul.f32 %v2313, %v2313
    %v2378 = vmul.f32 %v2314, %v2314
    %v2379 = vmul.f32 %v2315, %v2315
    %v2380 = vmul.f32 %v2316, %v2316
    %v2381 = vmul.f32 %v2317, %v2317
    %v2382 = vmul.f32 %v2318, %v2318
    %v2383 = vmul.f32 %v2319, %v2319
    %v2384 = vmul.f32 %v2320, %v2320
    %v2385 = vadd.f32 %v2321, %v2329
    %v2386 = vadd.f32 %v2385, %v2337
    %v2387 = vadd.f32 %v2386, %v2345
    %v2388 = vadd.f32 %v2387, %v2353
    %v2389 = vadd.f32 %v2388, %v2361
    %v2390 = vadd.f32 %v2389, %v2369
    %v2391 = vadd.f32 %v2390, %v2377
    %v2392 = vrot.slane %v2391, 4
    %v2393 = vadd.f32 %v2391, %v2392
    %v2394 = vrot.slane %v2393, 2
    %v2395 = vadd.f32 %v2393, %v2394
    %v2396 = vrot.slane %v2395, 1
    %v2397 = vadd.f32 %v2395, %v2396
    %v2398 = vadd.f32 %v2322, %v2330
    %v2399 = vadd.f32 %v2398, %v2338
    %v2400 = vadd.f32 %v2399, %v2346
    %v2401 = vadd.f32 %v2400, %v2354
    %v2402 = vadd.f32 %v2401, %v2362
    %v2403 = vadd.f32 %v2402, %v2370
    %v2404 = vadd.f32 %v2403, %v2378
    %v2405 = vrot.slane %v2404, 4
    %v2406 = vadd.f32 %v2404, %v2405
    %v2407 = vrot.slane %v2406, 2
    %v2408 = vadd.f32 %v2406, %v2407
    %v2409 = vrot.slane %v2408, 1
    %v2410 = vadd.f32 %v2408, %v2409
    %v2411 = vadd.f32 %v2323, %v2331
    %v2412 = vadd.f32 %v2411, %v2339
    %v2413 = vadd.f32 %v2412, %v2347
    %v2414 = vadd.f32 %v2413, %v2355
    %v2415 = vadd.f32 %v2414, %v2363
    %v2416 = vadd.f32 %v2415, %v2371
    %v2417 = vadd.f32 %v2416, %v2379
    %v2418 = vrot.slane %v2417, 4
    %v2419 = vadd.f32 %v2417, %v2418
    %v2420 = vrot.slane %v2419, 2
    %v2421 = vadd.f32 %v2419, %v2420
    %v2422 = vrot.slane %v2421, 1
    %v2423 = vadd.f32 %v2421, %v2422
    %v2424 = vadd.f32 %v2324, %v2332
    %v2425 = vadd.f32 %v2424, %v2340
    %v2426 = vadd.f32 %v2425, %v2348
    %v2427 = vadd.f32 %v2426, %v2356
    %v2428 = vadd.f32 %v2427, %v2364
    %v2429 = vadd.f32 %v2428, %v2372
    %v2430 = vadd.f32 %v2429, %v2380
    %v2431 = vrot.slane %v2430, 4
    %v2432 = vadd.f32 %v2430, %v2431
    %v2433 = vrot.slane %v2432, 2
    %v2434 = vadd.f32 %v2432, %v2433
    %v2435 = vrot.slane %v2434, 1
    %v2436 = vadd.f32 %v2434, %v2435
    %v2437 = vadd.f32 %v2325, %v2333
    %v2438 = vadd.f32 %v2437, %v2341
    %v2439 = vadd.f32 %v2438, %v2349
    %v2440 = vadd.f32 %v2439, %v2357
    %v2441 = vadd.f32 %v2440, %v2365
    %v2442 = vadd.f32 %v2441, %v2373
    %v2443 = vadd.f32 %v2442, %v2381
    %v2444 = vrot.slane %v2443, 4
    %v2445 = vadd.f32 %v2443, %v2444
    %v2446 = vrot.slane %v2445, 2
    %v2447 = vadd.f32 %v2445, %v2446
    %v2448 = vrot.slane %v2447, 1
    %v2449 = vadd.f32 %v2447, %v2448
    %v2450 = vadd.f32 %v2326, %v2334
    %v2451 = vadd.f32 %v2450, %v2342
    %v2452 = vadd.f32 %v2451, %v2350
    %v2453 = vadd.f32 %v2452, %v2358
    %v2454 = vadd.f32 %v2453, %v2366
    %v2455 = vadd.f32 %v2454, %v2374
    %v2456 = vadd.f32 %v2455, %v2382
    %v2457 = vrot.slane %v2456, 4
    %v2458 = vadd.f32 %v2456, %v2457
    %v2459 = vrot.slane %v2458, 2
    %v2460 = vadd.f32 %v2458, %v2459
    %v2461 = vrot.slane %v2460, 1
    %v2462 = vadd.f32 %v2460, %v2461
    %v2463 = vadd.f32 %v2327, %v2335
    %v2464 = vadd.f32 %v2463, %v2343
    %v2465 = vadd.f32 %v2464, %v2351
    %v2466 = vadd.f32 %v2465, %v2359
    %v2467 = vadd.f32 %v2466, %v2367
    %v2468 = vadd.f32 %v2467, %v2375
    %v2469 = vadd.f32 %v2468, %v2383
    %v2470 = vrot.slane %v2469, 4
    %v2471 = vadd.f32 %v2469, %v2470
    %v2472 = vrot.slane %v2471, 2
    %v2473 = vadd.f32 %v2471, %v2472
    %v2474 = vrot.slane %v2473, 1
    %v2475 = vadd.f32 %v2473, %v2474
    %v2476 = vadd.f32 %v2328, %v2336
    %v2477 = vadd.f32 %v2476, %v2344
    %v2478 = vadd.f32 %v2477, %v2352
    %v2479 = vadd.f32 %v2478, %v2360
    %v2480 = vadd.f32 %v2479, %v2368
    %v2481 = vadd.f32 %v2480, %v2376
    %v2482 = vadd.f32 %v2481, %v2384
    %v2483 = vrot.slane %v2482, 4
    %v2484 = vadd.f32 %v2482, %v2483
    %v2485 = vrot.slane %v2484, 2
    %v2486 = vadd.f32 %v2484, %v2485
    %v2487 = vrot.slane %v2486, 1
    %v2488 = vadd.f32 %v2486, %v2487
    %v2489 = vmul.f32 %v2397, %v258
    %v2490 = vmul.f32 %v2410, %v258
    %v2491 = vmul.f32 %v2423, %v258
    %v2492 = vmul.f32 %v2436, %v258
    %v2493 = vmul.f32 %v2449, %v258
    %v2494 = vmul.f32 %v2462, %v258
    %v2495 = vmul.f32 %v2475, %v258
    %v2496 = vmul.f32 %v2488, %v258
    %v2497 = vmul.f32 %v2136, %v2144
    %v2498 = vmul.f32 %v2144, %v2144
    %v2500 = vlaneseq
    %v2501 = vshrl.u32 %v2500, 7
    %v2502 = vsub.s32 0, %v2501
    %v2503 = vrot.slane %v2498, %v2502
    %v2504 = vlaneseq
    %v2505 = vshrl.u32 %v2504, 7
    %v2506 = vsub.s32 1, %v2505
    %v2507 = vrot.slane %v2498, %v2506
    %v2508 = vlaneseq
    %v2509 = vshrl.u32 %v2508, 7
    %v2510 = vsub.s32 2, %v2509
    %v2511 = vrot.slane %v2498, %v2510
    %v2512 = vlaneseq
    %v2513 = vshrl.u32 %v2512, 7
    %v2514 = vsub.s32 3, %v2513
    %v2515 = vrot.slane %v2498, %v2514
    %v2516 = vlaneseq
    %v2517 = vshrl.u32 %v2516, 7
    %v2518 = vsub.s32 4, %v2517
    %v2519 = vrot.slane %v2498, %v2518
    %v2520 = vlaneseq
    %v2521 = vshrl.u32 %v2520, 7
    %v2522 = vsub.s32 5, %v2521
    %v2523 = vrot.slane %v2498, %v2522
    %v2524 = vlaneseq
    %v2525 = vshrl.u32 %v2524, 7
    %v2526 = vsub.s32 6, %v2525
    %v2527 = vrot.slane %v2498, %v2526
    %v2528 = vlaneseq
    %v2529 = vshrl.u32 %v2528, 7
    %v2530 = vsub.s32 7, %v2529
    %v2531 = vrot.slane %v2498, %v2530
    %v2540 = vmul.f32 %v2489, %v2503
    %v2541 = vmul.f32 %v2490, %v2507
    %v2542 = vmul.f32 %v2491, %v2511
    %v2543 = vmul.f32 %v2492, %v2515
    %v2544 = vmul.f32 %v2493, %v2519
    %v2545 = vmul.f32 %v2494, %v2523
    %v2546 = vmul.f32 %v2495, %v2527
    %v2547 = vmul.f32 %v2496, %v2531
    %v2548 = vadd.f32 %v2540, 1e-05
    %v2549 = vadd.f32 %v2541, 1e-05
    %v2550 = vadd.f32 %v2542, 1e-05
    %v2551 = vadd.f32 %v2543, 1e-05
    %v2552 = vadd.f32 %v2544, 1e-05
    %v2553 = vadd.f32 %v2545, 1e-05
    %v2554 = vadd.f32 %v2546, 1e-05
    %v2555 = vadd.f32 %v2547, 1e-05
    %v2556 = vrsqrt.pop %v2548
    %v2557 = vrsqrt.pop %v2549
    %v2558 = vrsqrt.pop %v2550
    %v2559 = vrsqrt.pop %v2551
    %v2560 = vrsqrt.pop %v2552
    %v2561 = vrsqrt.pop %v2553
    %v2562 = vrsqrt.pop %v2554
    %v2563 = vrsqrt.pop %v2555
    %v2572 = vcombine.low %v2556, %v2557
    %v2573 = vcombine.low %v2558, %v2559
    %v2574 = vcombine.low %v2560, %v2561
    %v2575 = vcombine.low %v2562, %v2563
    %v2577 = vunpack.c.l.s4 1966171168
    %v2578 = vunpack.c.0.s8 %v2577
    %v2579 = vlaneseq
    %v2580 = vshrl.u32 %v2579, 7
    %v2581 = vsub.s32 %v2578, %v2580
    %v2582 = vrot.slane %v2572, %v2581
    %v2584 = vunpack.c.l.s4 1966171168
    %v2585 = vunpack.c.0.s8 %v2584
    %v2586 = vlaneseq
    %v2587 = vshrl.u32 %v2586, 7
    %v2588 = vsub.s32 %v2585, %v2587
    %v2589 = vrot.slane %v2573, %v2588
    %v2591 = vunpack.c.l.s4 1966171168
    %v2592 = vunpack.c.0.s8 %v2591
    %v2593 = vlaneseq
    %v2594 = vshrl.u32 %v2593, 7
    %v2595 = vsub.s32 %v2592, %v2594
    %v2596 = vrot.slane %v2574, %v2595
    %v2598 = vunpack.c.l.s4 1966171168
    %v2599 = vunpack.c.0.s8 %v2598
    %v2600 = vlaneseq
    %v2601 = vshrl.u32 %v2600, 7
    %v2602 = vsub.s32 %v2599, %v2601
    %v2603 = vrot.slane %v2575, %v2602
    %v2604 = vcombine.low %v2582, %v2589
    %v2605 = vcombine.low %v2596, %v2603
    %v2607 = vunpack.c.l.s4 1966171168
    %v2608 = vunpack.c.0.s8 %v2607
    %v2609 = vlaneseq
    %v2610 = vshrl.u32 %v2609, 7
    %v2611 = vsub.s32 %v2608, %v2610
    %v2612 = vrot.slane %v2604, %v2611
    %v2614 = vunpack.c.l.s4 1966171168
    %v2615 = vunpack.c.0.s8 %v2614
    %v2616 = vlaneseq
    %v2617 = vshrl.u32 %v2616, 7
    %v2618 = vsub.s32 %v2615, %v2617
    %v2619 = vrot.slane %v2605, %v2618
    %v2620 = vcombine.low %v2612, %v2619
    %v2622 = vmul.f32 %v2497, %v2620
    %v2624 = vlaneseq
    %v2625 = vshrl.u32 %v2624, 7
    %v2626 = vsub.s32 0, %v2625
    %v2627 = vrot.slane %v2622, %v2626
    %v2628 = vlaneseq
    %v2629 = vshrl.u32 %v2628, 7
    %v2630 = vsub.s32 1, %v2629
    %v2631 = vrot.slane %v2622, %v2630
    %v2632 = vlaneseq
    %v2633 = vshrl.u32 %v2632, 7
    %v2634 = vsub.s32 2, %v2633
    %v2635 = vrot.slane %v2622, %v2634
    %v2636 = vlaneseq
    %v2637 = vshrl.u32 %v2636, 7
    %v2638 = vsub.s32 3, %v2637
    %v2639 = vrot.slane %v2622, %v2638
    %v2640 = vlaneseq
    %v2641 = vshrl.u32 %v2640, 7
    %v2642 = vsub.s32 4, %v2641
    %v2643 = vrot.slane %v2622, %v2642
    %v2644 = vlaneseq
    %v2645 = vshrl.u32 %v2644, 7
    %v2646 = vsub.s32 5, %v2645
    %v2647 = vrot.slane %v2622, %v2646
    %v2648 = vlaneseq
    %v2649 = vshrl.u32 %v2648, 7
    %v2650 = vsub.s32 6, %v2649
    %v2651 = vrot.slane %v2622, %v2650
    %v2652 = vlaneseq
    %v2653 = vshrl.u32 %v2652, 7
    %v2654 = vsub.s32 7, %v2653
    %v2655 = vrot.slane %v2622, %v2654
    %v2664 = vmul.f32 %v2257, %v2627
    %v2665 = vmul.f32 %v2258, %v2631
    %v2666 = vmul.f32 %v2259, %v2635
    %v2667 = vmul.f32 %v2260, %v2639
    %v2668 = vmul.f32 %v2261, %v2643
    %v2669 = vmul.f32 %v2262, %v2647
    %v2670 = vmul.f32 %v2263, %v2651
    %v2671 = vmul.f32 %v2264, %v2655
    %v2672 = vmul.f32 %v2265, %v2627
    %v2673 = vmul.f32 %v2266, %v2631
    %v2674 = vmul.f32 %v2267, %v2635
    %v2675 = vmul.f32 %v2268, %v2639
    %v2676 = vmul.f32 %v2269, %v2643
    %v2677 = vmul.f32 %v2270, %v2647
    %v2678 = vmul.f32 %v2271, %v2651
    %v2679 = vmul.f32 %v2272, %v2655
    %v2680 = vmul.f32 %v2273, %v2627
    %v2681 = vmul.f32 %v2274, %v2631
    %v2682 = vmul.f32 %v2275, %v2635
    %v2683 = vmul.f32 %v2276, %v2639
    %v2684 = vmul.f32 %v2277, %v2643
    %v2685 = vmul.f32 %v2278, %v2647
    %v2686 = vmul.f32 %v2279, %v2651
    %v2687 = vmul.f32 %v2280, %v2655
    %v2688 = vmul.f32 %v2281, %v2627
    %v2689 = vmul.f32 %v2282, %v2631
    %v2690 = vmul.f32 %v2283, %v2635
    %v2691 = vmul.f32 %v2284, %v2639
    %v2692 = vmul.f32 %v2285, %v2643
    %v2693 = vmul.f32 %v2286, %v2647
    %v2694 = vmul.f32 %v2287, %v2651
    %v2695 = vmul.f32 %v2288, %v2655
    %v2696 = vmul.f32 %v2289, %v2627
    %v2697 = vmul.f32 %v2290, %v2631
    %v2698 = vmul.f32 %v2291, %v2635
    %v2699 = vmul.f32 %v2292, %v2639
    %v2700 = vmul.f32 %v2293, %v2643
    %v2701 = vmul.f32 %v2294, %v2647
    %v2702 = vmul.f32 %v2295, %v2651
    %v2703 = vmul.f32 %v2296, %v2655
    %v2704 = vmul.f32 %v2297, %v2627
    %v2705 = vmul.f32 %v2298, %v2631
    %v2706 = vmul.f32 %v2299, %v2635
    %v2707 = vmul.f32 %v2300, %v2639
    %v2708 = vmul.f32 %v2301, %v2643
    %v2709 = vmul.f32 %v2302, %v2647
    %v2710 = vmul.f32 %v2303, %v2651
    %v2711 = vmul.f32 %v2304, %v2655
    %v2712 = vmul.f32 %v2305, %v2627
    %v2713 = vmul.f32 %v2306, %v2631
    %v2714 = vmul.f32 %v2307, %v2635
    %v2715 = vmul.f32 %v2308, %v2639
    %v2716 = vmul.f32 %v2309, %v2643
    %v2717 = vmul.f32 %v2310, %v2647
    %v2718 = vmul.f32 %v2311, %v2651
    %v2719 = vmul.f32 %v2312, %v2655
    %v2720 = vmul.f32 %v2313, %v2627
    %v2721 = vmul.f32 %v2314, %v2631
    %v2722 = vmul.f32 %v2315, %v2635
    %v2723 = vmul.f32 %v2316, %v2639
    %v2724 = vmul.f32 %v2317, %v2643
    %v2725 = vmul.f32 %v2318, %v2647
    %v2726 = vmul.f32 %v2319, %v2651
    %v2727 = vmul.f32 %v2320, %v2655
    %v2729 = vlaneseq
    %v2730 = vshrl.u32 %v2729, 7
    %v2731 = vsub.s32 0, %v2730
    %v2732 = vrot.slane %v2140, %v2731
    %v2733 = vlaneseq
    %v2734 = vshrl.u32 %v2733, 7
    %v2735 = vsub.s32 1, %v2734
    %v2736 = vrot.slane %v2140, %v2735
    %v2737 = vlaneseq
    %v2738 = vshrl.u32 %v2737, 7
    %v2739 = vsub.s32 2, %v2738
    %v2740 = vrot.slane %v2140, %v2739
    %v2741 = vlaneseq
    %v2742 = vshrl.u32 %v2741, 7
    %v2743 = vsub.s32 3, %v2742
    %v2744 = vrot.slane %v2140, %v2743
    %v2745 = vlaneseq
    %v2746 = vshrl.u32 %v2745, 7
    %v2747 = vsub.s32 4, %v2746
    %v2748 = vrot.slane %v2140, %v2747
    %v2749 = vlaneseq
    %v2750 = vshrl.u32 %v2749, 7
    %v2751 = vsub.s32 5, %v2750
    %v2752 = vrot.slane %v2140, %v2751
    %v2753 = vlaneseq
    %v2754 = vshrl.u32 %v2753, 7
    %v2755 = vsub.s32 6, %v2754
    %v2756 = vrot.slane %v2140, %v2755
    %v2757 = vlaneseq
    %v2758 = vshrl.u32 %v2757, 7
    %v2759 = vsub.s32 7, %v2758
    %v2760 = vrot.slane %v2140, %v2759
    %v2769 = vadd.f32 %v2664, %v2732
    %v2770 = vadd.f32 %v2665, %v2736
    %v2771 = vadd.f32 %v2666, %v2740
    %v2772 = vadd.f32 %v2667, %v2744
    %v2773 = vadd.f32 %v2668, %v2748
    %v2774 = vadd.f32 %v2669, %v2752
    %v2775 = vadd.f32 %v2670, %v2756
    %v2776 = vadd.f32 %v2671, %v2760
    %v2777 = vadd.f32 %v2672, %v2732
    %v2778 = vadd.f32 %v2673, %v2736
    %v2779 = vadd.f32 %v2674, %v2740
    %v2780 = vadd.f32 %v2675, %v2744
    %v2781 = vadd.f32 %v2676, %v2748
    %v2782 = vadd.f32 %v2677, %v2752
    %v2783 = vadd.f32 %v2678, %v2756
    %v2784 = vadd.f32 %v2679, %v2760
    %v2785 = vadd.f32 %v2680, %v2732
    %v2786 = vadd.f32 %v2681, %v2736
    %v2787 = vadd.f32 %v2682, %v2740
    %v2788 = vadd.f32 %v2683, %v2744
    %v2789 = vadd.f32 %v2684, %v2748
    %v2790 = vadd.f32 %v2685, %v2752
    %v2791 = vadd.f32 %v2686, %v2756
    %v2792 = vadd.f32 %v2687, %v2760
    %v2793 = vadd.f32 %v2688, %v2732
    %v2794 = vadd.f32 %v2689, %v2736
    %v2795 = vadd.f32 %v2690, %v2740
    %v2796 = vadd.f32 %v2691, %v2744
    %v2797 = vadd.f32 %v2692, %v2748
    %v2798 = vadd.f32 %v2693, %v2752
    %v2799 = vadd.f32 %v2694, %v2756
    %v2800 = vadd.f32 %v2695, %v2760
    %v2801 = vadd.f32 %v2696, %v2732
    %v2802 = vadd.f32 %v2697, %v2736
    %v2803 = vadd.f32 %v2698, %v2740
    %v2804 = vadd.f32 %v2699, %v2744
    %v2805 = vadd.f32 %v2700, %v2748
    %v2806 = vadd.f32 %v2701, %v2752
    %v2807 = vadd.f32 %v2702, %v2756
    %v2808 = vadd.f32 %v2703, %v2760
    %v2809 = vadd.f32 %v2704, %v2732
    %v2810 = vadd.f32 %v2705, %v2736
    %v2811 = vadd.f32 %v2706, %v2740
    %v2812 = vadd.f32 %v2707, %v2744
    %v2813 = vadd.f32 %v2708, %v2748
    %v2814 = vadd.f32 %v2709, %v2752
    %v2815 = vadd.f32 %v2710, %v2756
    %v2816 = vadd.f32 %v2711, %v2760
    %v2817 = vadd.f32 %v2712, %v2732
    %v2818 = vadd.f32 %v2713, %v2736
    %v2819 = vadd.f32 %v2714, %v2740
    %v2820 = vadd.f32 %v2715, %v2744
    %v2821 = vadd.f32 %v2716, %v2748
    %v2822 = vadd.f32 %v2717, %v2752
    %v2823 = vadd.f32 %v2718, %v2756
    %v2824 = vadd.f32 %v2719, %v2760
    %v2825 = vadd.f32 %v2720, %v2732
    %v2826 = vadd.f32 %v2721, %v2736
    %v2827 = vadd.f32 %v2722, %v2740
    %v2828 = vadd.f32 %v2723, %v2744
    %v2829 = vadd.f32 %v2724, %v2748
    %v2830 = vadd.f32 %v2725, %v2752
    %v2831 = vadd.f32 %v2726, %v2756
    %v2832 = vadd.f32 %v2727, %v2760
    %v2833 = vmul.f32 %v2769, 0.2
    %v2834 = vmul.f32 %v2770, 0.2
    %v2835 = vmul.f32 %v2771, 0.2
    %v2836 = vmul.f32 %v2772, 0.2
    %v2837 = vmul.f32 %v2773, 0.2
    %v2838 = vmul.f32 %v2774, 0.2
    %v2839 = vmul.f32 %v2775, 0.2
    %v2840 = vmul.f32 %v2776, 0.2
    %v2841 = vmul.f32 %v2777, 0.2
    %v2842 = vmul.f32 %v2778, 0.2
    %v2843 = vmul.f32 %v2779, 0.2
    %v2844 = vmul.f32 %v2780, 0.2
    %v2845 = vmul.f32 %v2781, 0.2
    %v2846 = vmul.f32 %v2782, 0.2
    %v2847 = vmul.f32 %v2783, 0.2
    %v2848 = vmul.f32 %v2784, 0.2
    %v2849 = vmul.f32 %v2785, 0.2
    %v2850 = vmul.f32 %v2786, 0.2
    %v2851 = vmul.f32 %v2787, 0.2
    %v2852 = vmul.f32 %v2788, 0.2
    %v2853 = vmul.f32 %v2789, 0.2
    %v2854 = vmul.f32 %v2790, 0.2
    %v2855 = vmul.f32 %v2791, 0.2
    %v2856 = vmul.f32 %v2792, 0.2
    %v2857 = vmul.f32 %v2793, 0.2
    %v2858 = vmul.f32 %v2794, 0.2
    %v2859 = vmul.f32 %v2795, 0.2
    %v2860 = vmul.f32 %v2796, 0.2
    %v2861 = vmul.f32 %v2797, 0.2
    %v2862 = vmul.f32 %v2798, 0.2
    %v2863 = vmul.f32 %v2799, 0.2
    %v2864 = vmul.f32 %v2800, 0.2
    %v2865 = vmul.f32 %v2801, 0.2
    %v2866 = vmul.f32 %v2802, 0.2
    %v2867 = vmul.f32 %v2803, 0.2
    %v2868 = vmul.f32 %v2804, 0.2
    %v2869 = vmul.f32 %v2805, 0.2
    %v2870 = vmul.f32 %v2806, 0.2
    %v2871 = vmul.f32 %v2807, 0.2
    %v2872 = vmul.f32 %v2808, 0.2
    %v2873 = vmul.f32 %v2809, 0.2
    %v2874 = vmul.f32 %v2810, 0.2
    %v2875 = vmul.f32 %v2811, 0.2
    %v2876 = vmul.f32 %v2812, 0.2
    %v2877 = vmul.f32 %v2813, 0.2
    %v2878 = vmul.f32 %v2814, 0.2
    %v2879 = vmul.f32 %v2815, 0.2
    %v2880 = vmul.f32 %v2816, 0.2
    %v2881 = vmul.f32 %v2817, 0.2
    %v2882 = vmul.f32 %v2818, 0.2
    %v2883 = vmul.f32 %v2819, 0.2
    %v2884 = vmul.f32 %v2820, 0.2
    %v2885 = vmul.f32 %v2821, 0.2
    %v2886 = vmul.f32 %v2822, 0.2
    %v2887 = vmul.f32 %v2823, 0.2
    %v2888 = vmul.f32 %v2824, 0.2
    %v2889 = vmul.f32 %v2825, 0.2
    %v2890 = vmul.f32 %v2826, 0.2
    %v2891 = vmul.f32 %v2827, 0.2
    %v2892 = vmul.f32 %v2828, 0.2
    %v2893 = vmul.f32 %v2829, 0.2
    %v2894 = vmul.f32 %v2830, 0.2
    %v2895 = vmul.f32 %v2831, 0.2
    %v2896 = vmul.f32 %v2832, 0.2
    %v2897 = vmax.f32 %v2769, %v2833
    %v2898 = vmax.f32 %v2770, %v2834
    %v2899 = vmax.f32 %v2771, %v2835
    %v2900 = vmax.f32 %v2772, %v2836
    %v2901 = vmax.f32 %v2773, %v2837
    %v2902 = vmax.f32 %v2774, %v2838
    %v2903 = vmax.f32 %v2775, %v2839
    %v2904 = vmax.f32 %v2776, %v2840
    %v2905 = vmax.f32 %v2777, %v2841
    %v2906 = vmax.f32 %v2778, %v2842
    %v2907 = vmax.f32 %v2779, %v2843
    %v2908 = vmax.f32 %v2780, %v2844
    %v2909 = vmax.f32 %v2781, %v2845
    %v2910 = vmax.f32 %v2782, %v2846
    %v2911 = vmax.f32 %v2783, %v2847
    %v2912 = vmax.f32 %v2784, %v2848
    %v2913 = vmax.f32 %v2785, %v2849
    %v2914 = vmax.f32 %v2786, %v2850
    %v2915 = vmax.f32 %v2787, %v2851
    %v2916 = vmax.f32 %v2788, %v2852
    %v2917 = vmax.f32 %v2789, %v2853
    %v2918 = vmax.f32 %v2790, %v2854
    %v2919 = vmax.f32 %v2791, %v2855
    %v2920 = vmax.f32 %v2792, %v2856
    %v2921 = vmax.f32 %v2793, %v2857
    %v2922 = vmax.f32 %v2794, %v2858
    %v2923 = vmax.f32 %v2795, %v2859
    %v2924 = vmax.f32 %v2796, %v2860
    %v2925 = vmax.f32 %v2797, %v2861
    %v2926 = vmax.f32 %v2798, %v2862
    %v2927 = vmax.f32 %v2799, %v2863
    %v2928 = vmax.f32 %v2800, %v2864
    %v2929 = vmax.f32 %v2801, %v2865
    %v2930 = vmax.f32 %v2802, %v2866
    %v2931 = vmax.f32 %v2803, %v2867
    %v2932 = vmax.f32 %v2804, %v2868
    %v2933 = vmax.f32 %v2805, %v2869
    %v2934 = vmax.f32 %v2806, %v2870
    %v2935 = vmax.f32 %v2807, %v2871
    %v2936 = vmax.f32 %v2808, %v2872
    %v2937 = vmax.f32 %v2809, %v2873
    %v2938 = vmax.f32 %v2810, %v2874
    %v2939 = vmax.f32 %v2811, %v2875
    %v2940 = vmax.f32 %v2812, %v2876
    %v2941 = vmax.f32 %v2813, %v2877
    %v2942 = vmax.f32 %v2814, %v2878
    %v2943 = vmax.f32 %v2815, %v2879
    %v2944 = vmax.f32 %v2816, %v2880
    %v2945 = vmax.f32 %v2817, %v2881
    %v2946 = vmax.f32 %v2818, %v2882
    %v2947 = vmax.f32 %v2819, %v2883
    %v2948 = vmax.f32 %v2820, %v2884
    %v2949 = vmax.f32 %v2821, %v2885
    %v2950 = vmax.f32 %v2822, %v2886
    %v2951 = vmax.f32 %v2823, %v2887
    %v2952 = vmax.f32 %v2824, %v2888
    %v2953 = vmax.f32 %v2825, %v2889
    %v2954 = vmax.f32 %v2826, %v2890
    %v2955 = vmax.f32 %v2827, %v2891
    %v2956 = vmax.f32 %v2828, %v2892
    %v2957 = vmax.f32 %v2829, %v2893
    %v2958 = vmax.f32 %v2830, %v2894
    %v2959 = vmax.f32 %v2831, %v2895
    %v2960 = vmax.f32 %v2832, %v2896
    %s2961 = smul.u32 2, 128
    %s2962 = smul.u32 %s2961, 7
    %s2963 = sshll.u32 %s2962, 4
    %2964 = dma.done %s62, %s2963
    %v2965 = vpack.c.bf16 %v2905, %v2897
    %v2966 = vpack.c.bf16 %v2906, %v2898
    %v2967 = vpack.c.bf16 %v2907, %v2899
    %v2968 = vpack.c.bf16 %v2908, %v2900
    %v2969 = vpack.c.bf16 %v2909, %v2901
    %v2970 = vpack.c.bf16 %v2910, %v2902
    %v2971 = vpack.c.bf16 %v2911, %v2903
    %v2972 = vpack.c.bf16 %v2912, %v2904
    %v2973 = vpack.c.bf16 %v2921, %v2913
    %v2974 = vpack.c.bf16 %v2922, %v2914
    %v2975 = vpack.c.bf16 %v2923, %v2915
    %v2976 = vpack.c.bf16 %v2924, %v2916
    %v2977 = vpack.c.bf16 %v2925, %v2917
    %v2978 = vpack.c.bf16 %v2926, %v2918
    %v2979 = vpack.c.bf16 %v2927, %v2919
    %v2980 = vpack.c.bf16 %v2928, %v2920
    %v2981 = vpack.c.bf16 %v2937, %v2929
    %v2982 = vpack.c.bf16 %v2938, %v2930
    %v2983 = vpack.c.bf16 %v2939, %v2931
    %v2984 = vpack.c.bf16 %v2940, %v2932
    %v2985 = vpack.c.bf16 %v2941, %v2933
    %v2986 = vpack.c.bf16 %v2942, %v2934
    %v2987 = vpack.c.bf16 %v2943, %v2935
    %v2988 = vpack.c.bf16 %v2944, %v2936
    %v2989 = vpack.c.bf16 %v2953, %v2945
    %v2990 = vpack.c.bf16 %v2954, %v2946
    %v2991 = vpack.c.bf16 %v2955, %v2947
    %v2992 = vpack.c.bf16 %v2956, %v2948
    %v2993 = vpack.c.bf16 %v2957, %v2949
    %v2994 = vpack.c.bf16 %v2958, %v2950
    %v2995 = vpack.c.bf16 %v2959, %v2951
    %v2996 = vpack.c.bf16 %v2960, %v2952
    %v2997 = vld [vmem:[#allocation4] sm:$0xff]
    %v2998 = vld [vmem:[#allocation4 + $0x8] sm:$0xff]
    %v2999 = vld [vmem:[#allocation4 + $0x10] sm:$0xff]
    %v3000 = vld [vmem:[#allocation4 + $0x18] sm:$0xff]
    %v3001 = vld [vmem:[#allocation4 + $0x20] sm:$0xff]
    %v3002 = vld [vmem:[#allocation4 + $0x28] sm:$0xff]
    %v3003 = vld [vmem:[#allocation4 + $0x30] sm:$0xff]
    %v3004 = vld [vmem:[#allocation4 + $0x38] sm:$0xff]
    %v3005 = vld [vmem:[#allocation4 + $0x40] sm:$0xff]
    %v3006 = vld [vmem:[#allocation4 + $0x48] sm:$0xff]
    %v3007 = vld [vmem:[#allocation4 + $0x50] sm:$0xff]
    %v3008 = vld [vmem:[#allocation4 + $0x58] sm:$0xff]
    %v3009 = vld [vmem:[#allocation4 + $0x60] sm:$0xff]
    %v3010 = vld [vmem:[#allocation4 + $0x68] sm:$0xff]
    %v3011 = vld [vmem:[#allocation4 + $0x70] sm:$0xff]
    %v3012 = vld [vmem:[#allocation4 + $0x78] sm:$0xff]
    %v3013 = vld [vmem:[#allocation4 + $0x80] sm:$0xff]
    %v3014 = vld [vmem:[#allocation4 + $0x88] sm:$0xff]
    %v3015 = vld [vmem:[#allocation4 + $0x90] sm:$0xff]
    %v3016 = vld [vmem:[#allocation4 + $0x98] sm:$0xff]
    %v3017 = vld [vmem:[#allocation4 + $0xa0] sm:$0xff]
    %v3018 = vld [vmem:[#allocation4 + $0xa8] sm:$0xff]
    %v3019 = vld [vmem:[#allocation4 + $0xb0] sm:$0xff]
    %v3020 = vld [vmem:[#allocation4 + $0xb8] sm:$0xff]
    %v3021 = vld [vmem:[#allocation4 + $0xc0] sm:$0xff]
    %v3022 = vld [vmem:[#allocation4 + $0xc8] sm:$0xff]
    %v3023 = vld [vmem:[#allocation4 + $0xd0] sm:$0xff]
    %v3024 = vld [vmem:[#allocation4 + $0xd8] sm:$0xff]
    %v3025 = vld [vmem:[#allocation4 + $0xe0] sm:$0xff]
    %v3026 = vld [vmem:[#allocation4 + $0xe8] sm:$0xff]
    %v3027 = vld [vmem:[#allocation4 + $0xf0] sm:$0xff]
    %v3028 = vld [vmem:[#allocation4 + $0xf8] sm:$0xff]
    %v3029 = vld [vmem:[#allocation4 + $0x100] sm:$0xff]
    %v3030 = vld [vmem:[#allocation4 + $0x108] sm:$0xff]
    %v3031 = vld [vmem:[#allocation4 + $0x110] sm:$0xff]
    %v3032 = vld [vmem:[#allocation4 + $0x118] sm:$0xff]
    %v3033 = vld [vmem:[#allocation4 + $0x120] sm:$0xff]
    %v3034 = vld [vmem:[#allocation4 + $0x128] sm:$0xff]
    %v3035 = vld [vmem:[#allocation4 + $0x130] sm:$0xff]
    %v3036 = vld [vmem:[#allocation4 + $0x138] sm:$0xff]
    %v3037 = vld [vmem:[#allocation4 + $0x140] sm:$0xff]
    %v3038 = vld [vmem:[#allocation4 + $0x148] sm:$0xff]
    %v3039 = vld [vmem:[#allocation4 + $0x150] sm:$0xff]
    %v3040 = vld [vmem:[#allocation4 + $0x158] sm:$0xff]
    %v3041 = vld [vmem:[#allocation4 + $0x160] sm:$0xff]
    %v3042 = vld [vmem:[#allocation4 + $0x168] sm:$0xff]
    %v3043 = vld [vmem:[#allocation4 + $0x170] sm:$0xff]
    %v3044 = vld [vmem:[#allocation4 + $0x178] sm:$0xff]
    %v3045 = vld [vmem:[#allocation4 + $0x180] sm:$0xff]
    %v3046 = vld [vmem:[#allocation4 + $0x188] sm:$0xff]
    %v3047 = vld [vmem:[#allocation4 + $0x190] sm:$0xff]
    %v3048 = vld [vmem:[#allocation4 + $0x198] sm:$0xff]
    %v3049 = vld [vmem:[#allocation4 + $0x1a0] sm:$0xff]
    %v3050 = vld [vmem:[#allocation4 + $0x1a8] sm:$0xff]
    %v3051 = vld [vmem:[#allocation4 + $0x1b0] sm:$0xff]
    %v3052 = vld [vmem:[#allocation4 + $0x1b8] sm:$0xff]
    %v3053 = vld [vmem:[#allocation4 + $0x1c0] sm:$0xff]
    %v3054 = vld [vmem:[#allocation4 + $0x1c8] sm:$0xff]
    %v3055 = vld [vmem:[#allocation4 + $0x1d0] sm:$0xff]
    %v3056 = vld [vmem:[#allocation4 + $0x1d8] sm:$0xff]
    %v3057 = vld [vmem:[#allocation4 + $0x1e0] sm:$0xff]
    %v3058 = vld [vmem:[#allocation4 + $0x1e8] sm:$0xff]
    %v3059 = vld [vmem:[#allocation4 + $0x1f0] sm:$0xff]
    %v3060 = vld [vmem:[#allocation4 + $0x1f8] sm:$0xff]
    %v3061 = vld [vmem:[#allocation4 + $0x200] sm:$0xff]
    %v3062 = vld [vmem:[#allocation4 + $0x208] sm:$0xff]
    %v3063 = vld [vmem:[#allocation4 + $0x210] sm:$0xff]
    %v3064 = vld [vmem:[#allocation4 + $0x218] sm:$0xff]
    %v3065 = vld [vmem:[#allocation4 + $0x220] sm:$0xff]
    %v3066 = vld [vmem:[#allocation4 + $0x228] sm:$0xff]
    %v3067 = vld [vmem:[#allocation4 + $0x230] sm:$0xff]
    %v3068 = vld [vmem:[#allocation4 + $0x238] sm:$0xff]
    %v3069 = vld [vmem:[#allocation4 + $0x240] sm:$0xff]
    %v3070 = vld [vmem:[#allocation4 + $0x248] sm:$0xff]
    %v3071 = vld [vmem:[#allocation4 + $0x250] sm:$0xff]
    %v3072 = vld [vmem:[#allocation4 + $0x258] sm:$0xff]
    %v3073 = vld [vmem:[#allocation4 + $0x260] sm:$0xff]
    %v3074 = vld [vmem:[#allocation4 + $0x268] sm:$0xff]
    %v3075 = vld [vmem:[#allocation4 + $0x270] sm:$0xff]
    %v3076 = vld [vmem:[#allocation4 + $0x278] sm:$0xff]
    %v3077 = vld [vmem:[#allocation4 + $0x280] sm:$0xff]
    %v3078 = vld [vmem:[#allocation4 + $0x288] sm:$0xff]
    %v3079 = vld [vmem:[#allocation4 + $0x290] sm:$0xff]
    %v3080 = vld [vmem:[#allocation4 + $0x298] sm:$0xff]
    %v3081 = vld [vmem:[#allocation4 + $0x2a0] sm:$0xff]
    %v3082 = vld [vmem:[#allocation4 + $0x2a8] sm:$0xff]
    %v3083 = vld [vmem:[#allocation4 + $0x2b0] sm:$0xff]
    %v3084 = vld [vmem:[#allocation4 + $0x2b8] sm:$0xff]
    %v3085 = vld [vmem:[#allocation4 + $0x2c0] sm:$0xff]
    %v3086 = vld [vmem:[#allocation4 + $0x2c8] sm:$0xff]
    %v3087 = vld [vmem:[#allocation4 + $0x2d0] sm:$0xff]
    %v3088 = vld [vmem:[#allocation4 + $0x2d8] sm:$0xff]
    %v3089 = vld [vmem:[#allocation4 + $0x2e0] sm:$0xff]
    %v3090 = vld [vmem:[#allocation4 + $0x2e8] sm:$0xff]
    %v3091 = vld [vmem:[#allocation4 + $0x2f0] sm:$0xff]
    %v3092 = vld [vmem:[#allocation4 + $0x2f8] sm:$0xff]
    %v3093 = vld [vmem:[#allocation4 + $0x300] sm:$0xff]
    %v3094 = vld [vmem:[#allocation4 + $0x308] sm:$0xff]
    %v3095 = vld [vmem:[#allocation4 + $0x310] sm:$0xff]
    %v3096 = vld [vmem:[#allocation4 + $0x318] sm:$0xff]
    %v3097 = vld [vmem:[#allocation4 + $0x320] sm:$0xff]
    %v3098 = vld [vmem:[#allocation4 + $0x328] sm:$0xff]
    %v3099 = vld [vmem:[#allocation4 + $0x330] sm:$0xff]
    %v3100 = vld [vmem:[#allocation4 + $0x338] sm:$0xff]
    %v3101 = vld [vmem:[#allocation4 + $0x340] sm:$0xff]
    %v3102 = vld [vmem:[#allocation4 + $0x348] sm:$0xff]
    %v3103 = vld [vmem:[#allocation4 + $0x350] sm:$0xff]
    %v3104 = vld [vmem:[#allocation4 + $0x358] sm:$0xff]
    %v3105 = vld [vmem:[#allocation4 + $0x360] sm:$0xff]
    %v3106 = vld [vmem:[#allocation4 + $0x368] sm:$0xff]
    %v3107 = vld [vmem:[#allocation4 + $0x370] sm:$0xff]
    %v3108 = vld [vmem:[#allocation4 + $0x378] sm:$0xff]
    %v3109 = vld [vmem:[#allocation4 + $0x380] sm:$0xff]
    %v3110 = vld [vmem:[#allocation4 + $0x388] sm:$0xff]
    %v3111 = vld [vmem:[#allocation4 + $0x390] sm:$0xff]
    %v3112 = vld [vmem:[#allocation4 + $0x398] sm:$0xff]
    %v3113 = vld [vmem:[#allocation4 + $0x3a0] sm:$0xff]
    %v3114 = vld [vmem:[#allocation4 + $0x3a8] sm:$0xff]
    %v3115 = vld [vmem:[#allocation4 + $0x3b0] sm:$0xff]
    %v3116 = vld [vmem:[#allocation4 + $0x3b8] sm:$0xff]
    %v3117 = vld [vmem:[#allocation4 + $0x3c0] sm:$0xff]
    %v3118 = vld [vmem:[#allocation4 + $0x3c8] sm:$0xff]
    %v3119 = vld [vmem:[#allocation4 + $0x3d0] sm:$0xff]
    %v3120 = vld [vmem:[#allocation4 + $0x3d8] sm:$0xff]
    %v3121 = vld [vmem:[#allocation4 + $0x3e0] sm:$0xff]
    %v3122 = vld [vmem:[#allocation4 + $0x3e8] sm:$0xff]
    %v3123 = vld [vmem:[#allocation4 + $0x3f0] sm:$0xff]
    %v3124 = vld [vmem:[#allocation4 + $0x3f8] sm:$0xff]
    %v3125 = vld [vmem:[#allocation4 + $0x400] sm:$0xff]
    %v3126 = vld [vmem:[#allocation4 + $0x408] sm:$0xff]
    %v3127 = vld [vmem:[#allocation4 + $0x410] sm:$0xff]
    %v3128 = vld [vmem:[#allocation4 + $0x418] sm:$0xff]
    %v3129 = vld [vmem:[#allocation4 + $0x420] sm:$0xff]
    %v3130 = vld [vmem:[#allocation4 + $0x428] sm:$0xff]
    %v3131 = vld [vmem:[#allocation4 + $0x430] sm:$0xff]
    %v3132 = vld [vmem:[#allocation4 + $0x438] sm:$0xff]
    %v3133 = vld [vmem:[#allocation4 + $0x440] sm:$0xff]
    %v3134 = vld [vmem:[#allocation4 + $0x448] sm:$0xff]
    %v3135 = vld [vmem:[#allocation4 + $0x450] sm:$0xff]
    %v3136 = vld [vmem:[#allocation4 + $0x458] sm:$0xff]
    %v3137 = vld [vmem:[#allocation4 + $0x460] sm:$0xff]
    %v3138 = vld [vmem:[#allocation4 + $0x468] sm:$0xff]
    %v3139 = vld [vmem:[#allocation4 + $0x470] sm:$0xff]
    %v3140 = vld [vmem:[#allocation4 + $0x478] sm:$0xff]
    %v3141 = vld [vmem:[#allocation4 + $0x480] sm:$0xff]
    %v3142 = vld [vmem:[#allocation4 + $0x488] sm:$0xff]
    %v3143 = vld [vmem:[#allocation4 + $0x490] sm:$0xff]
    %v3144 = vld [vmem:[#allocation4 + $0x498] sm:$0xff]
    %v3145 = vld [vmem:[#allocation4 + $0x4a0] sm:$0xff]
    %v3146 = vld [vmem:[#allocation4 + $0x4a8] sm:$0xff]
    %v3147 = vld [vmem:[#allocation4 + $0x4b0] sm:$0xff]
    %v3148 = vld [vmem:[#allocation4 + $0x4b8] sm:$0xff]
    %v3149 = vld [vmem:[#allocation4 + $0x4c0] sm:$0xff]
    %v3150 = vld [vmem:[#allocation4 + $0x4c8] sm:$0xff]
    %v3151 = vld [vmem:[#allocation4 + $0x4d0] sm:$0xff]
    %v3152 = vld [vmem:[#allocation4 + $0x4d8] sm:$0xff]
    %v3153 = vld [vmem:[#allocation4 + $0x4e0] sm:$0xff]
    %v3154 = vld [vmem:[#allocation4 + $0x4e8] sm:$0xff]
    %v3155 = vld [vmem:[#allocation4 + $0x4f0] sm:$0xff]
    %v3156 = vld [vmem:[#allocation4 + $0x4f8] sm:$0xff]
    %v3157 = vld [vmem:[#allocation4 + $0x500] sm:$0xff]
    %v3158 = vld [vmem:[#allocation4 + $0x508] sm:$0xff]
    %v3159 = vld [vmem:[#allocation4 + $0x510] sm:$0xff]
    %v3160 = vld [vmem:[#allocation4 + $0x518] sm:$0xff]
    %v3161 = vld [vmem:[#allocation4 + $0x520] sm:$0xff]
    %v3162 = vld [vmem:[#allocation4 + $0x528] sm:$0xff]
    %v3163 = vld [vmem:[#allocation4 + $0x530] sm:$0xff]
    %v3164 = vld [vmem:[#allocation4 + $0x538] sm:$0xff]
    %v3165 = vld [vmem:[#allocation4 + $0x540] sm:$0xff]
    %v3166 = vld [vmem:[#allocation4 + $0x548] sm:$0xff]
    %v3167 = vld [vmem:[#allocation4 + $0x550] sm:$0xff]
    %v3168 = vld [vmem:[#allocation4 + $0x558] sm:$0xff]
    %v3169 = vld [vmem:[#allocation4 + $0x560] sm:$0xff]
    %v3170 = vld [vmem:[#allocation4 + $0x568] sm:$0xff]
    %v3171 = vld [vmem:[#allocation4 + $0x570] sm:$0xff]
    %v3172 = vld [vmem:[#allocation4 + $0x578] sm:$0xff]
    %v3173 = vld [vmem:[#allocation4 + $0x580] sm:$0xff]
    %v3174 = vld [vmem:[#allocation4 + $0x588] sm:$0xff]
    %v3175 = vld [vmem:[#allocation4 + $0x590] sm:$0xff]
    %v3176 = vld [vmem:[#allocation4 + $0x598] sm:$0xff]
    %v3177 = vld [vmem:[#allocation4 + $0x5a0] sm:$0xff]
    %v3178 = vld [vmem:[#allocation4 + $0x5a8] sm:$0xff]
    %v3179 = vld [vmem:[#allocation4 + $0x5b0] sm:$0xff]
    %v3180 = vld [vmem:[#allocation4 + $0x5b8] sm:$0xff]
    %v3181 = vld [vmem:[#allocation4 + $0x5c0] sm:$0xff]
    %v3182 = vld [vmem:[#allocation4 + $0x5c8] sm:$0xff]
    %v3183 = vld [vmem:[#allocation4 + $0x5d0] sm:$0xff]
    %v3184 = vld [vmem:[#allocation4 + $0x5d8] sm:$0xff]
    %v3185 = vld [vmem:[#allocation4 + $0x5e0] sm:$0xff]
    %v3186 = vld [vmem:[#allocation4 + $0x5e8] sm:$0xff]
    %v3187 = vld [vmem:[#allocation4 + $0x5f0] sm:$0xff]
    %v3188 = vld [vmem:[#allocation4 + $0x5f8] sm:$0xff]
    %v3189 = vld [vmem:[#allocation4 + $0x600] sm:$0xff]
    %v3190 = vld [vmem:[#allocation4 + $0x608] sm:$0xff]
    %v3191 = vld [vmem:[#allocation4 + $0x610] sm:$0xff]
    %v3192 = vld [vmem:[#allocation4 + $0x618] sm:$0xff]
    %v3193 = vld [vmem:[#allocation4 + $0x620] sm:$0xff]
    %v3194 = vld [vmem:[#allocation4 + $0x628] sm:$0xff]
    %v3195 = vld [vmem:[#allocation4 + $0x630] sm:$0xff]
    %v3196 = vld [vmem:[#allocation4 + $0x638] sm:$0xff]
    %v3197 = vld [vmem:[#allocation4 + $0x640] sm:$0xff]
    %v3198 = vld [vmem:[#allocation4 + $0x648] sm:$0xff]
    %v3199 = vld [vmem:[#allocation4 + $0x650] sm:$0xff]
    %v3200 = vld [vmem:[#allocation4 + $0x658] sm:$0xff]
    %v3201 = vld [vmem:[#allocation4 + $0x660] sm:$0xff]
    %v3202 = vld [vmem:[#allocation4 + $0x668] sm:$0xff]
    %v3203 = vld [vmem:[#allocation4 + $0x670] sm:$0xff]
    %v3204 = vld [vmem:[#allocation4 + $0x678] sm:$0xff]
    %v3205 = vld [vmem:[#allocation4 + $0x680] sm:$0xff]
    %v3206 = vld [vmem:[#allocation4 + $0x688] sm:$0xff]
    %v3207 = vld [vmem:[#allocation4 + $0x690] sm:$0xff]
    %v3208 = vld [vmem:[#allocation4 + $0x698] sm:$0xff]
    %v3209 = vld [vmem:[#allocation4 + $0x6a0] sm:$0xff]
    %v3210 = vld [vmem:[#allocation4 + $0x6a8] sm:$0xff]
    %v3211 = vld [vmem:[#allocation4 + $0x6b0] sm:$0xff]
    %v3212 = vld [vmem:[#allocation4 + $0x6b8] sm:$0xff]
    %v3213 = vld [vmem:[#allocation4 + $0x6c0] sm:$0xff]
    %v3214 = vld [vmem:[#allocation4 + $0x6c8] sm:$0xff]
    %v3215 = vld [vmem:[#allocation4 + $0x6d0] sm:$0xff]
    %v3216 = vld [vmem:[#allocation4 + $0x6d8] sm:$0xff]
    %v3217 = vld [vmem:[#allocation4 + $0x6e0] sm:$0xff]
    %v3218 = vld [vmem:[#allocation4 + $0x6e8] sm:$0xff]
    %v3219 = vld [vmem:[#allocation4 + $0x6f0] sm:$0xff]
    %v3220 = vld [vmem:[#allocation4 + $0x6f8] sm:$0xff]
    %v3221 = vunpack.c.l.s8.bf16 %v2997
    %v3222 = vunpack.c.l.s8.bf16 %v2998
    %v3223 = vunpack.c.l.s8.bf16 %v2999
    %v3224 = vunpack.c.l.s8.bf16 %v3000
    %v3225 = vunpack.c.l.s8.bf16 %v3001
    %v3226 = vunpack.c.l.s8.bf16 %v3002
    %v3227 = vunpack.c.l.s8.bf16 %v3003
    %v3228 = vunpack.c.h.s8.bf16 %v2997
    %v3229 = vunpack.c.h.s8.bf16 %v2998
    %v3230 = vunpack.c.h.s8.bf16 %v2999
    %v3231 = vunpack.c.h.s8.bf16 %v3000
    %v3232 = vunpack.c.h.s8.bf16 %v3001
    %v3233 = vunpack.c.h.s8.bf16 %v3002
    %v3234 = vunpack.c.h.s8.bf16 %v3003
    %v3235 = vunpack.c.l.s8.bf16 %v3004
    %v3236 = vunpack.c.l.s8.bf16 %v3005
    %v3237 = vunpack.c.l.s8.bf16 %v3006
    %v3238 = vunpack.c.l.s8.bf16 %v3007
    %v3239 = vunpack.c.l.s8.bf16 %v3008
    %v3240 = vunpack.c.l.s8.bf16 %v3009
    %v3241 = vunpack.c.l.s8.bf16 %v3010
    %v3242 = vunpack.c.h.s8.bf16 %v3004
    %v3243 = vunpack.c.h.s8.bf16 %v3005
    %v3244 = vunpack.c.h.s8.bf16 %v3006
    %v3245 = vunpack.c.h.s8.bf16 %v3007
    %v3246 = vunpack.c.h.s8.bf16 %v3008
    %v3247 = vunpack.c.h.s8.bf16 %v3009
    %v3248 = vunpack.c.h.s8.bf16 %v3010
    %v3249 = vunpack.c.l.s8.bf16 %v3011
    %v3250 = vunpack.c.l.s8.bf16 %v3012
    %v3251 = vunpack.c.l.s8.bf16 %v3013
    %v3252 = vunpack.c.l.s8.bf16 %v3014
    %v3253 = vunpack.c.l.s8.bf16 %v3015
    %v3254 = vunpack.c.l.s8.bf16 %v3016
    %v3255 = vunpack.c.l.s8.bf16 %v3017
    %v3256 = vunpack.c.h.s8.bf16 %v3011
    %v3257 = vunpack.c.h.s8.bf16 %v3012
    %v3258 = vunpack.c.h.s8.bf16 %v3013
    %v3259 = vunpack.c.h.s8.bf16 %v3014
    %v3260 = vunpack.c.h.s8.bf16 %v3015
    %v3261 = vunpack.c.h.s8.bf16 %v3016
    %v3262 = vunpack.c.h.s8.bf16 %v3017
    %v3263 = vunpack.c.l.s8.bf16 %v3018
    %v3264 = vunpack.c.l.s8.bf16 %v3019
    %v3265 = vunpack.c.l.s8.bf16 %v3020
    %v3266 = vunpack.c.l.s8.bf16 %v3021
    %v3267 = vunpack.c.l.s8.bf16 %v3022
    %v3268 = vunpack.c.l.s8.bf16 %v3023
    %v3269 = vunpack.c.l.s8.bf16 %v3024
    %v3270 = vunpack.c.h.s8.bf16 %v3018
    %v3271 = vunpack.c.h.s8.bf16 %v3019
    %v3272 = vunpack.c.h.s8.bf16 %v3020
    %v3273 = vunpack.c.h.s8.bf16 %v3021
    %v3274 = vunpack.c.h.s8.bf16 %v3022
    %v3275 = vunpack.c.h.s8.bf16 %v3023
    %v3276 = vunpack.c.h.s8.bf16 %v3024
    %v3277 = vunpack.c.l.s8.bf16 %v3025
    %v3278 = vunpack.c.l.s8.bf16 %v3026
    %v3279 = vunpack.c.l.s8.bf16 %v3027
    %v3280 = vunpack.c.l.s8.bf16 %v3028
    %v3281 = vunpack.c.l.s8.bf16 %v3029
    %v3282 = vunpack.c.l.s8.bf16 %v3030
    %v3283 = vunpack.c.l.s8.bf16 %v3031
    %v3284 = vunpack.c.h.s8.bf16 %v3025
    %v3285 = vunpack.c.h.s8.bf16 %v3026
    %v3286 = vunpack.c.h.s8.bf16 %v3027
    %v3287 = vunpack.c.h.s8.bf16 %v3028
    %v3288 = vunpack.c.h.s8.bf16 %v3029
    %v3289 = vunpack.c.h.s8.bf16 %v3030
    %v3290 = vunpack.c.h.s8.bf16 %v3031
    %v3291 = vunpack.c.l.s8.bf16 %v3032
    %v3292 = vunpack.c.l.s8.bf16 %v3033
    %v3293 = vunpack.c.l.s8.bf16 %v3034
    %v3294 = vunpack.c.l.s8.bf16 %v3035
    %v3295 = vunpack.c.l.s8.bf16 %v3036
    %v3296 = vunpack.c.l.s8.bf16 %v3037
    %v3297 = vunpack.c.l.s8.bf16 %v3038
    %v3298 = vunpack.c.h.s8.bf16 %v3032
    %v3299 = vunpack.c.h.s8.bf16 %v3033
    %v3300 = vunpack.c.h.s8.bf16 %v3034
    %v3301 = vunpack.c.h.s8.bf16 %v3035
    %v3302 = vunpack.c.h.s8.bf16 %v3036
    %v3303 = vunpack.c.h.s8.bf16 %v3037
    %v3304 = vunpack.c.h.s8.bf16 %v3038
    %v3305 = vunpack.c.l.s8.bf16 %v3039
    %v3306 = vunpack.c.l.s8.bf16 %v3040
    %v3307 = vunpack.c.l.s8.bf16 %v3041
    %v3308 = vunpack.c.l.s8.bf16 %v3042
    %v3309 = vunpack.c.l.s8.bf16 %v3043
    %v3310 = vunpack.c.l.s8.bf16 %v3044
    %v3311 = vunpack.c.l.s8.bf16 %v3045
    %v3312 = vunpack.c.h.s8.bf16 %v3039
    %v3313 = vunpack.c.h.s8.bf16 %v3040
    %v3314 = vunpack.c.h.s8.bf16 %v3041
    %v3315 = vunpack.c.h.s8.bf16 %v3042
    %v3316 = vunpack.c.h.s8.bf16 %v3043
    %v3317 = vunpack.c.h.s8.bf16 %v3044
    %v3318 = vunpack.c.h.s8.bf16 %v3045
    %v3319 = vunpack.c.l.s8.bf16 %v3046
    %v3320 = vunpack.c.l.s8.bf16 %v3047
    %v3321 = vunpack.c.l.s8.bf16 %v3048
    %v3322 = vunpack.c.l.s8.bf16 %v3049
    %v3323 = vunpack.c.l.s8.bf16 %v3050
    %v3324 = vunpack.c.l.s8.bf16 %v3051
    %v3325 = vunpack.c.l.s8.bf16 %v3052
    %v3326 = vunpack.c.h.s8.bf16 %v3046
    %v3327 = vunpack.c.h.s8.bf16 %v3047
    %v3328 = vunpack.c.h.s8.bf16 %v3048
    %v3329 = vunpack.c.h.s8.bf16 %v3049
    %v3330 = vunpack.c.h.s8.bf16 %v3050
    %v3331 = vunpack.c.h.s8.bf16 %v3051
    %v3332 = vunpack.c.h.s8.bf16 %v3052
    %v3333 = vunpack.c.l.s8.bf16 %v3053
    %v3334 = vunpack.c.l.s8.bf16 %v3054
    %v3335 = vunpack.c.l.s8.bf16 %v3055
    %v3336 = vunpack.c.l.s8.bf16 %v3056
    %v3337 = vunpack.c.l.s8.bf16 %v3057
    %v3338 = vunpack.c.l.s8.bf16 %v3058
    %v3339 = vunpack.c.l.s8.bf16 %v3059
    %v3340 = vunpack.c.h.s8.bf16 %v3053
    %v3341 = vunpack.c.h.s8.bf16 %v3054
    %v3342 = vunpack.c.h.s8.bf16 %v3055
    %v3343 = vunpack.c.h.s8.bf16 %v3056
    %v3344 = vunpack.c.h.s8.bf16 %v3057
    %v3345 = vunpack.c.h.s8.bf16 %v3058
    %v3346 = vunpack.c.h.s8.bf16 %v3059
    %v3347 = vunpack.c.l.s8.bf16 %v3060
    %v3348 = vunpack.c.l.s8.bf16 %v3061
    %v3349 = vunpack.c.l.s8.bf16 %v3062
    %v3350 = vunpack.c.l.s8.bf16 %v3063
    %v3351 = vunpack.c.l.s8.bf16 %v3064
    %v3352 = vunpack.c.l.s8.bf16 %v3065
    %v3353 = vunpack.c.l.s8.bf16 %v3066
    %v3354 = vunpack.c.h.s8.bf16 %v3060
    %v3355 = vunpack.c.h.s8.bf16 %v3061
    %v3356 = vunpack.c.h.s8.bf16 %v3062
    %v3357 = vunpack.c.h.s8.bf16 %v3063
    %v3358 = vunpack.c.h.s8.bf16 %v3064
    %v3359 = vunpack.c.h.s8.bf16 %v3065
    %v3360 = vunpack.c.h.s8.bf16 %v3066
    %v3361 = vunpack.c.l.s8.bf16 %v3067
    %v3362 = vunpack.c.l.s8.bf16 %v3068
    %v3363 = vunpack.c.l.s8.bf16 %v3069
    %v3364 = vunpack.c.l.s8.bf16 %v3070
    %v3365 = vunpack.c.l.s8.bf16 %v3071
    %v3366 = vunpack.c.l.s8.bf16 %v3072
    %v3367 = vunpack.c.l.s8.bf16 %v3073
    %v3368 = vunpack.c.h.s8.bf16 %v3067
    %v3369 = vunpack.c.h.s8.bf16 %v3068
    %v3370 = vunpack.c.h.s8.bf16 %v3069
    %v3371 = vunpack.c.h.s8.bf16 %v3070
    %v3372 = vunpack.c.h.s8.bf16 %v3071
    %v3373 = vunpack.c.h.s8.bf16 %v3072
    %v3374 = vunpack.c.h.s8.bf16 %v3073
    %v3375 = vunpack.c.l.s8.bf16 %v3074
    %v3376 = vunpack.c.l.s8.bf16 %v3075
    %v3377 = vunpack.c.l.s8.bf16 %v3076
    %v3378 = vunpack.c.l.s8.bf16 %v3077
    %v3379 = vunpack.c.l.s8.bf16 %v3078
    %v3380 = vunpack.c.l.s8.bf16 %v3079
    %v3381 = vunpack.c.l.s8.bf16 %v3080
    %v3382 = vunpack.c.h.s8.bf16 %v3074
    %v3383 = vunpack.c.h.s8.bf16 %v3075
    %v3384 = vunpack.c.h.s8.bf16 %v3076
    %v3385 = vunpack.c.h.s8.bf16 %v3077
    %v3386 = vunpack.c.h.s8.bf16 %v3078
    %v3387 = vunpack.c.h.s8.bf16 %v3079
    %v3388 = vunpack.c.h.s8.bf16 %v3080
    %v3389 = vunpack.c.l.s8.bf16 %v3081
    %v3390 = vunpack.c.l.s8.bf16 %v3082
    %v3391 = vunpack.c.l.s8.bf16 %v3083
    %v3392 = vunpack.c.l.s8.bf16 %v3084
    %v3393 = vunpack.c.l.s8.bf16 %v3085
    %v3394 = vunpack.c.l.s8.bf16 %v3086
    %v3395 = vunpack.c.l.s8.bf16 %v3087
    %v3396 = vunpack.c.h.s8.bf16 %v3081
    %v3397 = vunpack.c.h.s8.bf16 %v3082
    %v3398 = vunpack.c.h.s8.bf16 %v3083
    %v3399 = vunpack.c.h.s8.bf16 %v3084
    %v3400 = vunpack.c.h.s8.bf16 %v3085
    %v3401 = vunpack.c.h.s8.bf16 %v3086
    %v3402 = vunpack.c.h.s8.bf16 %v3087
    %v3403 = vunpack.c.l.s8.bf16 %v3088
    %v3404 = vunpack.c.l.s8.bf16 %v3089
    %v3405 = vunpack.c.l.s8.bf16 %v3090
    %v3406 = vunpack.c.l.s8.bf16 %v3091
    %v3407 = vunpack.c.l.s8.bf16 %v3092
    %v3408 = vunpack.c.l.s8.bf16 %v3093
    %v3409 = vunpack.c.l.s8.bf16 %v3094
    %v3410 = vunpack.c.h.s8.bf16 %v3088
    %v3411 = vunpack.c.h.s8.bf16 %v3089
    %v3412 = vunpack.c.h.s8.bf16 %v3090
    %v3413 = vunpack.c.h.s8.bf16 %v3091
    %v3414 = vunpack.c.h.s8.bf16 %v3092
    %v3415 = vunpack.c.h.s8.bf16 %v3093
    %v3416 = vunpack.c.h.s8.bf16 %v3094
    %v3417 = vunpack.c.l.s8.bf16 %v3095
    %v3418 = vunpack.c.l.s8.bf16 %v3096
    %v3419 = vunpack.c.l.s8.bf16 %v3097
    %v3420 = vunpack.c.l.s8.bf16 %v3098
    %v3421 = vunpack.c.l.s8.bf16 %v3099
    %v3422 = vunpack.c.l.s8.bf16 %v3100
    %v3423 = vunpack.c.l.s8.bf16 %v3101
    %v3424 = vunpack.c.h.s8.bf16 %v3095
    %v3425 = vunpack.c.h.s8.bf16 %v3096
    %v3426 = vunpack.c.h.s8.bf16 %v3097
    %v3427 = vunpack.c.h.s8.bf16 %v3098
    %v3428 = vunpack.c.h.s8.bf16 %v3099
    %v3429 = vunpack.c.h.s8.bf16 %v3100
    %v3430 = vunpack.c.h.s8.bf16 %v3101
    %v3431 = vunpack.c.l.s8.bf16 %v3102
    %v3432 = vunpack.c.l.s8.bf16 %v3103
    %v3433 = vunpack.c.l.s8.bf16 %v3104
    %v3434 = vunpack.c.l.s8.bf16 %v3105
    %v3435 = vunpack.c.l.s8.bf16 %v3106
    %v3436 = vunpack.c.l.s8.bf16 %v3107
    %v3437 = vunpack.c.l.s8.bf16 %v3108
    %v3438 = vunpack.c.h.s8.bf16 %v3102
    %v3439 = vunpack.c.h.s8.bf16 %v3103
    %v3440 = vunpack.c.h.s8.bf16 %v3104
    %v3441 = vunpack.c.h.s8.bf16 %v3105
    %v3442 = vunpack.c.h.s8.bf16 %v3106
    %v3443 = vunpack.c.h.s8.bf16 %v3107
    %v3444 = vunpack.c.h.s8.bf16 %v3108
    %v3445 = vunpack.c.l.s8.bf16 %v3109
    %v3446 = vunpack.c.l.s8.bf16 %v3110
    %v3447 = vunpack.c.l.s8.bf16 %v3111
    %v3448 = vunpack.c.l.s8.bf16 %v3112
    %v3449 = vunpack.c.l.s8.bf16 %v3113
    %v3450 = vunpack.c.l.s8.bf16 %v3114
    %v3451 = vunpack.c.l.s8.bf16 %v3115
    %v3452 = vunpack.c.h.s8.bf16 %v3109
    %v3453 = vunpack.c.h.s8.bf16 %v3110
    %v3454 = vunpack.c.h.s8.bf16 %v3111
    %v3455 = vunpack.c.h.s8.bf16 %v3112
    %v3456 = vunpack.c.h.s8.bf16 %v3113
    %v3457 = vunpack.c.h.s8.bf16 %v3114
    %v3458 = vunpack.c.h.s8.bf16 %v3115
    %v3459 = vunpack.c.l.s8.bf16 %v3116
    %v3460 = vunpack.c.l.s8.bf16 %v3117
    %v3461 = vunpack.c.l.s8.bf16 %v3118
    %v3462 = vunpack.c.l.s8.bf16 %v3119
    %v3463 = vunpack.c.l.s8.bf16 %v3120
    %v3464 = vunpack.c.l.s8.bf16 %v3121
    %v3465 = vunpack.c.l.s8.bf16 %v3122
    %v3466 = vunpack.c.h.s8.bf16 %v3116
    %v3467 = vunpack.c.h.s8.bf16 %v3117
    %v3468 = vunpack.c.h.s8.bf16 %v3118
    %v3469 = vunpack.c.h.s8.bf16 %v3119
    %v3470 = vunpack.c.h.s8.bf16 %v3120
    %v3471 = vunpack.c.h.s8.bf16 %v3121
    %v3472 = vunpack.c.h.s8.bf16 %v3122
    %v3473 = vunpack.c.l.s8.bf16 %v3123
    %v3474 = vunpack.c.l.s8.bf16 %v3124
    %v3475 = vunpack.c.l.s8.bf16 %v3125
    %v3476 = vunpack.c.l.s8.bf16 %v3126
    %v3477 = vunpack.c.l.s8.bf16 %v3127
    %v3478 = vunpack.c.l.s8.bf16 %v3128
    %v3479 = vunpack.c.l.s8.bf16 %v3129
    %v3480 = vunpack.c.h.s8.bf16 %v3123
    %v3481 = vunpack.c.h.s8.bf16 %v3124
    %v3482 = vunpack.c.h.s8.bf16 %v3125
    %v3483 = vunpack.c.h.s8.bf16 %v3126
    %v3484 = vunpack.c.h.s8.bf16 %v3127
    %v3485 = vunpack.c.h.s8.bf16 %v3128
    %v3486 = vunpack.c.h.s8.bf16 %v3129
    %v3487 = vunpack.c.l.s8.bf16 %v3130
    %v3488 = vunpack.c.l.s8.bf16 %v3131
    %v3489 = vunpack.c.l.s8.bf16 %v3132
    %v3490 = vunpack.c.l.s8.bf16 %v3133
    %v3491 = vunpack.c.l.s8.bf16 %v3134
    %v3492 = vunpack.c.l.s8.bf16 %v3135
    %v3493 = vunpack.c.l.s8.bf16 %v3136
    %v3494 = vunpack.c.h.s8.bf16 %v3130
    %v3495 = vunpack.c.h.s8.bf16 %v3131
    %v3496 = vunpack.c.h.s8.bf16 %v3132
    %v3497 = vunpack.c.h.s8.bf16 %v3133
    %v3498 = vunpack.c.h.s8.bf16 %v3134
    %v3499 = vunpack.c.h.s8.bf16 %v3135
    %v3500 = vunpack.c.h.s8.bf16 %v3136
    %v3501 = vunpack.c.l.s8.bf16 %v3137
    %v3502 = vunpack.c.l.s8.bf16 %v3138
    %v3503 = vunpack.c.l.s8.bf16 %v3139
    %v3504 = vunpack.c.l.s8.bf16 %v3140
    %v3505 = vunpack.c.l.s8.bf16 %v3141
    %v3506 = vunpack.c.l.s8.bf16 %v3142
    %v3507 = vunpack.c.l.s8.bf16 %v3143
    %v3508 = vunpack.c.h.s8.bf16 %v3137
    %v3509 = vunpack.c.h.s8.bf16 %v3138
    %v3510 = vunpack.c.h.s8.bf16 %v3139
    %v3511 = vunpack.c.h.s8.bf16 %v3140
    %v3512 = vunpack.c.h.s8.bf16 %v3141
    %v3513 = vunpack.c.h.s8.bf16 %v3142
    %v3514 = vunpack.c.h.s8.bf16 %v3143
    %v3515 = vunpack.c.l.s8.bf16 %v3144
    %v3516 = vunpack.c.l.s8.bf16 %v3145
    %v3517 = vunpack.c.l.s8.bf16 %v3146
    %v3518 = vunpack.c.l.s8.bf16 %v3147
    %v3519 = vunpack.c.l.s8.bf16 %v3148
    %v3520 = vunpack.c.l.s8.bf16 %v3149
    %v3521 = vunpack.c.l.s8.bf16 %v3150
    %v3522 = vunpack.c.h.s8.bf16 %v3144
    %v3523 = vunpack.c.h.s8.bf16 %v3145
    %v3524 = vunpack.c.h.s8.bf16 %v3146
    %v3525 = vunpack.c.h.s8.bf16 %v3147
    %v3526 = vunpack.c.h.s8.bf16 %v3148
    %v3527 = vunpack.c.h.s8.bf16 %v3149
    %v3528 = vunpack.c.h.s8.bf16 %v3150
    %v3529 = vunpack.c.l.s8.bf16 %v3151
    %v3530 = vunpack.c.l.s8.bf16 %v3152
    %v3531 = vunpack.c.l.s8.bf16 %v3153
    %v3532 = vunpack.c.l.s8.bf16 %v3154
    %v3533 = vunpack.c.l.s8.bf16 %v3155
    %v3534 = vunpack.c.l.s8.bf16 %v3156
    %v3535 = vunpack.c.l.s8.bf16 %v3157
    %v3536 = vunpack.c.h.s8.bf16 %v3151
    %v3537 = vunpack.c.h.s8.bf16 %v3152
    %v3538 = vunpack.c.h.s8.bf16 %v3153
    %v3539 = vunpack.c.h.s8.bf16 %v3154
    %v3540 = vunpack.c.h.s8.bf16 %v3155
    %v3541 = vunpack.c.h.s8.bf16 %v3156
    %v3542 = vunpack.c.h.s8.bf16 %v3157
    %v3543 = vunpack.c.l.s8.bf16 %v3158
    %v3544 = vunpack.c.l.s8.bf16 %v3159
    %v3545 = vunpack.c.l.s8.bf16 %v3160
    %v3546 = vunpack.c.l.s8.bf16 %v3161
    %v3547 = vunpack.c.l.s8.bf16 %v3162
    %v3548 = vunpack.c.l.s8.bf16 %v3163
    %v3549 = vunpack.c.l.s8.bf16 %v3164
    %v3550 = vunpack.c.h.s8.bf16 %v3158
    %v3551 = vunpack.c.h.s8.bf16 %v3159
    %v3552 = vunpack.c.h.s8.bf16 %v3160
    %v3553 = vunpack.c.h.s8.bf16 %v3161
    %v3554 = vunpack.c.h.s8.bf16 %v3162
    %v3555 = vunpack.c.h.s8.bf16 %v3163
    %v3556 = vunpack.c.h.s8.bf16 %v3164
    %v3557 = vunpack.c.l.s8.bf16 %v3165
    %v3558 = vunpack.c.l.s8.bf16 %v3166
    %v3559 = vunpack.c.l.s8.bf16 %v3167
    %v3560 = vunpack.c.l.s8.bf16 %v3168
    %v3561 = vunpack.c.l.s8.bf16 %v3169
    %v3562 = vunpack.c.l.s8.bf16 %v3170
    %v3563 = vunpack.c.l.s8.bf16 %v3171
    %v3564 = vunpack.c.h.s8.bf16 %v3165
    %v3565 = vunpack.c.h.s8.bf16 %v3166
    %v3566 = vunpack.c.h.s8.bf16 %v3167
    %v3567 = vunpack.c.h.s8.bf16 %v3168
    %v3568 = vunpack.c.h.s8.bf16 %v3169
    %v3569 = vunpack.c.h.s8.bf16 %v3170
    %v3570 = vunpack.c.h.s8.bf16 %v3171
    %v3571 = vunpack.c.l.s8.bf16 %v3172
    %v3572 = vunpack.c.l.s8.bf16 %v3173
    %v3573 = vunpack.c.l.s8.bf16 %v3174
    %v3574 = vunpack.c.l.s8.bf16 %v3175
    %v3575 = vunpack.c.l.s8.bf16 %v3176
    %v3576 = vunpack.c.l.s8.bf16 %v3177
    %v3577 = vunpack.c.l.s8.bf16 %v3178
    %v3578 = vunpack.c.h.s8.bf16 %v3172
    %v3579 = vunpack.c.h.s8.bf16 %v3173
    %v3580 = vunpack.c.h.s8.bf16 %v3174
    %v3581 = vunpack.c.h.s8.bf16 %v3175
    %v3582 = vunpack.c.h.s8.bf16 %v3176
    %v3583 = vunpack.c.h.s8.bf16 %v3177
    %v3584 = vunpack.c.h.s8.bf16 %v3178
    %v3585 = vunpack.c.l.s8.bf16 %v3179
    %v3586 = vunpack.c.l.s8.bf16 %v3180
    %v3587 = vunpack.c.l.s8.bf16 %v3181
    %v3588 = vunpack.c.l.s8.bf16 %v3182
    %v3589 = vunpack.c.l.s8.bf16 %v3183
    %v3590 = vunpack.c.l.s8.bf16 %v3184
    %v3591 = vunpack.c.l.s8.bf16 %v3185
    %v3592 = vunpack.c.h.s8.bf16 %v3179
    %v3593 = vunpack.c.h.s8.bf16 %v3180
    %v3594 = vunpack.c.h.s8.bf16 %v3181
    %v3595 = vunpack.c.h.s8.bf16 %v3182
    %v3596 = vunpack.c.h.s8.bf16 %v3183
    %v3597 = vunpack.c.h.s8.bf16 %v3184
    %v3598 = vunpack.c.h.s8.bf16 %v3185
    %v3599 = vunpack.c.l.s8.bf16 %v3186
    %v3600 = vunpack.c.l.s8.bf16 %v3187
    %v3601 = vunpack.c.l.s8.bf16 %v3188
    %v3602 = vunpack.c.l.s8.bf16 %v3189
    %v3603 = vunpack.c.l.s8.bf16 %v3190
    %v3604 = vunpack.c.l.s8.bf16 %v3191
    %v3605 = vunpack.c.l.s8.bf16 %v3192
    %v3606 = vunpack.c.h.s8.bf16 %v3186
    %v3607 = vunpack.c.h.s8.bf16 %v3187
    %v3608 = vunpack.c.h.s8.bf16 %v3188
    %v3609 = vunpack.c.h.s8.bf16 %v3189
    %v3610 = vunpack.c.h.s8.bf16 %v3190
    %v3611 = vunpack.c.h.s8.bf16 %v3191
    %v3612 = vunpack.c.h.s8.bf16 %v3192
    %v3613 = vunpack.c.l.s8.bf16 %v3193
    %v3614 = vunpack.c.l.s8.bf16 %v3194
    %v3615 = vunpack.c.l.s8.bf16 %v3195
    %v3616 = vunpack.c.l.s8.bf16 %v3196
    %v3617 = vunpack.c.l.s8.bf16 %v3197
    %v3618 = vunpack.c.l.s8.bf16 %v3198
    %v3619 = vunpack.c.l.s8.bf16 %v3199
    %v3620 = vunpack.c.h.s8.bf16 %v3193
    %v3621 = vunpack.c.h.s8.bf16 %v3194
    %v3622 = vunpack.c.h.s8.bf16 %v3195
    %v3623 = vunpack.c.h.s8.bf16 %v3196
    %v3624 = vunpack.c.h.s8.bf16 %v3197
    %v3625 = vunpack.c.h.s8.bf16 %v3198
    %v3626 = vunpack.c.h.s8.bf16 %v3199
    %v3627 = vunpack.c.l.s8.bf16 %v3200
    %v3628 = vunpack.c.l.s8.bf16 %v3201
    %v3629 = vunpack.c.l.s8.bf16 %v3202
    %v3630 = vunpack.c.l.s8.bf16 %v3203
    %v3631 = vunpack.c.l.s8.bf16 %v3204
    %v3632 = vunpack.c.l.s8.bf16 %v3205
    %v3633 = vunpack.c.l.s8.bf16 %v3206
    %v3634 = vunpack.c.h.s8.bf16 %v3200
    %v3635 = vunpack.c.h.s8.bf16 %v3201
    %v3636 = vunpack.c.h.s8.bf16 %v3202
    %v3637 = vunpack.c.h.s8.bf16 %v3203
    %v3638 = vunpack.c.h.s8.bf16 %v3204
    %v3639 = vunpack.c.h.s8.bf16 %v3205
    %v3640 = vunpack.c.h.s8.bf16 %v3206
    %v3641 = vunpack.c.l.s8.bf16 %v3207
    %v3642 = vunpack.c.l.s8.bf16 %v3208
    %v3643 = vunpack.c.l.s8.bf16 %v3209
    %v3644 = vunpack.c.l.s8.bf16 %v3210
    %v3645 = vunpack.c.l.s8.bf16 %v3211
    %v3646 = vunpack.c.l.s8.bf16 %v3212
    %v3647 = vunpack.c.l.s8.bf16 %v3213
    %v3648 = vunpack.c.h.s8.bf16 %v3207
    %v3649 = vunpack.c.h.s8.bf16 %v3208
    %v3650 = vunpack.c.h.s8.bf16 %v3209
    %v3651 = vunpack.c.h.s8.bf16 %v3210
    %v3652 = vunpack.c.h.s8.bf16 %v3211
    %v3653 = vunpack.c.h.s8.bf16 %v3212
    %v3654 = vunpack.c.h.s8.bf16 %v3213
    %v3655 = vunpack.c.l.s8.bf16 %v3214
    %v3656 = vunpack.c.l.s8.bf16 %v3215
    %v3657 = vunpack.c.l.s8.bf16 %v3216
    %v3658 = vunpack.c.l.s8.bf16 %v3217
    %v3659 = vunpack.c.l.s8.bf16 %v3218
    %v3660 = vunpack.c.l.s8.bf16 %v3219
    %v3661 = vunpack.c.l.s8.bf16 %v3220
    %v3662 = vunpack.c.h.s8.bf16 %v3214
    %v3663 = vunpack.c.h.s8.bf16 %v3215
    %v3664 = vunpack.c.h.s8.bf16 %v3216
    %v3665 = vunpack.c.h.s8.bf16 %v3217
    %v3666 = vunpack.c.h.s8.bf16 %v3218
    %v3667 = vunpack.c.h.s8.bf16 %v3219
    %v3668 = vunpack.c.h.s8.bf16 %v3220
    %3669 = vmatprep.subr.bf16.mxu0 %v3222
    %3670 = vmatpush1.bf16.msra.mxu0 %v3221
    %3671 = vmatprep.subr.bf16.mxu0 %v3229
    %3672 = vmatpush1.bf16.msra.mxu0 %v3228
    %3673 = vmatprep.subr.bf16.mxu0 %v3236
    %3674 = vmatpush1.bf16.msra.mxu0 %v3235
    %3675 = vmatprep.subr.bf16.mxu0 %v3243
    %3676 = vmatpush1.bf16.msra.mxu0 %v3242
    %3677 = vmatprep.subr.bf16.mxu0 %v3250
    %3678 = vmatpush1.bf16.msra.mxu0 %v3249
    %3679 = vmatprep.subr.bf16.mxu0 %v3257
    %3680 = vmatpush1.bf16.msra.mxu0 %v3256
    %3681 = vmatprep.subr.bf16.mxu0 %v3264
    %3682 = vmatpush1.bf16.msra.mxu0 %v3263
    %3683 = vmatprep.subr.bf16.mxu0 %v3271
    %3684 = vmatpush1.bf16.msra.mxu0 %v3270
    %3685 = vmatprep.subr.bf16.mxu0 %v3278
    %3686 = vmatpush1.bf16.msra.mxu0 %v3277
    %3687 = vmatprep.subr.bf16.mxu0 %v3285
    %3688 = vmatpush1.bf16.msra.mxu0 %v3284
    %3689 = vmatprep.subr.bf16.mxu0 %v3292
    %3690 = vmatpush1.bf16.msra.mxu0 %v3291
    %3691 = vmatprep.subr.bf16.mxu0 %v3299
    %3692 = vmatpush1.bf16.msra.mxu0 %v3298
    %3693 = vmatprep.subr.bf16.mxu0 %v3306
    %3694 = vmatpush1.bf16.msra.mxu0 %v3305
    %3695 = vmatprep.subr.bf16.mxu0 %v3313
    %3696 = vmatpush1.bf16.msra.mxu0 %v3312
    %3697 = vmatprep.subr.bf16.mxu0 %v3320
    %3698 = vmatpush1.bf16.msra.mxu0 %v3319
    %3699 = vmatprep.subr.bf16.mxu0 %v3327
    %3700 = vmatpush1.bf16.msra.mxu0 %v3326
    %3701 = vmatprep.mubr.bf16.mxu0 %v2966
    %3702 = vmatmul.mubr.bf16.gmra.mrb[0].mxu0 %v2965
    %v3703 = vpop.f32.mrb[0].mxu0
    %v3704 = vadd.f32 0.0, %v3703
    %v3705 = vpop.f32.mrb[0].mxu0
    %v3706 = vadd.f32 0.0, %v3705
    %v3707 = vpop.f32.mrb[0].mxu0
    %v3708 = vadd.f32 0.0, %v3707
    %v3709 = vpop.f32.mrb[0].mxu0
    %v3710 = vadd.f32 0.0, %v3709
    %3711 = vmatprep.mubr.bf16.mxu0 %v2974
    %3712 = vmatmul.mubr.bf16.gmra.mrb[0].mxu0 %v2973
    %v3713 = vpop.f32.mrb[0].mxu0
    %v3714 = vadd.f32 0.0, %v3713
    %v3715 = vpop.f32.mrb[0].mxu0
    %v3716 = vadd.f32 0.0, %v3715
    %v3717 = vpop.f32.mrb[0].mxu0
    %v3718 = vadd.f32 0.0, %v3717
    %v3719 = vpop.f32.mrb[0].mxu0
    %v3720 = vadd.f32 0.0, %v3719
    %3721 = vmatprep.mubr.bf16.mxu0 %v2982
    %3722 = vmatmul.mubr.bf16.gmra.mrb[0].mxu0 %v2981
    %v3723 = vpop.f32.mrb[0].mxu0
    %v3724 = vadd.f32 0.0, %v3723
    %v3725 = vpop.f32.mrb[0].mxu0
    %v3726 = vadd.f32 0.0, %v3725
    %v3727 = vpop.f32.mrb[0].mxu0
    %v3728 = vadd.f32 0.0, %v3727
    %v3729 = vpop.f32.mrb[0].mxu0
    %v3730 = vadd.f32 0.0, %v3729
    %3731 = vmatprep.mubr.bf16.mxu0 %v2990
    %3732 = vmatmul.mubr.bf16.gmra.mrb[0].mxu0 %v2989
    %v3733 = vpop.f32.mrb[0].mxu0
    %v3734 = vadd.f32 0.0, %v3733
    %v3735 = vpop.f32.mrb[0].mxu0
    %v3736 = vadd.f32 0.0, %v3735
    %v3737 = vpop.f32.mrb[0].mxu0
    %v3738 = vadd.f32 0.0, %v3737
    %v3739 = vpop.f32.mrb[0].mxu0
    %v3740 = vadd.f32 0.0, %v3739
    %3741 = vdwg.mxu0
    %3742 = vmatprep.subr.bf16.mxu0 %v3334
    %3743 = vmatpush1.bf16.msra.mxu0 %v3333
    %3744 = vmatprep.subr.bf16.mxu0 %v3341
    %3745 = vmatpush1.bf16.msra.mxu0 %v3340
    %3746 = vmatprep.subr.bf16.mxu0 %v3348
    %3747 = vmatpush1.bf16.msra.mxu0 %v3347
    %3748 = vmatprep.subr.bf16.mxu0 %v3355
    %3749 = vmatpush1.bf16.msra.mxu0 %v3354
    %3750 = vmatprep.subr.bf16.mxu0 %v3362
    %3751 = vmatpush1.bf16.msra.mxu0 %v3361
    %3752 = vmatprep.subr.bf16.mxu0 %v3369
    %3753 = vmatpush1.bf16.msra.mxu0 %v3368
    %3754 = vmatprep.subr.bf16.mxu0 %v3376
    %3755 = vmatpush1.bf16.msra.mxu0 %v3375
    %3756 = vmatprep.subr.bf16.mxu0 %v3383
    %3757 = vmatpush1.bf16.msra.mxu0 %v3382
    %3758 = vmatprep.subr.bf16.mxu0 %v3390
    %3759 = vmatpush1.bf16.msra.mxu0 %v3389
    %3760 = vmatprep.subr.bf16.mxu0 %v3397
    %3761 = vmatpush1.bf16.msra.mxu0 %v3396
    %3762 = vmatprep.subr.bf16.mxu0 %v3404
    %3763 = vmatpush1.bf16.msra.mxu0 %v3403
    %3764 = vmatprep.subr.bf16.mxu0 %v3411
    %3765 = vmatpush1.bf16.msra.mxu0 %v3410
    %3766 = vmatprep.subr.bf16.mxu0 %v3418
    %3767 = vmatpush1.bf16.msra.mxu0 %v3417
    %3768 = vmatprep.subr.bf16.mxu0 %v3425
    %3769 = vmatpush1.bf16.msra.mxu0 %v3424
    %3770 = vmatprep.subr.bf16.mxu0 %v3432
    %3771 = vmatpush1.bf16.msra.mxu0 %v3431
    %3772 = vmatprep.subr.bf16.mxu0 %v3439
    %3773 = vmatpush1.bf16.msra.mxu0 %v3438
    %3774 = vmatprep.mubr.bf16.mxu0 %v2968
    %3775 = vmatmul.mubr.bf16.gmra.mrb[0].mxu0 %v2967
    %v3776 = vpop.f32.mrb[0].mxu0
    %v3777 = vadd.f32 %v3704, %v3776
    %v3778 = vpop.f32.mrb[0].mxu0
    %v3779 = vadd.f32 %v3706, %v3778
    %v3780 = vpop.f32.mrb[0].mxu0
    %v3781 = vadd.f32 %v3708, %v3780
    %v3782 = vpop.f32.mrb[0].mxu0
    %v3783 = vadd.f32 %v3710, %v3782
    %3784 = vmatprep.mubr.bf16.mxu0 %v2976
    %3785 = vmatmul.mubr.bf16.gmra.mrb[0].mxu0 %v2975
    %v3786 = vpop.f32.mrb[0].mxu0
    %v3787 = vadd.f32 %v3714, %v3786
    %v3788 = vpop.f32.mrb[0].mxu0
    %v3789 = vadd.f32 %v3716, %v3788
    %v3790 = vpop.f32.mrb[0].mxu0
    %v3791 = vadd.f32 %v3718, %v3790
    %v3792 = vpop.f32.mrb[0].mxu0
    %v3793 = vadd.f32 %v3720, %v3792
    %3794 = vmatprep.mubr.bf16.mxu0 %v2984
    %3795 = vmatmul.mubr.bf16.gmra.mrb[0].mxu0 %v2983
    %v3796 = vpop.f32.mrb[0].mxu0
    %v3797 = vadd.f32 %v3724, %v3796
    %v3798 = vpop.f32.mrb[0].mxu0
    %v3799 = vadd.f32 %v3726, %v3798
    %v3800 = vpop.f32.mrb[0].mxu0
    %v3801 = vadd.f32 %v3728, %v3800
    %v3802 = vpop.f32.mrb[0].mxu0
    %v3803 = vadd.f32 %v3730, %v3802
    %3804 = vmatprep.mubr.bf16.mxu0 %v2992
    %3805 = vmatmul.mubr.bf16.gmra.mrb[0].mxu0 %v2991
    %v3806 = vpop.f32.mrb[0].mxu0
    %v3807 = vadd.f32 %v3734, %v3806
    %v3808 = vpop.f32.mrb[0].mxu0
    %v3809 = vadd.f32 %v3736, %v3808
    %v3810 = vpop.f32.mrb[0].mxu0
    %v3811 = vadd.f32 %v3738, %v3810
    %v3812 = vpop.f32.mrb[0].mxu0
    %v3813 = vadd.f32 %v3740, %v3812
    %3814 = vdwg.mxu0
    %3815 = vmatprep.subr.bf16.mxu0 %v3446
    %3816 = vmatpush1.bf16.msra.mxu0 %v3445
    %3817 = vmatprep.subr.bf16.mxu0 %v3453
    %3818 = vmatpush1.bf16.msra.mxu0 %v3452
    %3819 = vmatprep.subr.bf16.mxu0 %v3460
    %3820 = vmatpush1.bf16.msra.mxu0 %v3459
    %3821 = vmatprep.subr.bf16.mxu0 %v3467
    %3822 = vmatpush1.bf16.msra.mxu0 %v3466
    %3823 = vmatprep.subr.bf16.mxu0 %v3474
    %3824 = vmatpush1.bf16.msra.mxu0 %v3473
    %3825 = vmatprep.subr.bf16.mxu0 %v3481
    %3826 = vmatpush1.bf16.msra.mxu0 %v3480
    %3827 = vmatprep.subr.bf16.mxu0 %v3488
    %3828 = vmatpush1.bf16.msra.mxu0 %v3487
    %3829 = vmatprep.subr.bf16.mxu0 %v3495
    %3830 = vmatpush1.bf16.msra.mxu0 %v3494
    %3831 = vmatprep.subr.bf16.mxu0 %v3502
    %3832 = vmatpush1.bf16.msra.mxu0 %v3501
    %3833 = vmatprep.subr.bf16.mxu0 %v3509
    %3834 = vmatpush1.bf16.msra.mxu0 %v3508
    %3835 = vmatprep.subr.bf16.mxu0 %v3516
    %3836 = vmatpush1.bf16.msra.mxu0 %v3515
    %3837 = vmatprep.subr.bf16.mxu0 %v3523
    %3838 = vmatpush1.bf16.msra.mxu0 %v3522
    %3839 = vmatprep.subr.bf16.mxu0 %v3530
    %3840 = vmatpush1.bf16.msra.mxu0 %v3529
    %3841 = vmatprep.subr.bf16.mxu0 %v3537
    %3842 = vmatpush1.bf16.msra.mxu0 %v3536
    %3843 = vmatprep.subr.bf16.mxu0 %v3544
    %3844 = vmatpush1.bf16.msra.mxu0 %v3543
    %3845 = vmatprep.subr.bf16.mxu0 %v3551
    %3846 = vmatpush1.bf16.msra.mxu0 %v3550
    %3847 = vmatprep.mubr.bf16.mxu0 %v2970
    %3848 = vmatmul.mubr.bf16.gmra.mrb[0].mxu0 %v2969
    %v3849 = vpop.f32.mrb[0].mxu0
    %v3850 = vadd.f32 %v3777, %v3849
    %v3851 = vpop.f32.mrb[0].mxu0
    %v3852 = vadd.f32 %v3779, %v3851
    %v3853 = vpop.f32.mrb[0].mxu0
    %v3854 = vadd.f32 %v3781, %v3853
    %v3855 = vpop.f32.mrb[0].mxu0
    %v3856 = vadd.f32 %v3783, %v3855
    %3857 = vmatprep.mubr.bf16.mxu0 %v2978
    %3858 = vmatmul.mubr.bf16.gmra.mrb[0].mxu0 %v2977
    %v3859 = vpop.f32.mrb[0].mxu0
    %v3860 = vadd.f32 %v3787, %v3859
    %v3861 = vpop.f32.mrb[0].mxu0
    %v3862 = vadd.f32 %v3789, %v3861
    %v3863 = vpop.f32.mrb[0].mxu0
    %v3864 = vadd.f32 %v3791, %v3863
    %v3865 = vpop.f32.mrb[0].mxu0
    %v3866 = vadd.f32 %v3793, %v3865
    %3867 = vmatprep.mubr.bf16.mxu0 %v2986
    %3868 = vmatmul.mubr.bf16.gmra.mrb[0].mxu0 %v2985
    %v3869 = vpop.f32.mrb[0].mxu0
    %v3870 = vadd.f32 %v3797, %v3869
    %v3871 = vpop.f32.mrb[0].mxu0
    %v3872 = vadd.f32 %v3799, %v3871
    %v3873 = vpop.f32.mrb[0].mxu0
    %v3874 = vadd.f32 %v3801, %v3873
    %v3875 = vpop.f32.mrb[0].mxu0
    %v3876 = vadd.f32 %v3803, %v3875
    %3877 = vmatprep.mubr.bf16.mxu0 %v2994
    %3878 = vmatmul.mubr.bf16.gmra.mrb[0].mxu0 %v2993
    %v3879 = vpop.f32.mrb[0].mxu0
    %v3880 = vadd.f32 %v3807, %v3879
    %v3881 = vpop.f32.mrb[0].mxu0
    %v3882 = vadd.f32 %v3809, %v3881
    %v3883 = vpop.f32.mrb[0].mxu0
    %v3884 = vadd.f32 %v3811, %v3883
    %v3885 = vpop.f32.mrb[0].mxu0
    %v3886 = vadd.f32 %v3813, %v3885
    %3887 = vdwg.mxu0
    %3888 = vmatprep.subr.bf16.mxu0 %v3558
    %3889 = vmatpush1.bf16.msra.mxu0 %v3557
    %3890 = vmatprep.subr.bf16.mxu0 %v3565
    %3891 = vmatpush1.bf16.msra.mxu0 %v3564
    %3892 = vmatprep.subr.bf16.mxu0 %v3572
    %3893 = vmatpush1.bf16.msra.mxu0 %v3571
    %3894 = vmatprep.subr.bf16.mxu0 %v3579
    %3895 = vmatpush1.bf16.msra.mxu0 %v3578
    %3896 = vmatprep.subr.bf16.mxu0 %v3586
    %3897 = vmatpush1.bf16.msra.mxu0 %v3585
    %3898 = vmatprep.subr.bf16.mxu0 %v3593
    %3899 = vmatpush1.bf16.msra.mxu0 %v3592
    %3900 = vmatprep.subr.bf16.mxu0 %v3600
    %3901 = vmatpush1.bf16.msra.mxu0 %v3599
    %3902 = vmatprep.subr.bf16.mxu0 %v3607
    %3903 = vmatpush1.bf16.msra.mxu0 %v3606
    %3904 = vmatprep.subr.bf16.mxu0 %v3614
    %3905 = vmatpush1.bf16.msra.mxu0 %v3613
    %3906 = vmatprep.subr.bf16.mxu0 %v3621
    %3907 = vmatpush1.bf16.msra.mxu0 %v3620
    %3908 = vmatprep.subr.bf16.mxu0 %v3628
    %3909 = vmatpush1.bf16.msra.mxu0 %v3627
    %3910 = vmatprep.subr.bf16.mxu0 %v3635
    %3911 = vmatpush1.bf16.msra.mxu0 %v3634
    %3912 = vmatprep.subr.bf16.mxu0 %v3642
    %3913 = vmatpush1.bf16.msra.mxu0 %v3641
    %3914 = vmatprep.subr.bf16.mxu0 %v3649
    %3915 = vmatpush1.bf16.msra.mxu0 %v3648
    %3916 = vmatprep.subr.bf16.mxu0 %v3656
    %3917 = vmatpush1.bf16.msra.mxu0 %v3655
    %3918 = vmatprep.subr.bf16.mxu0 %v3663
    %3919 = vmatpush1.bf16.msra.mxu0 %v3662
    %3920 = vmatprep.mubr.bf16.mxu0 %v2972
    %3921 = vmatmul.mubr.bf16.gmra.mrb[0].mxu0 %v2971
    %v3922 = vpop.f32.mrb[0].mxu0
    %v3923 = vadd.f32 %v3850, %v3922
    %v3924 = vpop.f32.mrb[0].mxu0
    %v3925 = vadd.f32 %v3852, %v3924
    %v3926 = vpop.f32.mrb[0].mxu0
    %v3927 = vadd.f32 %v3854, %v3926
    %v3928 = vpop.f32.mrb[0].mxu0
    %v3929 = vadd.f32 %v3856, %v3928
    %3930 = vmatprep.mubr.bf16.mxu0 %v2980
    %3931 = vmatmul.mubr.bf16.gmra.mrb[0].mxu0 %v2979
    %v3932 = vpop.f32.mrb[0].mxu0
    %v3933 = vadd.f32 %v3860, %v3932
    %v3934 = vpop.f32.mrb[0].mxu0
    %v3935 = vadd.f32 %v3862, %v3934
    %v3936 = vpop.f32.mrb[0].mxu0
    %v3937 = vadd.f32 %v3864, %v3936
    %v3938 = vpop.f32.mrb[0].mxu0
    %v3939 = vadd.f32 %v3866, %v3938
    %3940 = vmatprep.mubr.bf16.mxu0 %v2988
    %3941 = vmatmul.mubr.bf16.gmra.mrb[0].mxu0 %v2987
    %v3942 = vpop.f32.mrb[0].mxu0
    %v3943 = vadd.f32 %v3870, %v3942
    %v3944 = vpop.f32.mrb[0].mxu0
    %v3945 = vadd.f32 %v3872, %v3944
    %v3946 = vpop.f32.mrb[0].mxu0
    %v3947 = vadd.f32 %v3874, %v3946
    %v3948 = vpop.f32.mrb[0].mxu0
    %v3949 = vadd.f32 %v3876, %v3948
    %3950 = vmatprep.mubr.bf16.mxu0 %v2996
    %3951 = vmatmul.mubr.bf16.gmra.mrb[0].mxu0 %v2995
    %v3952 = vpop.f32.mrb[0].mxu0
    %v3953 = vadd.f32 %v3880, %v3952
    %v3954 = vpop.f32.mrb[0].mxu0
    %v3955 = vadd.f32 %v3882, %v3954
    %v3956 = vpop.f32.mrb[0].mxu0
    %v3957 = vadd.f32 %v3884, %v3956
    %v3958 = vpop.f32.mrb[0].mxu0
    %v3959 = vadd.f32 %v3886, %v3958
    %3960 = vdwg.mxu0
    %3961 = vmatprep.subr.bf16.mxu0 %v3224
    %3962 = vmatpush1.bf16.msra.mxu0 %v3223
    %3963 = vmatprep.subr.bf16.mxu0 %v3231
    %3964 = vmatpush1.bf16.msra.mxu0 %v3230
    %3965 = vmatprep.subr.bf16.mxu0 %v3238
    %3966 = vmatpush1.bf16.msra.mxu0 %v3237
    %3967 = vmatprep.subr.bf16.mxu0 %v3245
    %3968 = vmatpush1.bf16.msra.mxu0 %v3244
    %3969 = vmatprep.subr.bf16.mxu0 %v3252
    %3970 = vmatpush1.bf16.msra.mxu0 %v3251
    %3971 = vmatprep.subr.bf16.mxu0 %v3259
    %3972 = vmatpush1.bf16.msra.mxu0 %v3258
    %3973 = vmatprep.subr.bf16.mxu0 %v3266
    %3974 = vmatpush1.bf16.msra.mxu0 %v3265
    %3975 = vmatprep.subr.bf16.mxu0 %v3273
    %3976 = vmatpush1.bf16.msra.mxu0 %v3272
    %3977 = vmatprep.subr.bf16.mxu0 %v3280
    %3978 = vmatpush1.bf16.msra.mxu0 %v3279
    %3979 = vmatprep.subr.bf16.mxu0 %v3287
    %3980 = vmatpush1.bf16.msra.mxu0 %v3286
    %3981 = vmatprep.subr.bf16.mxu0 %v3294
    %3982 = vmatpush1.bf16.msra.mxu0 %v3293
    %3983 = vmatprep.subr.bf16.mxu0 %v3301
    %3984 = vmatpush1.bf16.msra.mxu0 %v3300
    %3985 = vmatprep.subr.bf16.mxu0 %v3308
    %3986 = vmatpush1.bf16.msra.mxu0 %v3307
    %3987 = vmatprep.subr.bf16.mxu0 %v3315
    %3988 = vmatpush1.bf16.msra.mxu0 %v3314
    %3989 = vmatprep.subr.bf16.mxu0 %v3322
    %3990 = vmatpush1.bf16.msra.mxu0 %v3321
    %3991 = vmatprep.subr.bf16.mxu0 %v3329
    %3992 = vmatpush1.bf16.msra.mxu0 %v3328
    %3993 = vmatprep.mubr.bf16.mxu0 %v2966
    %3994 = vmatmul.mubr.bf16.gmra.mrb[0].mxu0 %v2965
    %v3995 = vpop.f32.mrb[0].mxu0
    %v3996 = vadd.f32 0.0, %v3995
    %v3997 = vpop.f32.mrb[0].mxu0
    %v3998 = vadd.f32 0.0, %v3997
    %v3999 = vpop.f32.mrb[0].mxu0
    %v4000 = vadd.f32 0.0, %v3999
    %v4001 = vpop.f32.mrb[0].mxu0
    %v4002 = vadd.f32 0.0, %v4001
    %4003 = vmatprep.mubr.bf16.mxu0 %v2974
    %4004 = vmatmul.mubr.bf16.gmra.mrb[0].mxu0 %v2973
    %v4005 = vpop.f32.mrb[0].mxu0
    %v4006 = vadd.f32 0.0, %v4005
    %v4007 = vpop.f32.mrb[0].mxu0
    %v4008 = vadd.f32 0.0, %v4007
    %v4009 = vpop.f32.mrb[0].mxu0
    %v4010 = vadd.f32 0.0, %v4009
    %v4011 = vpop.f32.mrb[0].mxu0
    %v4012 = vadd.f32 0.0, %v4011
    %4013 = vmatprep.mubr.bf16.mxu0 %v2982
    %4014 = vmatmul.mubr.bf16.gmra.mrb[0].mxu0 %v2981
    %v4015 = vpop.f32.mrb[0].mxu0
    %v4016 = vadd.f32 0.0, %v4015
    %v4017 = vpop.f32.mrb[0].mxu0
    %v4018 = vadd.f32 0.0, %v4017
    %v4019 = vpop.f32.mrb[0].mxu0
    %v4020 = vadd.f32 0.0, %v4019
    %v4021 = vpop.f32.mrb[0].mxu0
    %v4022 = vadd.f32 0.0, %v4021
    %4023 = vmatprep.mubr.bf16.mxu0 %v2990
    %4024 = vmatmul.mubr.bf16.gmra.mrb[0].mxu0 %v2989
    %v4025 = vpop.f32.mrb[0].mxu0
    %v4026 = vadd.f32 0.0, %v4025
    %v4027 = vpop.f32.mrb[0].mxu0
    %v4028 = vadd.f32 0.0, %v4027
    %v4029 = vpop.f32.mrb[0].mxu0
    %v4030 = vadd.f32 0.0, %v4029
    %v4031 = vpop.f32.mrb[0].mxu0
    %v4032 = vadd.f32 0.0, %v4031
    %4033 = vdwg.mxu0
    %4034 = vmatprep.subr.bf16.mxu0 %v3336
    %4035 = vmatpush1.bf16.msra.mxu0 %v3335
    %4036 = vmatprep.subr.bf16.mxu0 %v3343
    %4037 = vmatpush1.bf16.msra.mxu0 %v3342
    %4038 = vmatprep.subr.bf16.mxu0 %v3350
    %4039 = vmatpush1.bf16.msra.mxu0 %v3349
    %4040 = vmatprep.subr.bf16.mxu0 %v3357
    %4041 = vmatpush1.bf16.msra.mxu0 %v3356
    %4042 = vmatprep.subr.bf16.mxu0 %v3364
    %4043 = vmatpush1.bf16.msra.mxu0 %v3363
    %4044 = vmatprep.subr.bf16.mxu0 %v3371
    %4045 = vmatpush1.bf16.msra.mxu0 %v3370
    %4046 = vmatprep.subr.bf16.mxu0 %v3378
    %4047 = vmatpush1.bf16.msra.mxu0 %v3377
    %4048 = vmatprep.subr.bf16.mxu0 %v3385
    %4049 = vmatpush1.bf16.msra.mxu0 %v3384
    %4050 = vmatprep.subr.bf16.mxu0 %v3392
    %4051 = vmatpush1.bf16.msra.mxu0 %v3391
    %4052 = vmatprep.subr.bf16.mxu0 %v3399
    %4053 = vmatpush1.bf16.msra.mxu0 %v3398
    %4054 = vmatprep.subr.bf16.mxu0 %v3406
    %4055 = vmatpush1.bf16.msra.mxu0 %v3405
    %4056 = vmatprep.subr.bf16.mxu0 %v3413
    %4057 = vmatpush1.bf16.msra.mxu0 %v3412
    %4058 = vmatprep.subr.bf16.mxu0 %v3420
    %4059 = vmatpush1.bf16.msra.mxu0 %v3419
    %4060 = vmatprep.subr.bf16.mxu0 %v3427
    %4061 = vmatpush1.bf16.msra.mxu0 %v3426
    %4062 = vmatprep.subr.bf16.mxu0 %v3434
    %4063 = vmatpush1.bf16.msra.mxu0 %v3433
    %4064 = vmatprep.subr.bf16.mxu0 %v3441
    %4065 = vmatpush1.bf16.msra.mxu0 %v3440
    %4066 = vmatprep.mubr.bf16.mxu0 %v2968
    %4067 = vmatmul.mubr.bf16.gmra.mrb[0].mxu0 %v2967
    %v4068 = vpop.f32.mrb[0].mxu0
    %v4069 = vadd.f32 %v3996, %v4068
    %v4070 = vpop.f32.mrb[0].mxu0
    %v4071 = vadd.f32 %v3998, %v4070
    %v4072 = vpop.f32.mrb[0].mxu0
    %v4073 = vadd.f32 %v4000, %v4072
    %v4074 = vpop.f32.mrb[0].mxu0
    %v4075 = vadd.f32 %v4002, %v4074
    %4076 = vmatprep.mubr.bf16.mxu0 %v2976
    %4077 = vmatmul.mubr.bf16.gmra.mrb[0].mxu0 %v2975
    %v4078 = vpop.f32.mrb[0].mxu0
    %v4079 = vadd.f32 %v4006, %v4078
    %v4080 = vpop.f32.mrb[0].mxu0
    %v4081 = vadd.f32 %v4008, %v4080
    %v4082 = vpop.f32.mrb[0].mxu0
    %v4083 = vadd.f32 %v4010, %v4082
    %v4084 = vpop.f32.mrb[0].mxu0
    %v4085 = vadd.f32 %v4012, %v4084
    %4086 = vmatprep.mubr.bf16.mxu0 %v2984
    %4087 = vmatmul.mubr.bf16.gmra.mrb[0].mxu0 %v2983
    %v4088 = vpop.f32.mrb[0].mxu0
    %v4089 = vadd.f32 %v4016, %v4088
    %v4090 = vpop.f32.mrb[0].mxu0
    %v4091 = vadd.f32 %v4018, %v4090
    %v4092 = vpop.f32.mrb[0].mxu0
    %v4093 = vadd.f32 %v4020, %v4092
    %v4094 = vpop.f32.mrb[0].mxu0
    %v4095 = vadd.f32 %v4022, %v4094
    %4096 = vmatprep.mubr.bf16.mxu0 %v2992
    %4097 = vmatmul.mubr.bf16.gmra.mrb[0].mxu0 %v2991
    %v4098 = vpop.f32.mrb[0].mxu0
    %v4099 = vadd.f32 %v4026, %v4098
    %v4100 = vpop.f32.mrb[0].mxu0
    %v4101 = vadd.f32 %v4028, %v4100
    %v4102 = vpop.f32.mrb[0].mxu0
    %v4103 = vadd.f32 %v4030, %v4102
    %v4104 = vpop.f32.mrb[0].mxu0
    %v4105 = vadd.f32 %v4032, %v4104
    %4106 = vdwg.mxu0
    %4107 = vmatprep.subr.bf16.mxu0 %v3448
    %4108 = vmatpush1.bf16.msra.mxu0 %v3447
    %4109 = vmatprep.subr.bf16.mxu0 %v3455
    %4110 = vmatpush1.bf16.msra.mxu0 %v3454
    %4111 = vmatprep.subr.bf16.mxu0 %v3462
    %4112 = vmatpush1.bf16.msra.mxu0 %v3461
    %4113 = vmatprep.subr.bf16.mxu0 %v3469
    %4114 = vmatpush1.bf16.msra.mxu0 %v3468
    %4115 = vmatprep.subr.bf16.mxu0 %v3476
    %4116 = vmatpush1.bf16.msra.mxu0 %v3475
    %4117 = vmatprep.subr.bf16.mxu0 %v3483
    %4118 = vmatpush1.bf16.msra.mxu0 %v3482
    %4119 = vmatprep.subr.bf16.mxu0 %v3490
    %4120 = vmatpush1.bf16.msra.mxu0 %v3489
    %4121 = vmatprep.subr.bf16.mxu0 %v3497
    %4122 = vmatpush1.bf16.msra.mxu0 %v3496
    %4123 = vmatprep.subr.bf16.mxu0 %v3504
    %4124 = vmatpush1.bf16.msra.mxu0 %v3503
    %4125 = vmatprep.subr.bf16.mxu0 %v3511
    %4126 = vmatpush1.bf16.msra.mxu0 %v3510
    %4127 = vmatprep.subr.bf16.mxu0 %v3518
    %4128 = vmatpush1.bf16.msra.mxu0 %v3517
    %4129 = vmatprep.subr.bf16.mxu0 %v3525
    %4130 = vmatpush1.bf16.msra.mxu0 %v3524
    %4131 = vmatprep.subr.bf16.mxu0 %v3532
    %4132 = vmatpush1.bf16.msra.mxu0 %v3531
    %4133 = vmatprep.subr.bf16.mxu0 %v3539
    %4134 = vmatpush1.bf16.msra.mxu0 %v3538
    %4135 = vmatprep.subr.bf16.mxu0 %v3546
    %4136 = vmatpush1.bf16.msra.mxu0 %v3545
    %4137 = vmatprep.subr.bf16.mxu0 %v3553
    %4138 = vmatpush1.bf16.msra.mxu0 %v3552
    %4139 = vmatprep.mubr.bf16.mxu0 %v2970
    %4140 = vmatmul.mubr.bf16.gmra.mrb[0].mxu0 %v2969
    %v4141 = vpop.f32.mrb[0].mxu0
    %v4142 = vadd.f32 %v4069, %v4141
    %v4143 = vpop.f32.mrb[0].mxu0
    %v4144 = vadd.f32 %v4071, %v4143
    %v4145 = vpop.f32.mrb[0].mxu0
    %v4146 = vadd.f32 %v4073, %v4145
    %v4147 = vpop.f32.mrb[0].mxu0
    %v4148 = vadd.f32 %v4075, %v4147
    %4149 = vmatprep.mubr.bf16.mxu0 %v2978
    %4150 = vmatmul.mubr.bf16.gmra.mrb[0].mxu0 %v2977
    %v4151 = vpop.f32.mrb[0].mxu0
    %v4152 = vadd.f32 %v4079, %v4151
    %v4153 = vpop.f32.mrb[0].mxu0
    %v4154 = vadd.f32 %v4081, %v4153
    %v4155 = vpop.f32.mrb[0].mxu0
    %v4156 = vadd.f32 %v4083, %v4155
    %v4157 = vpop.f32.mrb[0].mxu0
    %v4158 = vadd.f32 %v4085, %v4157
    %4159 = vmatprep.mubr.bf16.mxu0 %v2986
    %4160 = vmatmul.mubr.bf16.gmra.mrb[0].mxu0 %v2985
    %v4161 = vpop.f32.mrb[0].mxu0
    %v4162 = vadd.f32 %v4089, %v4161
    %v4163 = vpop.f32.mrb[0].mxu0
    %v4164 = vadd.f32 %v4091, %v4163
    %v4165 = vpop.f32.mrb[0].mxu0
    %v4166 = vadd.f32 %v4093, %v4165
    %v4167 = vpop.f32.mrb[0].mxu0
    %v4168 = vadd.f32 %v4095, %v4167
    %4169 = vmatprep.mubr.bf16.mxu0 %v2994
    %4170 = vmatmul.mubr.bf16.gmra.mrb[0].mxu0 %v2993
    %v4171 = vpop.f32.mrb[0].mxu0
    %v4172 = vadd.f32 %v4099, %v4171
    %v4173 = vpop.f32.mrb[0].mxu0
    %v4174 = vadd.f32 %v4101, %v4173
    %v4175 = vpop.f32.mrb[0].mxu0
    %v4176 = vadd.f32 %v4103, %v4175
    %v4177 = vpop.f32.mrb[0].mxu0
    %v4178 = vadd.f32 %v4105, %v4177
    %4179 = vdwg.mxu0
    %4180 = vmatprep.subr.bf16.mxu0 %v3560
    %4181 = vmatpush1.bf16.msra.mxu0 %v3559
    %4182 = vmatprep.subr.bf16.mxu0 %v3567
    %4183 = vmatpush1.bf16.msra.mxu0 %v3566
    %4184 = vmatprep.subr.bf16.mxu0 %v3574
    %4185 = vmatpush1.bf16.msra.mxu0 %v3573
    %4186 = vmatprep.subr.bf16.mxu0 %v3581
    %4187 = vmatpush1.bf16.msra.mxu0 %v3580
    %4188 = vmatprep.subr.bf16.mxu0 %v3588
    %4189 = vmatpush1.bf16.msra.mxu0 %v3587
    %4190 = vmatprep.subr.bf16.mxu0 %v3595
    %4191 = vmatpush1.bf16.msra.mxu0 %v3594
    %4192 = vmatprep.subr.bf16.mxu0 %v3602
    %4193 = vmatpush1.bf16.msra.mxu0 %v3601
    %4194 = vmatprep.subr.bf16.mxu0 %v3609
    %4195 = vmatpush1.bf16.msra.mxu0 %v3608
    %4196 = vmatprep.subr.bf16.mxu0 %v3616
    %4197 = vmatpush1.bf16.msra.mxu0 %v3615
    %4198 = vmatprep.subr.bf16.mxu0 %v3623
    %4199 = vmatpush1.bf16.msra.mxu0 %v3622
    %4200 = vmatprep.subr.bf16.mxu0 %v3630
    %4201 = vmatpush1.bf16.msra.mxu0 %v3629
    %4202 = vmatprep.subr.bf16.mxu0 %v3637
    %4203 = vmatpush1.bf16.msra.mxu0 %v3636
    %4204 = vmatprep.subr.bf16.mxu0 %v3644
    %4205 = vmatpush1.bf16.msra.mxu0 %v3643
    %4206 = vmatprep.subr.bf16.mxu0 %v3651
    %4207 = vmatpush1.bf16.msra.mxu0 %v3650
    %4208 = vmatprep.subr.bf16.mxu0 %v3658
    %4209 = vmatpush1.bf16.msra.mxu0 %v3657
    %4210 = vmatprep.subr.bf16.mxu0 %v3665
    %4211 = vmatpush1.bf16.msra.mxu0 %v3664
    %4212 = vmatprep.mubr.bf16.mxu0 %v2972
    %4213 = vmatmul.mubr.bf16.gmra.mrb[0].mxu0 %v2971
    %v4214 = vpop.f32.mrb[0].mxu0
    %v4215 = vadd.f32 %v4142, %v4214
    %v4216 = vpop.f32.mrb[0].mxu0
    %v4217 = vadd.f32 %v4144, %v4216
    %v4218 = vpop.f32.mrb[0].mxu0
    %v4219 = vadd.f32 %v4146, %v4218
    %v4220 = vpop.f32.mrb[0].mxu0
    %v4221 = vadd.f32 %v4148, %v4220
    %4222 = vmatprep.mubr.bf16.mxu0 %v2980
    %4223 = vmatmul.mubr.bf16.gmra.mrb[0].mxu0 %v2979
    %v4224 = vpop.f32.mrb[0].mxu0
    %v4225 = vadd.f32 %v4152, %v4224
    %v4226 = vpop.f32.mrb[0].mxu0
    %v4227 = vadd.f32 %v4154, %v4226
    %v4228 = vpop.f32.mrb[0].mxu0
    %v4229 = vadd.f32 %v4156, %v4228
    %v4230 = vpop.f32.mrb[0].mxu0
    %v4231 = vadd.f32 %v4158, %v4230
    %4232 = vmatprep.mubr.bf16.mxu0 %v2988
    %4233 = vmatmul.mubr.bf16.gmra.mrb[0].mxu0 %v2987
    %v4234 = vpop.f32.mrb[0].mxu0
    %v4235 = vadd.f32 %v4162, %v4234
    %v4236 = vpop.f32.mrb[0].mxu0
    %v4237 = vadd.f32 %v4164, %v4236
    %v4238 = vpop.f32.mrb[0].mxu0
    %v4239 = vadd.f32 %v4166, %v4238
    %v4240 = vpop.f32.mrb[0].mxu0
    %v4241 = vadd.f32 %v4168, %v4240
    %4242 = vmatprep.mubr.bf16.mxu0 %v2996
    %4243 = vmatmul.mubr.bf16.gmra.mrb[0].mxu0 %v2995
    %v4244 = vpop.f32.mrb[0].mxu0
    %v4245 = vadd.f32 %v4172, %v4244
    %v4246 = vpop.f32.mrb[0].mxu0
    %v4247 = vadd.f32 %v4174, %v4246
    %v4248 = vpop.f32.mrb[0].mxu0
    %v4249 = vadd.f32 %v4176, %v4248
    %v4250 = vpop.f32.mrb[0].mxu0
    %v4251 = vadd.f32 %v4178, %v4250
    %4252 = vdwg.mxu0
    %4253 = vmatprep.subr.bf16.mxu0 %v3226
    %4254 = vmatpush1.bf16.msra.mxu0 %v3225
    %4255 = vmatprep.subr.bf16.mxu0 %v3233
    %4256 = vmatpush1.bf16.msra.mxu0 %v3232
    %4257 = vmatprep.subr.bf16.mxu0 %v3240
    %4258 = vmatpush1.bf16.msra.mxu0 %v3239
    %4259 = vmatprep.subr.bf16.mxu0 %v3247
    %4260 = vmatpush1.bf16.msra.mxu0 %v3246
    %4261 = vmatprep.subr.bf16.mxu0 %v3254
    %4262 = vmatpush1.bf16.msra.mxu0 %v3253
    %4263 = vmatprep.subr.bf16.mxu0 %v3261
    %4264 = vmatpush1.bf16.msra.mxu0 %v3260
    %4265 = vmatprep.subr.bf16.mxu0 %v3268
    %4266 = vmatpush1.bf16.msra.mxu0 %v3267
    %4267 = vmatprep.subr.bf16.mxu0 %v3275
    %4268 = vmatpush1.bf16.msra.mxu0 %v3274
    %4269 = vmatprep.subr.bf16.mxu0 %v3282
    %4270 = vmatpush1.bf16.msra.mxu0 %v3281
    %4271 = vmatprep.subr.bf16.mxu0 %v3289
    %4272 = vmatpush1.bf16.msra.mxu0 %v3288
    %4273 = vmatprep.subr.bf16.mxu0 %v3296
    %4274 = vmatpush1.bf16.msra.mxu0 %v3295
    %4275 = vmatprep.subr.bf16.mxu0 %v3303
    %4276 = vmatpush1.bf16.msra.mxu0 %v3302
    %4277 = vmatprep.subr.bf16.mxu0 %v3310
    %4278 = vmatpush1.bf16.msra.mxu0 %v3309
    %4279 = vmatprep.subr.bf16.mxu0 %v3317
    %4280 = vmatpush1.bf16.msra.mxu0 %v3316
    %4281 = vmatprep.subr.bf16.mxu0 %v3324
    %4282 = vmatpush1.bf16.msra.mxu0 %v3323
    %4283 = vmatprep.subr.bf16.mxu0 %v3331
    %4284 = vmatpush1.bf16.msra.mxu0 %v3330
    %4285 = vmatprep.mubr.bf16.mxu0 %v2966
    %4286 = vmatmul.mubr.bf16.gmra.mrb[0].mxu0 %v2965
    %v4287 = vpop.f32.mrb[0].mxu0
    %v4288 = vadd.f32 0.0, %v4287
    %v4289 = vpop.f32.mrb[0].mxu0
    %v4290 = vadd.f32 0.0, %v4289
    %v4291 = vpop.f32.mrb[0].mxu0
    %v4292 = vadd.f32 0.0, %v4291
    %v4293 = vpop.f32.mrb[0].mxu0
    %v4294 = vadd.f32 0.0, %v4293
    %4295 = vmatprep.mubr.bf16.mxu0 %v2974
    %4296 = vmatmul.mubr.bf16.gmra.mrb[0].mxu0 %v2973
    %v4297 = vpop.f32.mrb[0].mxu0
    %v4298 = vadd.f32 0.0, %v4297
    %v4299 = vpop.f32.mrb[0].mxu0
    %v4300 = vadd.f32 0.0, %v4299
    %v4301 = vpop.f32.mrb[0].mxu0
    %v4302 = vadd.f32 0.0, %v4301
    %v4303 = vpop.f32.mrb[0].mxu0
    %v4304 = vadd.f32 0.0, %v4303
    %4305 = vmatprep.mubr.bf16.mxu0 %v2982
    %4306 = vmatmul.mubr.bf16.gmra.mrb[0].mxu0 %v2981
    %v4307 = vpop.f32.mrb[0].mxu0
    %v4308 = vadd.f32 0.0, %v4307
    %v4309 = vpop.f32.mrb[0].mxu0
    %v4310 = vadd.f32 0.0, %v4309
    %v4311 = vpop.f32.mrb[0].mxu0
    %v4312 = vadd.f32 0.0, %v4311
    %v4313 = vpop.f32.mrb[0].mxu0
    %v4314 = vadd.f32 0.0, %v4313
    %4315 = vmatprep.mubr.bf16.mxu0 %v2990
    %4316 = vmatmul.mubr.bf16.gmra.mrb[0].mxu0 %v2989
    %v4317 = vpop.f32.mrb[0].mxu0
    %v4318 = vadd.f32 0.0, %v4317
    %v4319 = vpop.f32.mrb[0].mxu0
    %v4320 = vadd.f32 0.0, %v4319
    %v4321 = vpop.f32.mrb[0].mxu0
    %v4322 = vadd.f32 0.0, %v4321
    %v4323 = vpop.f32.mrb[0].mxu0
    %v4324 = vadd.f32 0.0, %v4323
    %4325 = vdwg.mxu0
    %4326 = vmatprep.subr.bf16.mxu0 %v3338
    %4327 = vmatpush1.bf16.msra.mxu0 %v3337
    %4328 = vmatprep.subr.bf16.mxu0 %v3345
    %4329 = vmatpush1.bf16.msra.mxu0 %v3344
    %4330 = vmatprep.subr.bf16.mxu0 %v3352
    %4331 = vmatpush1.bf16.msra.mxu0 %v3351
    %4332 = vmatprep.subr.bf16.mxu0 %v3359
    %4333 = vmatpush1.bf16.msra.mxu0 %v3358
    %4334 = vmatprep.subr.bf16.mxu0 %v3366
    %4335 = vmatpush1.bf16.msra.mxu0 %v3365
    %4336 = vmatprep.subr.bf16.mxu0 %v3373
    %4337 = vmatpush1.bf16.msra.mxu0 %v3372
    %4338 = vmatprep.subr.bf16.mxu0 %v3380
    %4339 = vmatpush1.bf16.msra.mxu0 %v3379
    %4340 = vmatprep.subr.bf16.mxu0 %v3387
    %4341 = vmatpush1.bf16.msra.mxu0 %v3386
    %4342 = vmatprep.subr.bf16.mxu0 %v3394
    %4343 = vmatpush1.bf16.msra.mxu0 %v3393
    %4344 = vmatprep.subr.bf16.mxu0 %v3401
    %4345 = vmatpush1.bf16.msra.mxu0 %v3400
    %4346 = vmatprep.subr.bf16.mxu0 %v3408
    %4347 = vmatpush1.bf16.msra.mxu0 %v3407
    %4348 = vmatprep.subr.bf16.mxu0 %v3415
    %4349 = vmatpush1.bf16.msra.mxu0 %v3414
    %4350 = vmatprep.subr.bf16.mxu0 %v3422
    %4351 = vmatpush1.bf16.msra.mxu0 %v3421
    %4352 = vmatprep.subr.bf16.mxu0 %v3429
    %4353 = vmatpush1.bf16.msra.mxu0 %v3428
    %4354 = vmatprep.subr.bf16.mxu0 %v3436
    %4355 = vmatpush1.bf16.msra.mxu0 %v3435
    %4356 = vmatprep.subr.bf16.mxu0 %v3443
    %4357 = vmatpush1.bf16.msra.mxu0 %v3442
    %4358 = vmatprep.mubr.bf16.mxu0 %v2968
    %4359 = vmatmul.mubr.bf16.gmra.mrb[0].mxu0 %v2967
    %v4360 = vpop.f32.mrb[0].mxu0
    %v4361 = vadd.f32 %v4288, %v4360
    %v4362 = vpop.f32.mrb[0].mxu0
    %v4363 = vadd.f32 %v4290, %v4362
    %v4364 = vpop.f32.mrb[0].mxu0
    %v4365 = vadd.f32 %v4292, %v4364
    %v4366 = vpop.f32.mrb[0].mxu0
    %v4367 = vadd.f32 %v4294, %v4366
    %4368 = vmatprep.mubr.bf16.mxu0 %v2976
    %4369 = vmatmul.mubr.bf16.gmra.mrb[0].mxu0 %v2975
    %v4370 = vpop.f32.mrb[0].mxu0
    %v4371 = vadd.f32 %v4298, %v4370
    %v4372 = vpop.f32.mrb[0].mxu0
    %v4373 = vadd.f32 %v4300, %v4372
    %v4374 = vpop.f32.mrb[0].mxu0
    %v4375 = vadd.f32 %v4302, %v4374
    %v4376 = vpop.f32.mrb[0].mxu0
    %v4377 = vadd.f32 %v4304, %v4376
    %4378 = vmatprep.mubr.bf16.mxu0 %v2984
    %4379 = vmatmul.mubr.bf16.gmra.mrb[0].mxu0 %v2983
    %v4380 = vpop.f32.mrb[0].mxu0
    %v4381 = vadd.f32 %v4308, %v4380
    %v4382 = vpop.f32.mrb[0].mxu0
    %v4383 = vadd.f32 %v4310, %v4382
    %v4384 = vpop.f32.mrb[0].mxu0
    %v4385 = vadd.f32 %v4312, %v4384
    %v4386 = vpop.f32.mrb[0].mxu0
    %v4387 = vadd.f32 %v4314, %v4386
    %4388 = vmatprep.mubr.bf16.mxu0 %v2992
    %4389 = vmatmul.mubr.bf16.gmra.mrb[0].mxu0 %v2991
    %v4390 = vpop.f32.mrb[0].mxu0
    %v4391 = vadd.f32 %v4318, %v4390
    %v4392 = vpop.f32.mrb[0].mxu0
    %v4393 = vadd.f32 %v4320, %v4392
    %v4394 = vpop.f32.mrb[0].mxu0
    %v4395 = vadd.f32 %v4322, %v4394
    %v4396 = vpop.f32.mrb[0].mxu0
    %v4397 = vadd.f32 %v4324, %v4396
    %4398 = vdwg.mxu0
    %4399 = vmatprep.subr.bf16.mxu0 %v3450
    %4400 = vmatpush1.bf16.msra.mxu0 %v3449
    %4401 = vmatprep.subr.bf16.mxu0 %v3457
    %4402 = vmatpush1.bf16.msra.mxu0 %v3456
    %4403 = vmatprep.subr.bf16.mxu0 %v3464
    %4404 = vmatpush1.bf16.msra.mxu0 %v3463
    %4405 = vmatprep.subr.bf16.mxu0 %v3471
    %4406 = vmatpush1.bf16.msra.mxu0 %v3470
    %4407 = vmatprep.subr.bf16.mxu0 %v3478
    %4408 = vmatpush1.bf16.msra.mxu0 %v3477
    %4409 = vmatprep.subr.bf16.mxu0 %v3485
    %4410 = vmatpush1.bf16.msra.mxu0 %v3484
    %4411 = vmatprep.subr.bf16.mxu0 %v3492
    %4412 = vmatpush1.bf16.msra.mxu0 %v3491
    %4413 = vmatprep.subr.bf16.mxu0 %v3499
    %4414 = vmatpush1.bf16.msra.mxu0 %v3498
    %4415 = vmatprep.subr.bf16.mxu0 %v3506
    %4416 = vmatpush1.bf16.msra.mxu0 %v3505
    %4417 = vmatprep.subr.bf16.mxu0 %v3513
    %4418 = vmatpush1.bf16.msra.mxu0 %v3512
    %4419 = vmatprep.subr.bf16.mxu0 %v3520
    %4420 = vmatpush1.bf16.msra.mxu0 %v3519
    %4421 = vmatprep.subr.bf16.mxu0 %v3527
    %4422 = vmatpush1.bf16.msra.mxu0 %v3526
    %4423 = vmatprep.subr.bf16.mxu0 %v3534
    %4424 = vmatpush1.bf16.msra.mxu0 %v3533
    %4425 = vmatprep.subr.bf16.mxu0 %v3541
    %4426 = vmatpush1.bf16.msra.mxu0 %v3540
    %4427 = vmatprep.subr.bf16.mxu0 %v3548
    %4428 = vmatpush1.bf16.msra.mxu0 %v3547
    %4429 = vmatprep.subr.bf16.mxu0 %v3555
    %4430 = vmatpush1.bf16.msra.mxu0 %v3554
    %4431 = vmatprep.mubr.bf16.mxu0 %v2970
    %4432 = vmatmul.mubr.bf16.gmra.mrb[0].mxu0 %v2969
    %v4433 = vpop.f32.mrb[0].mxu0
    %v4434 = vadd.f32 %v4361, %v4433
    %v4435 = vpop.f32.mrb[0].mxu0
    %v4436 = vadd.f32 %v4363, %v4435
    %v4437 = vpop.f32.mrb[0].mxu0
    %v4438 = vadd.f32 %v4365, %v4437
    %v4439 = vpop.f32.mrb[0].mxu0
    %v4440 = vadd.f32 %v4367, %v4439
    %4441 = vmatprep.mubr.bf16.mxu0 %v2978
    %4442 = vmatmul.mubr.bf16.gmra.mrb[0].mxu0 %v2977
    %v4443 = vpop.f32.mrb[0].mxu0
    %v4444 = vadd.f32 %v4371, %v4443
    %v4445 = vpop.f32.mrb[0].mxu0
    %v4446 = vadd.f32 %v4373, %v4445
    %v4447 = vpop.f32.mrb[0].mxu0
    %v4448 = vadd.f32 %v4375, %v4447
    %v4449 = vpop.f32.mrb[0].mxu0
    %v4450 = vadd.f32 %v4377, %v4449
    %4451 = vmatprep.mubr.bf16.mxu0 %v2986
    %4452 = vmatmul.mubr.bf16.gmra.mrb[0].mxu0 %v2985
    %v4453 = vpop.f32.mrb[0].mxu0
    %v4454 = vadd.f32 %v4381, %v4453
    %v4455 = vpop.f32.mrb[0].mxu0
    %v4456 = vadd.f32 %v4383, %v4455
    %v4457 = vpop.f32.mrb[0].mxu0
    %v4458 = vadd.f32 %v4385, %v4457
    %v4459 = vpop.f32.mrb[0].mxu0
    %v4460 = vadd.f32 %v4387, %v4459
    %4461 = vmatprep.mubr.bf16.mxu0 %v2994
    %4462 = vmatmul.mubr.bf16.gmra.mrb[0].mxu0 %v2993
    %v4463 = vpop.f32.mrb[0].mxu0
    %v4464 = vadd.f32 %v4391, %v4463
    %v4465 = vpop.f32.mrb[0].mxu0
    %v4466 = vadd.f32 %v4393, %v4465
    %v4467 = vpop.f32.mrb[0].mxu0
    %v4468 = vadd.f32 %v4395, %v4467
    %v4469 = vpop.f32.mrb[0].mxu0
    %v4470 = vadd.f32 %v4397, %v4469
    %4471 = vdwg.mxu0
    %4472 = vmatprep.subr.bf16.mxu0 %v3562
    %4473 = vmatpush1.bf16.msra.mxu0 %v3561
    %4474 = vmatprep.subr.bf16.mxu0 %v3569
    %4475 = vmatpush1.bf16.msra.mxu0 %v3568
    %4476 = vmatprep.subr.bf16.mxu0 %v3576
    %4477 = vmatpush1.bf16.msra.mxu0 %v3575
    %4478 = vmatprep.subr.bf16.mxu0 %v3583
    %4479 = vmatpush1.bf16.msra.mxu0 %v3582
    %4480 = vmatprep.subr.bf16.mxu0 %v3590
    %4481 = vmatpush1.bf16.msra.mxu0 %v3589
    %4482 = vmatprep.subr.bf16.mxu0 %v3597
    %4483 = vmatpush1.bf16.msra.mxu0 %v3596
    %4484 = vmatprep.subr.bf16.mxu0 %v3604
    %4485 = vmatpush1.bf16.msra.mxu0 %v3603
    %4486 = vmatprep.subr.bf16.mxu0 %v3611
    %4487 = vmatpush1.bf16.msra.mxu0 %v3610
    %4488 = vmatprep.subr.bf16.mxu0 %v3618
    %4489 = vmatpush1.bf16.msra.mxu0 %v3617
    %4490 = vmatprep.subr.bf16.mxu0 %v3625
    %4491 = vmatpush1.bf16.msra.mxu0 %v3624
    %4492 = vmatprep.subr.bf16.mxu0 %v3632
    %4493 = vmatpush1.bf16.msra.mxu0 %v3631
    %4494 = vmatprep.subr.bf16.mxu0 %v3639
    %4495 = vmatpush1.bf16.msra.mxu0 %v3638
    %4496 = vmatprep.subr.bf16.mxu0 %v3646
    %4497 = vmatpush1.bf16.msra.mxu0 %v3645
    %4498 = vmatprep.subr.bf16.mxu0 %v3653
    %4499 = vmatpush1.bf16.msra.mxu0 %v3652
    %4500 = vmatprep.subr.bf16.mxu0 %v3660
    %4501 = vmatpush1.bf16.msra.mxu0 %v3659
    %4502 = vmatprep.subr.bf16.mxu0 %v3667
    %4503 = vmatpush1.bf16.msra.mxu0 %v3666
    %4504 = vmatprep.mubr.bf16.mxu0 %v2972
    %4505 = vmatmul.mubr.bf16.gmra.mrb[0].mxu0 %v2971
    %v4506 = vpop.f32.mrb[0].mxu0
    %v4507 = vadd.f32 %v4434, %v4506
    %v4508 = vpop.f32.mrb[0].mxu0
    %v4509 = vadd.f32 %v4436, %v4508
    %v4510 = vpop.f32.mrb[0].mxu0
    %v4511 = vadd.f32 %v4438, %v4510
    %v4512 = vpop.f32.mrb[0].mxu0
    %v4513 = vadd.f32 %v4440, %v4512
    %4514 = vmatprep.mubr.bf16.mxu0 %v2980
    %4515 = vmatmul.mubr.bf16.gmra.mrb[0].mxu0 %v2979
    %v4516 = vpop.f32.mrb[0].mxu0
    %v4517 = vadd.f32 %v4444, %v4516
    %v4518 = vpop.f32.mrb[0].mxu0
    %v4519 = vadd.f32 %v4446, %v4518
    %v4520 = vpop.f32.mrb[0].mxu0
    %v4521 = vadd.f32 %v4448, %v4520
    %v4522 = vpop.f32.mrb[0].mxu0
    %v4523 = vadd.f32 %v4450, %v4522
    %4524 = vmatprep.mubr.bf16.mxu0 %v2988
    %4525 = vmatmul.mubr.bf16.gmra.mrb[0].mxu0 %v2987
    %v4526 = vpop.f32.mrb[0].mxu0
    %v4527 = vadd.f32 %v4454, %v4526
    %v4528 = vpop.f32.mrb[0].mxu0
    %v4529 = vadd.f32 %v4456, %v4528
    %v4530 = vpop.f32.mrb[0].mxu0
    %v4531 = vadd.f32 %v4458, %v4530
    %v4532 = vpop.f32.mrb[0].mxu0
    %v4533 = vadd.f32 %v4460, %v4532
    %4534 = vmatprep.mubr.bf16.mxu0 %v2996
    %4535 = vmatmul.mubr.bf16.gmra.mrb[0].mxu0 %v2995
    %v4536 = vpop.f32.mrb[0].mxu0
    %v4537 = vadd.f32 %v4464, %v4536
    %v4538 = vpop.f32.mrb[0].mxu0
    %v4539 = vadd.f32 %v4466, %v4538
    %v4540 = vpop.f32.mrb[0].mxu0
    %v4541 = vadd.f32 %v4468, %v4540
    %v4542 = vpop.f32.mrb[0].mxu0
    %v4543 = vadd.f32 %v4470, %v4542
    %4544 = vdwg.mxu0
    %4545 = vmatprep.subr.bf16.mxu0 0
    %4546 = vmatpush1.bf16.msra.mxu0 %v3227
    %4547 = vmatprep.subr.bf16.mxu0 0
    %4548 = vmatpush1.bf16.msra.mxu0 %v3234
    %4549 = vmatprep.subr.bf16.mxu0 0
    %4550 = vmatpush1.bf16.msra.mxu0 %v3241
    %4551 = vmatprep.subr.bf16.mxu0 0
    %4552 = vmatpush1.bf16.msra.mxu0 %v3248
    %4553 = vmatprep.subr.bf16.mxu0 0
    %4554 = vmatpush1.bf16.msra.mxu0 %v3255
    %4555 = vmatprep.subr.bf16.mxu0 0
    %4556 = vmatpush1.bf16.msra.mxu0 %v3262
    %4557 = vmatprep.subr.bf16.mxu0 0
    %4558 = vmatpush1.bf16.msra.mxu0 %v3269
    %4559 = vmatprep.subr.bf16.mxu0 0
    %4560 = vmatpush1.bf16.msra.mxu0 %v3276
    %4561 = vmatprep.subr.bf16.mxu0 0
    %4562 = vmatpush1.bf16.msra.mxu0 %v3283
    %4563 = vmatprep.subr.bf16.mxu0 0
    %4564 = vmatpush1.bf16.msra.mxu0 %v3290
    %4565 = vmatprep.subr.bf16.mxu0 0
    %4566 = vmatpush1.bf16.msra.mxu0 %v3297
    %4567 = vmatprep.subr.bf16.mxu0 0
    %4568 = vmatpush1.bf16.msra.mxu0 %v3304
    %4569 = vmatprep.subr.bf16.mxu0 0
    %4570 = vmatpush1.bf16.msra.mxu0 %v3311
    %4571 = vmatprep.subr.bf16.mxu0 0
    %4572 = vmatpush1.bf16.msra.mxu0 %v3318
    %4573 = vmatprep.subr.bf16.mxu0 0
    %4574 = vmatpush1.bf16.msra.mxu0 %v3325
    %4575 = vmatprep.subr.bf16.mxu0 0
    %4576 = vmatpush1.bf16.msra.mxu0 %v3332
    %4577 = vmatprep.mubr.bf16.mxu0 %v2966
    %4578 = vmatmul.mubr.bf16.gmra.mrb[0].mxu0 %v2965
    %v4579 = vpop.f32.mrb[0].mxu0
    %v4580 = vadd.f32 0.0, %v4579
    %v4581 = vpop.f32.mrb[0].mxu0
    %v4582 = vpop.f32.mrb[0].mxu0
    %v4583 = vadd.f32 0.0, %v4582
    %v4584 = vpop.f32.mrb[0].mxu0
    %4585 = vmatprep.mubr.bf16.mxu0 %v2974
    %4586 = vmatmul.mubr.bf16.gmra.mrb[0].mxu0 %v2973
    %v4587 = vpop.f32.mrb[0].mxu0
    %v4588 = vadd.f32 0.0, %v4587
    %v4589 = vpop.f32.mrb[0].mxu0
    %v4590 = vpop.f32.mrb[0].mxu0
    %v4591 = vadd.f32 0.0, %v4590
    %v4592 = vpop.f32.mrb[0].mxu0
    %4593 = vmatprep.mubr.bf16.mxu0 %v2982
    %4594 = vmatmul.mubr.bf16.gmra.mrb[0].mxu0 %v2981
    %v4595 = vpop.f32.mrb[0].mxu0
    %v4596 = vadd.f32 0.0, %v4595
    %v4597 = vpop.f32.mrb[0].mxu0
    %v4598 = vpop.f32.mrb[0].mxu0
    %v4599 = vadd.f32 0.0, %v4598
    %v4600 = vpop.f32.mrb[0].mxu0
    %4601 = vmatprep.mubr.bf16.mxu0 %v2990
    %4602 = vmatmul.mubr.bf16.gmra.mrb[0].mxu0 %v2989
    %v4603 = vpop.f32.mrb[0].mxu0
    %v4604 = vadd.f32 0.0, %v4603
    %v4605 = vpop.f32.mrb[0].mxu0
    %v4606 = vpop.f32.mrb[0].mxu0
    %v4607 = vadd.f32 0.0, %v4606
    %v4608 = vpop.f32.mrb[0].mxu0
    %4609 = vdwg.mxu0
    %4610 = vmatprep.subr.bf16.mxu0 0
    %4611 = vmatpush1.bf16.msra.mxu0 %v3339
    %4612 = vmatprep.subr.bf16.mxu0 0
    %4613 = vmatpush1.bf16.msra.mxu0 %v3346
    %4614 = vmatprep.subr.bf16.mxu0 0
    %4615 = vmatpush1.bf16.msra.mxu0 %v3353
    %4616 = vmatprep.subr.bf16.mxu0 0
    %4617 = vmatpush1.bf16.msra.mxu0 %v3360
    %4618 = vmatprep.subr.bf16.mxu0 0
    %4619 = vmatpush1.bf16.msra.mxu0 %v3367
    %4620 = vmatprep.subr.bf16.mxu0 0
    %4621 = vmatpush1.bf16.msra.mxu0 %v3374
    %4622 = vmatprep.subr.bf16.mxu0 0
    %4623 = vmatpush1.bf16.msra.mxu0 %v3381
    %4624 = vmatprep.subr.bf16.mxu0 0
    %4625 = vmatpush1.bf16.msra.mxu0 %v3388
    %4626 = vmatprep.subr.bf16.mxu0 0
    %4627 = vmatpush1.bf16.msra.mxu0 %v3395
    %4628 = vmatprep.subr.bf16.mxu0 0
    %4629 = vmatpush1.bf16.msra.mxu0 %v3402
    %4630 = vmatprep.subr.bf16.mxu0 0
    %4631 = vmatpush1.bf16.msra.mxu0 %v3409
    %4632 = vmatprep.subr.bf16.mxu0 0
    %4633 = vmatpush1.bf16.msra.mxu0 %v3416
    %4634 = vmatprep.subr.bf16.mxu0 0
    %4635 = vmatpush1.bf16.msra.mxu0 %v3423
    %4636 = vmatprep.subr.bf16.mxu0 0
    %4637 = vmatpush1.bf16.msra.mxu0 %v3430
    %4638 = vmatprep.subr.bf16.mxu0 0
    %4639 = vmatpush1.bf16.msra.mxu0 %v3437
    %4640 = vmatprep.subr.bf16.mxu0 0
    %4641 = vmatpush1.bf16.msra.mxu0 %v3444
    %4642 = vmatprep.mubr.bf16.mxu0 %v2968
    %4643 = vmatmul.mubr.bf16.gmra.mrb[0].mxu0 %v2967
    %v4644 = vpop.f32.mrb[0].mxu0
    %v4645 = vadd.f32 %v4580, %v4644
    %v4646 = vpop.f32.mrb[0].mxu0
    %v4647 = vpop.f32.mrb[0].mxu0
    %v4648 = vadd.f32 %v4583, %v4647
    %v4649 = vpop.f32.mrb[0].mxu0
    %4650 = vmatprep.mubr.bf16.mxu0 %v2976
    %4651 = vmatmul.mubr.bf16.gmra.mrb[0].mxu0 %v2975
    %v4652 = vpop.f32.mrb[0].mxu0
    %v4653 = vadd.f32 %v4588, %v4652
    %v4654 = vpop.f32.mrb[0].mxu0
    %v4655 = vpop.f32.mrb[0].mxu0
    %v4656 = vadd.f32 %v4591, %v4655
    %v4657 = vpop.f32.mrb[0].mxu0
    %4658 = vmatprep.mubr.bf16.mxu0 %v2984
    %4659 = vmatmul.mubr.bf16.gmra.mrb[0].mxu0 %v2983
    %v4660 = vpop.f32.mrb[0].mxu0
    %v4661 = vadd.f32 %v4596, %v4660
    %v4662 = vpop.f32.mrb[0].mxu0
    %v4663 = vpop.f32.mrb[0].mxu0
    %v4664 = vadd.f32 %v4599, %v4663
    %v4665 = vpop.f32.mrb[0].mxu0
    %4666 = vmatprep.mubr.bf16.mxu0 %v2992
    %4667 = vmatmul.mubr.bf16.gmra.mrb[0].mxu0 %v2991
    %v4668 = vpop.f32.mrb[0].mxu0
    %v4669 = vadd.f32 %v4604, %v4668
    %v4670 = vpop.f32.mrb[0].mxu0
    %v4671 = vpop.f32.mrb[0].mxu0
    %v4672 = vadd.f32 %v4607, %v4671
    %v4673 = vpop.f32.mrb[0].mxu0
    %4674 = vdwg.mxu0
    %4675 = vmatprep.subr.bf16.mxu0 0
    %4676 = vmatpush1.bf16.msra.mxu0 %v3451
    %4677 = vmatprep.subr.bf16.mxu0 0
    %4678 = vmatpush1.bf16.msra.mxu0 %v3458
    %4679 = vmatprep.subr.bf16.mxu0 0
    %4680 = vmatpush1.bf16.msra.mxu0 %v3465
    %4681 = vmatprep.subr.bf16.mxu0 0
    %4682 = vmatpush1.bf16.msra.mxu0 %v3472
    %4683 = vmatprep.subr.bf16.mxu0 0
    %4684 = vmatpush1.bf16.msra.mxu0 %v3479
    %4685 = vmatprep.subr.bf16.mxu0 0
    %4686 = vmatpush1.bf16.msra.mxu0 %v3486
    %4687 = vmatprep.subr.bf16.mxu0 0
    %4688 = vmatpush1.bf16.msra.mxu0 %v3493
    %4689 = vmatprep.subr.bf16.mxu0 0
    %4690 = vmatpush1.bf16.msra.mxu0 %v3500
    %4691 = vmatprep.subr.bf16.mxu0 0
    %4692 = vmatpush1.bf16.msra.mxu0 %v3507
    %4693 = vmatprep.subr.bf16.mxu0 0
    %4694 = vmatpush1.bf16.msra.mxu0 %v3514
    %4695 = vmatprep.subr.bf16.mxu0 0
    %4696 = vmatpush1.bf16.msra.mxu0 %v3521
    %4697 = vmatprep.subr.bf16.mxu0 0
    %4698 = vmatpush1.bf16.msra.mxu0 %v3528
    %4699 = vmatprep.subr.bf16.mxu0 0
    %4700 = vmatpush1.bf16.msra.mxu0 %v3535
    %4701 = vmatprep.subr.bf16.mxu0 0
    %4702 = vmatpush1.bf16.msra.mxu0 %v3542
    %4703 = vmatprep.subr.bf16.mxu0 0
    %4704 = vmatpush1.bf16.msra.mxu0 %v3549
    %4705 = vmatprep.subr.bf16.mxu0 0
    %4706 = vmatpush1.bf16.msra.mxu0 %v3556
    %4707 = vmatprep.mubr.bf16.mxu0 %v2970
    %4708 = vmatmul.mubr.bf16.gmra.mrb[0].mxu0 %v2969
    %v4709 = vpop.f32.mrb[0].mxu0
    %v4710 = vadd.f32 %v4645, %v4709
    %v4711 = vpop.f32.mrb[0].mxu0
    %v4712 = vpop.f32.mrb[0].mxu0
    %v4713 = vadd.f32 %v4648, %v4712
    %v4714 = vpop.f32.mrb[0].mxu0
    %4715 = vmatprep.mubr.bf16.mxu0 %v2978
    %4716 = vmatmul.mubr.bf16.gmra.mrb[0].mxu0 %v2977
    %v4717 = vpop.f32.mrb[0].mxu0
    %v4718 = vadd.f32 %v4653, %v4717
    %v4719 = vpop.f32.mrb[0].mxu0
    %v4720 = vpop.f32.mrb[0].mxu0
    %v4721 = vadd.f32 %v4656, %v4720
    %v4722 = vpop.f32.mrb[0].mxu0
    %4723 = vmatprep.mubr.bf16.mxu0 %v2986
    %4724 = vmatmul.mubr.bf16.gmra.mrb[0].mxu0 %v2985
    %v4725 = vpop.f32.mrb[0].mxu0
    %v4726 = vadd.f32 %v4661, %v4725
    %v4727 = vpop.f32.mrb[0].mxu0
    %v4728 = vpop.f32.mrb[0].mxu0
    %v4729 = vadd.f32 %v4664, %v4728
    %v4730 = vpop.f32.mrb[0].mxu0
    %4731 = vmatprep.mubr.bf16.mxu0 %v2994
    %4732 = vmatmul.mubr.bf16.gmra.mrb[0].mxu0 %v2993
    %v4733 = vpop.f32.mrb[0].mxu0
    %v4734 = vadd.f32 %v4669, %v4733
    %v4735 = vpop.f32.mrb[0].mxu0
    %v4736 = vpop.f32.mrb[0].mxu0
    %v4737 = vadd.f32 %v4672, %v4736
    %v4738 = vpop.f32.mrb[0].mxu0
    %4739 = vdwg.mxu0
    %4740 = vmatprep.subr.bf16.mxu0 0
    %4741 = vmatpush1.bf16.msra.mxu0 %v3563
    %4742 = vmatprep.subr.bf16.mxu0 0
    %4743 = vmatpush1.bf16.msra.mxu0 %v3570
    %4744 = vmatprep.subr.bf16.mxu0 0
    %4745 = vmatpush1.bf16.msra.mxu0 %v3577
    %4746 = vmatprep.subr.bf16.mxu0 0
    %4747 = vmatpush1.bf16.msra.mxu0 %v3584
    %4748 = vmatprep.subr.bf16.mxu0 0
    %4749 = vmatpush1.bf16.msra.mxu0 %v3591
    %4750 = vmatprep.subr.bf16.mxu0 0
    %4751 = vmatpush1.bf16.msra.mxu0 %v3598
    %4752 = vmatprep.subr.bf16.mxu0 0
    %4753 = vmatpush1.bf16.msra.mxu0 %v3605
    %4754 = vmatprep.subr.bf16.mxu0 0
    %4755 = vmatpush1.bf16.msra.mxu0 %v3612
    %4756 = vmatprep.subr.bf16.mxu0 0
    %4757 = vmatpush1.bf16.msra.mxu0 %v3619
    %4758 = vmatprep.subr.bf16.mxu0 0
    %4759 = vmatpush1.bf16.msra.mxu0 %v3626
    %4760 = vmatprep.subr.bf16.mxu0 0
    %4761 = vmatpush1.bf16.msra.mxu0 %v3633
    %4762 = vmatprep.subr.bf16.mxu0 0
    %4763 = vmatpush1.bf16.msra.mxu0 %v3640
    %4764 = vmatprep.subr.bf16.mxu0 0
    %4765 = vmatpush1.bf16.msra.mxu0 %v3647
    %4766 = vmatprep.subr.bf16.mxu0 0
    %4767 = vmatpush1.bf16.msra.mxu0 %v3654
    %4768 = vmatprep.subr.bf16.mxu0 0
    %4769 = vmatpush1.bf16.msra.mxu0 %v3661
    %4770 = vmatprep.subr.bf16.mxu0 0
    %4771 = vmatpush1.bf16.msra.mxu0 %v3668
    %4772 = vmatprep.mubr.bf16.mxu0 %v2972
    %4773 = vmatmul.mubr.bf16.gmra.mrb[0].mxu0 %v2971
    %v4774 = vpop.f32.mrb[0].mxu0
    %v4775 = vadd.f32 %v4710, %v4774
    %v4776 = vpop.f32.mrb[0].mxu0
    %v4777 = vpop.f32.mrb[0].mxu0
    %v4778 = vadd.f32 %v4713, %v4777
    %v4779 = vpop.f32.mrb[0].mxu0
    %4780 = vmatprep.mubr.bf16.mxu0 %v2980
    %4781 = vmatmul.mubr.bf16.gmra.mrb[0].mxu0 %v2979
    %v4782 = vpop.f32.mrb[0].mxu0
    %v4783 = vadd.f32 %v4718, %v4782
    %v4784 = vpop.f32.mrb[0].mxu0
    %v4785 = vpop.f32.mrb[0].mxu0
    %v4786 = vadd.f32 %v4721, %v4785
    %v4787 = vpop.f32.mrb[0].mxu0
    %4788 = vmatprep.mubr.bf16.mxu0 %v2988
    %4789 = vmatmul.mubr.bf16.gmra.mrb[0].mxu0 %v2987
    %v4790 = vpop.f32.mrb[0].mxu0
    %v4791 = vadd.f32 %v4726, %v4790
    %v4792 = vpop.f32.mrb[0].mxu0
    %v4793 = vpop.f32.mrb[0].mxu0
    %v4794 = vadd.f32 %v4729, %v4793
    %v4795 = vpop.f32.mrb[0].mxu0
    %4796 = vmatprep.mubr.bf16.mxu0 %v2996
    %4797 = vmatmul.mubr.bf16.gmra.mrb[0].mxu0 %v2995
    %v4798 = vpop.f32.mrb[0].mxu0
    %v4799 = vadd.f32 %v4734, %v4798
    %v4800 = vpop.f32.mrb[0].mxu0
    %v4801 = vpop.f32.mrb[0].mxu0
    %v4802 = vadd.f32 %v4737, %v4801
    %v4803 = vpop.f32.mrb[0].mxu0
    %4804 = vdwg.mxu0
    %s4805 = scalar_lea.vmem %s4, 66
    %v4806 = vld [vmem:[%s4805] ss:$8 sm:$0xf]
    %v4807 = vld [vmem:[%s4805] ss:$8 sm:$0xf0]
    %v4808 = vor.u32 %v4806, %v4807
    %v4810 = vlaneseq
    %v4811 = vshrl.u32 %v4810, 7
    %v4812 = vsub.s32 0, %v4811
    %v4813 = vrot.slane %v4808, %v4812
    %v4814 = vlaneseq
    %v4815 = vshrl.u32 %v4814, 7
    %v4816 = vsub.s32 1, %v4815
    %v4817 = vrot.slane %v4808, %v4816
    %v4818 = vlaneseq
    %v4819 = vshrl.u32 %v4818, 7
    %v4820 = vsub.s32 2, %v4819
    %v4821 = vrot.slane %v4808, %v4820
    %v4822 = vlaneseq
    %v4823 = vshrl.u32 %v4822, 7
    %v4824 = vsub.s32 3, %v4823
    %v4825 = vrot.slane %v4808, %v4824
    %v4826 = vlaneseq
    %v4827 = vshrl.u32 %v4826, 7
    %v4828 = vsub.s32 4, %v4827
    %v4829 = vrot.slane %v4808, %v4828
    %v4830 = vlaneseq
    %v4831 = vshrl.u32 %v4830, 7
    %v4832 = vsub.s32 5, %v4831
    %v4833 = vrot.slane %v4808, %v4832
    %v4834 = vlaneseq
    %v4835 = vshrl.u32 %v4834, 7
    %v4836 = vsub.s32 6, %v4835
    %v4837 = vrot.slane %v4808, %v4836
    %v4845 = vmul.f32 %v3923, %v4813
    %v4846 = vmul.f32 %v3925, %v4817
    %v4847 = vmul.f32 %v4215, %v4821
    %v4848 = vmul.f32 %v4217, %v4825
    %v4849 = vmul.f32 %v4507, %v4829
    %v4850 = vmul.f32 %v4509, %v4833
    %v4851 = vmul.f32 %v4775, %v4837
    %v4852 = vmul.f32 %v3927, %v4813
    %v4853 = vmul.f32 %v3929, %v4817
    %v4854 = vmul.f32 %v4219, %v4821
    %v4855 = vmul.f32 %v4221, %v4825
    %v4856 = vmul.f32 %v4511, %v4829
    %v4857 = vmul.f32 %v4513, %v4833
    %v4858 = vmul.f32 %v4778, %v4837
    %v4859 = vmul.f32 %v3933, %v4813
    %v4860 = vmul.f32 %v3935, %v4817
    %v4861 = vmul.f32 %v4225, %v4821
    %v4862 = vmul.f32 %v4227, %v4825
    %v4863 = vmul.f32 %v4517, %v4829
    %v4864 = vmul.f32 %v4519, %v4833
    %v4865 = vmul.f32 %v4783, %v4837
    %v4866 = vmul.f32 %v3937, %v4813
    %v4867 = vmul.f32 %v3939, %v4817
    %v4868 = vmul.f32 %v4229, %v4821
    %v4869 = vmul.f32 %v4231, %v4825
    %v4870 = vmul.f32 %v4521, %v4829
    %v4871 = vmul.f32 %v4523, %v4833
    %v4872 = vmul.f32 %v4786, %v4837
    %v4873 = vmul.f32 %v3943, %v4813
    %v4874 = vmul.f32 %v3945, %v4817
    %v4875 = vmul.f32 %v4235, %v4821
    %v4876 = vmul.f32 %v4237, %v4825
    %v4877 = vmul.f32 %v4527, %v4829
    %v4878 = vmul.f32 %v4529, %v4833
    %v4879 = vmul.f32 %v4791, %v4837
    %v4880 = vmul.f32 %v3947, %v4813
    %v4881 = vmul.f32 %v3949, %v4817
    %v4882 = vmul.f32 %v4239, %v4821
    %v4883 = vmul.f32 %v4241, %v4825
    %v4884 = vmul.f32 %v4531, %v4829
    %v4885 = vmul.f32 %v4533, %v4833
    %v4886 = vmul.f32 %v4794, %v4837
    %v4887 = vmul.f32 %v3953, %v4813
    %v4888 = vmul.f32 %v3955, %v4817
    %v4889 = vmul.f32 %v4245, %v4821
    %v4890 = vmul.f32 %v4247, %v4825
    %v4891 = vmul.f32 %v4537, %v4829
    %v4892 = vmul.f32 %v4539, %v4833
    %v4893 = vmul.f32 %v4799, %v4837
    %v4894 = vmul.f32 %v3957, %v4813
    %v4895 = vmul.f32 %v3959, %v4817
    %v4896 = vmul.f32 %v4249, %v4821
    %v4897 = vmul.f32 %v4251, %v4825
    %v4898 = vmul.f32 %v4541, %v4829
    %v4899 = vmul.f32 %v4543, %v4833
    %v4900 = vmul.f32 %v4802, %v4837
    %s4901 = scalar_lea.vmem %s4, 65
    %v4902 = vld [vmem:[%s4901] ss:$8 sm:$0xf]
    %v4903 = vld [vmem:[%s4901] ss:$8 sm:$0xf0]
    %v4904 = vor.u32 %v4902, %v4903
    %v4906 = vlaneseq
    %v4907 = vshrl.u32 %v4906, 7
    %v4908 = vsub.s32 0, %v4907
    %v4909 = vrot.slane %v4904, %v4908
    %v4910 = vlaneseq
    %v4911 = vshrl.u32 %v4910, 7
    %v4912 = vsub.s32 1, %v4911
    %v4913 = vrot.slane %v4904, %v4912
    %v4914 = vlaneseq
    %v4915 = vshrl.u32 %v4914, 7
    %v4916 = vsub.s32 2, %v4915
    %v4917 = vrot.slane %v4904, %v4916
    %v4918 = vlaneseq
    %v4919 = vshrl.u32 %v4918, 7
    %v4920 = vsub.s32 3, %v4919
    %v4921 = vrot.slane %v4904, %v4920
    %v4922 = vlaneseq
    %v4923 = vshrl.u32 %v4922, 7
    %v4924 = vsub.s32 4, %v4923
    %v4925 = vrot.slane %v4904, %v4924
    %v4926 = vlaneseq
    %v4927 = vshrl.u32 %v4926, 7
    %v4928 = vsub.s32 5, %v4927
    %v4929 = vrot.slane %v4904, %v4928
    %v4930 = vlaneseq
    %v4931 = vshrl.u32 %v4930, 7
    %v4932 = vsub.s32 6, %v4931
    %v4933 = vrot.slane %v4904, %v4932
    %v4941 = vadd.f32 %v4845, %v4909
    %v4942 = vadd.f32 %v4846, %v4913
    %v4943 = vadd.f32 %v4847, %v4917
    %v4944 = vadd.f32 %v4848, %v4921
    %v4945 = vadd.f32 %v4849, %v4925
    %v4946 = vadd.f32 %v4850, %v4929
    %v4947 = vadd.f32 %v4851, %v4933
    %v4948 = vadd.f32 %v4852, %v4909
    %v4949 = vadd.f32 %v4853, %v4913
    %v4950 = vadd.f32 %v4854, %v4917
    %v4951 = vadd.f32 %v4855, %v4921
    %v4952 = vadd.f32 %v4856, %v4925
    %v4953 = vadd.f32 %v4857, %v4929
    %v4954 = vadd.f32 %v4858, %v4933
    %v4955 = vadd.f32 %v4859, %v4909
    %v4956 = vadd.f32 %v4860, %v4913
    %v4957 = vadd.f32 %v4861, %v4917
    %v4958 = vadd.f32 %v4862, %v4921
    %v4959 = vadd.f32 %v4863, %v4925
    %v4960 = vadd.f32 %v4864, %v4929
    %v4961 = vadd.f32 %v4865, %v4933
    %v4962 = vadd.f32 %v4866, %v4909
    %v4963 = vadd.f32 %v4867, %v4913
    %v4964 = vadd.f32 %v4868, %v4917
    %v4965 = vadd.f32 %v4869, %v4921
    %v4966 = vadd.f32 %v4870, %v4925
    %v4967 = vadd.f32 %v4871, %v4929
    %v4968 = vadd.f32 %v4872, %v4933
    %v4969 = vadd.f32 %v4873, %v4909
    %v4970 = vadd.f32 %v4874, %v4913
    %v4971 = vadd.f32 %v4875, %v4917
    %v4972 = vadd.f32 %v4876, %v4921
    %v4973 = vadd.f32 %v4877, %v4925
    %v4974 = vadd.f32 %v4878, %v4929
    %v4975 = vadd.f32 %v4879, %v4933
    %v4976 = vadd.f32 %v4880, %v4909
    %v4977 = vadd.f32 %v4881, %v4913
    %v4978 = vadd.f32 %v4882, %v4917
    %v4979 = vadd.f32 %v4883, %v4921
    %v4980 = vadd.f32 %v4884, %v4925
    %v4981 = vadd.f32 %v4885, %v4929
    %v4982 = vadd.f32 %v4886, %v4933
    %v4983 = vadd.f32 %v4887, %v4909
    %v4984 = vadd.f32 %v4888, %v4913
    %v4985 = vadd.f32 %v4889, %v4917
    %v4986 = vadd.f32 %v4890, %v4921
    %v4987 = vadd.f32 %v4891, %v4925
    %v4988 = vadd.f32 %v4892, %v4929
    %v4989 = vadd.f32 %v4893, %v4933
    %v4990 = vadd.f32 %v4894, %v4909
    %v4991 = vadd.f32 %v4895, %v4913
    %v4992 = vadd.f32 %v4896, %v4917
    %v4993 = vadd.f32 %v4897, %v4921
    %v4994 = vadd.f32 %v4898, %v4925
    %v4995 = vadd.f32 %v4899, %v4929
    %v4996 = vadd.f32 %v4900, %v4933
    %v4997 = vtanh.pop %v4941
    %v4998 = vtanh.pop %v4942
    %v4999 = vtanh.pop %v4943
    %v5000 = vtanh.pop %v4944
    %v5001 = vtanh.pop %v4945
    %v5002 = vtanh.pop %v4946
    %v5003 = vtanh.pop %v4947
    %v5004 = vtanh.pop %v4948
    %v5005 = vtanh.pop %v4949
    %v5006 = vtanh.pop %v4950
    %v5007 = vtanh.pop %v4951
    %v5008 = vtanh.pop %v4952
    %v5009 = vtanh.pop %v4953
    %v5010 = vtanh.pop %v4954
    %v5011 = vtanh.pop %v4955
    %v5012 = vtanh.pop %v4956
    %v5013 = vtanh.pop %v4957
    %v5014 = vtanh.pop %v4958
    %v5015 = vtanh.pop %v4959
    %v5016 = vtanh.pop %v4960
    %v5017 = vtanh.pop %v4961
    %v5018 = vtanh.pop %v4962
    %v5019 = vtanh.pop %v4963
    %v5020 = vtanh.pop %v4964
    %v5021 = vtanh.pop %v4965
    %v5022 = vtanh.pop %v4966
    %v5023 = vtanh.pop %v4967
    %v5024 = vtanh.pop %v4968
    %v5025 = vtanh.pop %v4969
    %v5026 = vtanh.pop %v4970
    %v5027 = vtanh.pop %v4971
    %v5028 = vtanh.pop %v4972
    %v5029 = vtanh.pop %v4973
    %v5030 = vtanh.pop %v4974
    %v5031 = vtanh.pop %v4975
    %v5032 = vtanh.pop %v4976
    %v5033 = vtanh.pop %v4977
    %v5034 = vtanh.pop %v4978
    %v5035 = vtanh.pop %v4979
    %v5036 = vtanh.pop %v4980
    %v5037 = vtanh.pop %v4981
    %v5038 = vtanh.pop %v4982
    %v5039 = vtanh.pop %v4983
    %v5040 = vtanh.pop %v4984
    %v5041 = vtanh.pop %v4985
    %v5042 = vtanh.pop %v4986
    %v5043 = vtanh.pop %v4987
    %v5044 = vtanh.pop %v4988
    %v5045 = vtanh.pop %v4989
    %v5046 = vtanh.pop %v4990
    %v5047 = vtanh.pop %v4991
    %v5048 = vtanh.pop %v4992
    %v5049 = vtanh.pop %v4993
    %v5050 = vtanh.pop %v4994
    %v5051 = vtanh.pop %v4995
    %v5052 = vtanh.pop %v4996
    %5053 = vst [vmem:[%s5] sm:$0xff] %v4997
    %5054 = vst [vmem:[%s5 + $0x8] sm:$0xff] %v4998
    %5055 = vst [vmem:[%s5 + $0x10] sm:$0xff] %v4999
    %5056 = vst [vmem:[%s5 + $0x18] sm:$0xff] %v5000
    %5057 = vst [vmem:[%s5 + $0x20] sm:$0xff] %v5001
    %5058 = vst [vmem:[%s5 + $0x28] sm:$0xff] %v5002
    %5059 = vst [vmem:[%s5 + $0x30] sm:$0xff] %v5003
    %5060 = vst [vmem:[%s5 + $0x38] sm:$0xff] %v5004
    %5061 = vst [vmem:[%s5 + $0x40] sm:$0xff] %v5005
    %5062 = vst [vmem:[%s5 + $0x48] sm:$0xff] %v5006
    %5063 = vst [vmem:[%s5 + $0x50] sm:$0xff] %v5007
    %5064 = vst [vmem:[%s5 + $0x58] sm:$0xff] %v5008
    %5065 = vst [vmem:[%s5 + $0x60] sm:$0xff] %v5009
    %5066 = vst [vmem:[%s5 + $0x68] sm:$0xff] %v5010
    %5067 = vst [vmem:[%s5 + $0x70] sm:$0xff] %v5011
    %5068 = vst [vmem:[%s5 + $0x78] sm:$0xff] %v5012
    %5069 = vst [vmem:[%s5 + $0x80] sm:$0xff] %v5013
    %5070 = vst [vmem:[%s5 + $0x88] sm:$0xff] %v5014
    %5071 = vst [vmem:[%s5 + $0x90] sm:$0xff] %v5015
    %5072 = vst [vmem:[%s5 + $0x98] sm:$0xff] %v5016
    %5073 = vst [vmem:[%s5 + $0xa0] sm:$0xff] %v5017
    %5074 = vst [vmem:[%s5 + $0xa8] sm:$0xff] %v5018
    %5075 = vst [vmem:[%s5 + $0xb0] sm:$0xff] %v5019
    %5076 = vst [vmem:[%s5 + $0xb8] sm:$0xff] %v5020
    %5077 = vst [vmem:[%s5 + $0xc0] sm:$0xff] %v5021
    %5078 = vst [vmem:[%s5 + $0xc8] sm:$0xff] %v5022
    %5079 = vst [vmem:[%s5 + $0xd0] sm:$0xff] %v5023
    %5080 = vst [vmem:[%s5 + $0xd8] sm:$0xff] %v5024
    %5081 = vst [vmem:[%s5 + $0xe0] sm:$0xff] %v5025
    %5082 = vst [vmem:[%s5 + $0xe8] sm:$0xff] %v5026
    %5083 = vst [vmem:[%s5 + $0xf0] sm:$0xff] %v5027
    %5084 = vst [vmem:[%s5 + $0xf8] sm:$0xff] %v5028
    %5085 = vst [vmem:[%s5 + $0x100] sm:$0xff] %v5029
    %5086 = vst [vmem:[%s5 + $0x108] sm:$0xff] %v5030
    %5087 = vst [vmem:[%s5 + $0x110] sm:$0xff] %v5031
    %5088 = vst [vmem:[%s5 + $0x118] sm:$0xff] %v5032
    %5089 = vst [vmem:[%s5 + $0x120] sm:$0xff] %v5033
    %5090 = vst [vmem:[%s5 + $0x128] sm:$0xff] %v5034
    %5091 = vst [vmem:[%s5 + $0x130] sm:$0xff] %v5035
    %5092 = vst [vmem:[%s5 + $0x138] sm:$0xff] %v5036
    %5093 = vst [vmem:[%s5 + $0x140] sm:$0xff] %v5037
    %5094 = vst [vmem:[%s5 + $0x148] sm:$0xff] %v5038
    %5095 = vst [vmem:[%s5 + $0x150] sm:$0xff] %v5039
    %5096 = vst [vmem:[%s5 + $0x158] sm:$0xff] %v5040
    %5097 = vst [vmem:[%s5 + $0x160] sm:$0xff] %v5041
    %5098 = vst [vmem:[%s5 + $0x168] sm:$0xff] %v5042
    %5099 = vst [vmem:[%s5 + $0x170] sm:$0xff] %v5043
    %5100 = vst [vmem:[%s5 + $0x178] sm:$0xff] %v5044
    %5101 = vst [vmem:[%s5 + $0x180] sm:$0xff] %v5045
    %5102 = vst [vmem:[%s5 + $0x188] sm:$0xff] %v5046
    %5103 = vst [vmem:[%s5 + $0x190] sm:$0xff] %v5047
    %5104 = vst [vmem:[%s5 + $0x198] sm:$0xff] %v5048
    %5105 = vst [vmem:[%s5 + $0x1a0] sm:$0xff] %v5049
    %5106 = vst [vmem:[%s5 + $0x1a8] sm:$0xff] %v5050
    %5107 = vst [vmem:[%s5 + $0x1b0] sm:$0xff] %v5051
    %5108 = vst [vmem:[%s5 + $0x1b8] sm:$0xff] %v5052
    // Predicated region
    $region18: #{generator_forward.1} parent=1 // pred_check
      _
    $region19: #{generator_forward.1} parent=1 // pred_check_branch
      %5110 = sbr.rel (0) target = $region21
    $region20: #{generator_forward.1} parent=1 // pred_region
      _
    $region21: #{generator_forward.1} parent=1 // pred_fallthru
      _
    // Predicated region
    $region22: #{generator_forward.1} parent=1 // pred_check
      _
    $region23: #{generator_forward.1} parent=1 // pred_check_branch
      %5112 = sbr.rel (0) target = $region25
    $region24: #{generator_forward.1} parent=1 // pred_region
      _
    $region25: #{generator_forward.1} parent=1 // pred_fallthru
      _
  %5113 = vsyncmov [#allocation5]
  %s5114 = vpop.sfrf %5113
  %p5115 = scmp.eq.s32.totalorder %s5114, 0
  %p5116 = pneg %p5115
  %5118 = shalt.err (%p5116)
  %s5119 = scalar_lea.sflag [#allocation5], 1
  %5120 = vsyncmov %s5119
  %s5121 = vpop.sfrf %5120
  %p5122 = scmp.eq.s32.totalorder %s5121, 0
  %p5123 = pneg %p5122
  %5125 = shalt.err (%p5123)
  %s5126 = scalar_lea.sflag [#allocation5], 2
  %5127 = vsyncmov %s5126
  %s5128 = vpop.sfrf %5127
  %p5129 = scmp.eq.s32.totalorder %s5128, 0
  %p5130 = pneg %p5129
  %5132 = shalt.err (%p5130)

</llo_original>
